<compile_context>
chip_gen: v7x
topology: tpu7x:2x2x1
jax: 0.10.0
libtpu: 0.0.40
codegen_flags: <defaults>
</compile_context>

<pallas_src>
import functools

import jax
import jax.numpy as jnp
from jax.experimental import pallas as pl
from jax.experimental.pallas import tpu as pltpu

GAMMA_NEG0 = 1.0
GAMMA_POS = 1.0
CLIP = 0.05
EPS = 1e-8
GAP_TARGET = 0.1
GAMMA_STEP = 0.1
_TINY = 1e-30
_LANE = 128


def _sigmoid(x):
    # One EUP op (tanh) instead of exp + f32-divide expansion; pass 1 sits at
    # the single-EUP roofline on v6e/v7x so every transcendental counts.
    return 0.5 * jnp.tanh(0.5 * x) + 0.5


def _asl_kernel(x_ref, y_ref, out_ref, acc_ref, *caches, cache, tb, tc):
    """Two-pass ASL (pass 0: global reductions, pass 1: weighted loss).

    acc_ref (SMEM) layout:
      0 sum(pt0) | 1 sum(pt1) | 2 sum(y) | 3 sum(1-y) | 4 sum((sig-y)^2)
      5 sum(weighted loss)    | 6 updated gamma_neg
    """
    p = pl.program_id(0)          # 0 = reduction pass, 1 = weighted-loss pass
    i = pl.program_id(1)          # batch tile
    j = pl.program_id(2)          # class tile
    first = jnp.logical_and(i == 0, j == 0)
    last = jnp.logical_and(i == pl.num_programs(1) - 1,
                           j == pl.num_programs(2) - 1)

    @pl.when(jnp.logical_and(p == 0, first))
    def _init():
        for k in range(7):
            acc_ref[k] = jnp.float32(0.0)

    @pl.when(p == 0)
    def _reduce():
        x = x_ref[...].astype(jnp.float32)
        y = y_ref[...].astype(jnp.float32)
        xs_pos = _sigmoid(x)
        xs_neg = jnp.minimum(1.0 - xs_pos + CLIP, 1.0)   # clip > 0 branch
        one_m_y = 1.0 - y
        acc_ref[0] += jnp.sum(xs_pos * y)
        acc_ref[1] += jnp.sum(xs_neg * one_m_y)
        acc_ref[2] += jnp.sum(y)
        acc_ref[3] += jnp.sum(one_m_y)                   # exact (1-y).sum()
        acc_ref[4] += jnp.sum((xs_pos - y) ** 2)
        if cache:
            xs_cache, y_cache = caches
            r = pl.multiple_of(i * tb, tb)
            c = pl.multiple_of(j * tc, tc)
            xs_cache[pl.ds(r, tb), pl.ds(c, tc)] = xs_pos
            y_cache[pl.ds(r, tb), pl.ds(c, tc)] = y

    @pl.when(jnp.logical_and(p == 1, first))
    def _adaptive_update():
        gap = (acc_ref[0] / (acc_ref[2] + EPS)
               - acc_ref[1] / (acc_ref[3] + EPS))
        acc_ref[6] = GAMMA_NEG0 - GAMMA_STEP * (gap - GAP_TARGET)

    @pl.when(p == 1)
    def _weighted_loss():
        if cache:
            xs_cache, y_cache = caches
            r = pl.multiple_of(i * tb, tb)
            c = pl.multiple_of(j * tc, tc)
            xs_pos = xs_cache[pl.ds(r, tb), pl.ds(c, tc)]
            y = y_cache[pl.ds(r, tb), pl.ds(c, tc)]
        else:
            xs_pos = _sigmoid(x_ref[...].astype(jnp.float32))
            y = y_ref[...].astype(jnp.float32)
        xs_neg = jnp.minimum(1.0 - xs_pos + CLIP, 1.0)
        one_m_y = 1.0 - y
        gamma_neg = acc_ref[6]                           # SMEM scalar
        base = (y * jnp.log(jnp.maximum(xs_pos, EPS))
                + one_m_y * jnp.log(jnp.maximum(xs_neg, EPS)))
        one_m_pt = 1.0 - (xs_pos * y + xs_neg * one_m_y)
        gamma = GAMMA_POS * y + gamma_neg * one_m_y      # > 0 here
        # pow(t, gamma) via exp/log on the EUP; pow(0, gamma>0) == 0.  (For soft
        # labels where 1-pt < 0 torch.pow returns NaN; we return 0 instead.)
        w = jnp.where(one_m_pt > 0.0,
                      jnp.exp(gamma * jnp.log(jnp.maximum(one_m_pt, _TINY))),
                      0.0)
        acc_ref[5] += jnp.sum(base * w)

    @pl.when(jnp.logical_and(p == 1, last))
    def _finalize():
        out_ref[0] = -acc_ref[5] + acc_ref[4]            # total loss
        out_ref[1] = acc_ref[6]                          # updated gamma_neg


def _sublane_mult(dtype):
    return {1: 32, 2: 16}.get(jnp.dtype(dtype).itemsize, 8)


def _vmem_budget_bytes():
    try:
        cap = int(pltpu.get_tpu_info().vmem_capacity_bytes)
    except Exception:
        cap = 64 * 1024 * 1024        # conservative (v7x-sized physical VMEM)
    return (cap * 3) // 4             # ~96 MiB on v5e/v6e, ~48 MiB on v7x


def _largest_aligned_divisor(n, align, cap):
    """Largest t dividing n with t <= cap and t % align == 0 (falls back to n)."""
    if n <= cap:
        return n
    t = (min(cap, n) // align) * align
    while t >= align:
        if n % t == 0:
            return t
        t -= align
    return n   # pathological shape (no aligned divisor): use the full extent


def _plan(B, C, x_dtype, y_dtype):
    """Pick (tb, tc, cache) from the generation-specific VMEM budget."""
    budget = _vmem_budget_bytes()
    in_bytes = jnp.dtype(x_dtype).itemsize + jnp.dtype(y_dtype).itemsize
    sub = max(_sublane_mult(x_dtype), _sublane_mult(y_dtype))
    # double-buffered input blocks + ~4 block-sized f32 temporaries of margin
    per_elem = 2 * in_bytes + 16
    n = B * C

    # (a) whole problem resident as one block: single HBM read, grid (2,1,1).
    if n * per_elem <= budget:
        return B, C, False

    # (b) cache sigmoid(x)/y as f32 in VMEM during pass 0 so pass 1 never
    #     re-reads HBM; only if >= 8 MiB remains for the streamed pass-0 tiles.
    cache_bytes = 2 * n * 4
    cache = cache_bytes + (8 << 20) <= budget
    avail = budget - (cache_bytes if cache else 0)

    # (c) streamed (tb, tc) tiles: target ~1M elems (~4 MiB f32) per input tile,
    #     prefer full-C rows for long contiguous HBM DMA runs.
    max_elems = max(min(avail // per_elem, 1 << 20), sub * _LANE)
    if C * sub <= max_elems:
        tc = C
    else:
        tc = _largest_aligned_divisor(C, _LANE, max(max_elems // sub, _LANE))
    tb = _largest_aligned_divisor(B, sub, max(max_elems // tc, sub))
    return tb, tc, cache


@functools.partial(jax.jit, static_argnames=("tb", "tc", "cache"))
def asymmetric_loss_adaptive(x, y, *, tb=None, tc=None, cache=None):
    """Mirrors AsymmetricLossAdaptiveWorking.forward (default ctor args,
    updateAdaptive=True).  Returns (total_loss, updated_gamma_neg).

    y may be float32/bf16/int8/bool; it is cast to f32 inside the kernel, so
    passing narrow label dtypes reduces HBM traffic.  tb/tc/cache are optional
    static overrides of the automatic plan (mainly for testing).
    """
    B, C = x.shape
    auto_tb, auto_tc, auto_cache = _plan(B, C, x.dtype, y.dtype)
    tb = auto_tb if tb is None else tb
    tc = auto_tc if tc is None else tc
    cache = auto_cache if cache is None else cache
    assert B % tb == 0 and C % tc == 0, "tiles must evenly divide (B, C)"
    grid = (2, B // tb, C // tc)

    if cache:
        # Pass 1 reads only the VMEM cache; pin its input windows to block
        # (0, 0) so no second HBM sweep is issued by the pipeliner.
        in_idx = lambda p, i, j: (i * (1 - p), j * (1 - p))
    else:
        in_idx = lambda p, i, j: (i, j)

    scratch = [pltpu.SMEM((8,), jnp.float32)]
    if cache:
        scratch += [pltpu.VMEM((B, C), jnp.float32),     # sigmoid(x) cache
                    pltpu.VMEM((B, C), jnp.float32)]     # y (f32) cache

    kernel = functools.partial(_asl_kernel, cache=cache, tb=tb, tc=tc)
    out = pl.pallas_call(
        kernel,
        out_shape=jax.ShapeDtypeStruct((2,), jnp.float32),
        grid=grid,
        in_specs=[
            pl.BlockSpec((tb, tc), in_idx),              # logits
            pl.BlockSpec((tb, tc), in_idx),              # targets
        ],
        out_specs=pl.BlockSpec((2,), lambda p, i, j: (0,),
                               memory_space=pltpu.MemorySpace.SMEM),
        scratch_shapes=scratch,
        compiler_params=pltpu.CompilerParams(
            # SMEM accumulators are carried across every tile -> sequential.
            dimension_semantics=("arbitrary", "arbitrary", "arbitrary"),
            vmem_limit_bytes=_vmem_budget_bytes(),
        ),
    )(x, y)
    return out[0], out[1]


def _reference(x, y):
    """Pure-JAX transcription of the PyTorch forward (default args)."""
    x = x.astype(jnp.float32)
    y = y.astype(jnp.float32)
    xs_pos = 1.0 / (1.0 + jnp.exp(-x))
    xs_neg = jnp.minimum(1.0 - xs_pos + CLIP, 1.0)
    los_pos = y * jnp.log(jnp.maximum(xs_pos, EPS))
    los_neg = (1.0 - y) * jnp.log(jnp.maximum(xs_neg, EPS))
    loss = los_pos + los_neg
    pt0 = xs_pos * y
    pt1 = xs_neg * (1.0 - y)
    pt = pt0 + pt1
    gap = pt0.sum() / (y.sum() + EPS) - pt1.sum() / ((1.0 - y).sum() + EPS)
    gamma_neg = GAMMA_NEG0 - GAMMA_STEP * (gap - GAP_TARGET)
    one_sided_gamma = GAMMA_POS * y + gamma_neg * (1.0 - y)
    one_sided_w = jnp.power(1.0 - pt, one_sided_gamma)
    loss = loss * one_sided_w
    total = -loss.sum() + ((xs_pos - y) ** 2).sum()
    return total, gamma_neg


if __name__ == "__main__":
    B, C = 64, 1280
    key = jax.random.PRNGKey(0)
    kx, ky = jax.random.split(key)
    x = jax.random.normal(kx, (B, C), dtype=jnp.float32)
    y = jax.random.bernoulli(ky, p=0.3, shape=(B, C)).astype(jnp.float32)

    ref_loss, ref_gamma = _reference(x, y)

    def check(loss, gamma, tag):
        assert jnp.allclose(loss, ref_loss, rtol=1e-4, atol=1e-2), (tag, loss, ref_loss)
        assert jnp.allclose(gamma, ref_gamma, rtol=1e-4, atol=1e-5), (tag, gamma, ref_gamma)

    # 1) auto plan: whole problem resident in VMEM -> single HBM read, grid (2,1,1).
    loss, gamma = asymmetric_loss_adaptive(x, y)
    jax.block_until_ready((loss, gamma))
    check(loss, gamma, "auto")

    # 2) forced multi-tile 2-pass streaming (the big-problem fallback path).
    loss, gamma = asymmetric_loss_adaptive(x, y, tb=16, tc=256, cache=False)
    jax.block_until_ready((loss, gamma))
    check(loss, gamma, "stream")

    # 3) forced multi-tile streaming + persistent VMEM cache (single HBM read).
    loss, gamma = asymmetric_loss_adaptive(x, y, tb=16, tc=256, cache=True)
    jax.block_until_ready((loss, gamma))
    check(loss, gamma, "cache")

    # 4) int8 labels: cast happens in-kernel; narrower y cuts HBM traffic.
    loss, gamma = asymmetric_loss_adaptive(x, y.astype(jnp.int8))
    jax.block_until_ready((loss, gamma))
    check(loss, gamma, "int8-labels")

    print("KERNEL_OK")
</pallas_src>

<mosaic_0001>
module attributes {stable_mosaic.version = 11 : i64} {
  func.func @_asl_kernel(%arg0: i32, %arg1: i32, %arg2: i32, %arg3: memref<64x1280xf32, #tpu.memory_space<vmem>>, %arg4: memref<64x1280xf32, #tpu.memory_space<vmem>>, %arg5: memref<2xf32, #tpu.memory_space<smem>>, %arg6: memref<8xf32, #tpu.memory_space<smem>>) attributes {dimension_semantics = [#tpu.dimension_semantics<arbitrary>, #tpu.dimension_semantics<arbitrary>, #tpu.dimension_semantics<arbitrary>], iteration_bounds = array<i64: 2, 1, 1>, scalar_prefetch = 0 : i64, scratch_operands = 1 : i64, tpu.core_type = #tpu.core_type<tc>, window_params = [{transform_indices = @transform_0, window_bounds = array<i64: 64, 1280>}, {transform_indices = @transform_1, window_bounds = array<i64: 64, 1280>}, {transform_indices = @transform_2, window_bounds = array<i64: 2>}]} {
    %c0_i32 = arith.constant 0 : i32
    %0 = arith.cmpi eq, %arg1, %c0_i32 : i32
    %c0_i32_0 = arith.constant 0 : i32
    %1 = arith.cmpi eq, %arg2, %c0_i32_0 : i32
    %2 = arith.andi %0, %1 : i1
    %c0_i32_1 = arith.constant 0 : i32
    %3 = arith.cmpi eq, %arg1, %c0_i32_1 : i32
    %c0_i32_2 = arith.constant 0 : i32
    %4 = arith.cmpi eq, %arg2, %c0_i32_2 : i32
    %5 = arith.andi %3, %4 : i1
    %c0_i32_3 = arith.constant 0 : i32
    %6 = arith.cmpi eq, %arg0, %c0_i32_3 : i32
    %7 = arith.andi %6, %2 : i1
    %8 = arith.extui %7 : i1 to i32
    %c0_i32_4 = arith.constant 0 : i32
    %9 = arith.cmpi ne, %8, %c0_i32_4 : i32
    scf.if %9 {
      %cst = arith.constant 0.000000e+00 : f32
      %c0 = arith.constant 0 : index
      %24 = memref.load %arg6[%c0] : memref<8xf32, #tpu.memory_space<smem>>
      memref.store %cst, %arg6[%c0] : memref<8xf32, #tpu.memory_space<smem>>
      %cst_12 = arith.constant 0.000000e+00 : f32
      %c1 = arith.constant 1 : index
      %25 = memref.load %arg6[%c1] : memref<8xf32, #tpu.memory_space<smem>>
      memref.store %cst_12, %arg6[%c1] : memref<8xf32, #tpu.memory_space<smem>>
      %cst_13 = arith.constant 0.000000e+00 : f32
      %c2 = arith.constant 2 : index
      %26 = memref.load %arg6[%c2] : memref<8xf32, #tpu.memory_space<smem>>
      memref.store %cst_13, %arg6[%c2] : memref<8xf32, #tpu.memory_space<smem>>
      %cst_14 = arith.constant 0.000000e+00 : f32
      %c3 = arith.constant 3 : index
      %27 = memref.load %arg6[%c3] : memref<8xf32, #tpu.memory_space<smem>>
      memref.store %cst_14, %arg6[%c3] : memref<8xf32, #tpu.memory_space<smem>>
      %cst_15 = arith.constant 0.000000e+00 : f32
      %c4 = arith.constant 4 : index
      %28 = memref.load %arg6[%c4] : memref<8xf32, #tpu.memory_space<smem>>
      memref.store %cst_15, %arg6[%c4] : memref<8xf32, #tpu.memory_space<smem>>
      %cst_16 = arith.constant 0.000000e+00 : f32
      %c5 = arith.constant 5 : index
      %29 = memref.load %arg6[%c5] : memref<8xf32, #tpu.memory_space<smem>>
      memref.store %cst_16, %arg6[%c5] : memref<8xf32, #tpu.memory_space<smem>>
      %cst_17 = arith.constant 0.000000e+00 : f32
      %c6 = arith.constant 6 : index
      %30 = memref.load %arg6[%c6] : memref<8xf32, #tpu.memory_space<smem>>
      memref.store %cst_17, %arg6[%c6] : memref<8xf32, #tpu.memory_space<smem>>
    } else {
    }
    %c0_i32_5 = arith.constant 0 : i32
    %10 = arith.cmpi eq, %arg0, %c0_i32_5 : i32
    %11 = arith.extui %10 : i1 to i32
    %c0_i32_6 = arith.constant 0 : i32
    %12 = arith.cmpi ne, %11, %c0_i32_6 : i32
    scf.if %12 {
      %c0 = arith.constant 0 : index
      %c0_12 = arith.constant 0 : index
      %24 = vector.load %arg3[%c0, %c0_12] : memref<64x1280xf32, #tpu.memory_space<vmem>>, vector<64x1280xf32>
      %c0_13 = arith.constant 0 : index
      %c0_14 = arith.constant 0 : index
      %25 = vector.load %arg4[%c0_13, %c0_14] : memref<64x1280xf32, #tpu.memory_space<vmem>>, vector<64x1280xf32>
      %cst = arith.constant 5.000000e-01 : f32
      %26 = vector.broadcast %cst : f32 to vector<64x1280xf32>
      %27 = arith.mulf %26, %24 : vector<64x1280xf32>
      %28 = math.tanh %27 : vector<64x1280xf32>
      %cst_15 = arith.constant 5.000000e-01 : f32
      %29 = vector.broadcast %cst_15 : f32 to vector<64x1280xf32>
      %30 = arith.mulf %29, %28 : vector<64x1280xf32>
      %cst_16 = arith.constant 5.000000e-01 : f32
      %31 = vector.broadcast %cst_16 : f32 to vector<64x1280xf32>
      %32 = arith.addf %30, %31 : vector<64x1280xf32>
      %cst_17 = arith.constant 1.000000e+00 : f32
      %33 = vector.broadcast %cst_17 : f32 to vector<64x1280xf32>
      %34 = arith.subf %33, %32 : vector<64x1280xf32>
      %cst_18 = arith.constant 5.000000e-02 : f32
      %35 = vector.broadcast %cst_18 : f32 to vector<64x1280xf32>
      %36 = arith.addf %34, %35 : vector<64x1280xf32>
      %cst_19 = arith.constant 1.000000e+00 : f32
      %37 = vector.broadcast %cst_19 : f32 to vector<64x1280xf32>
      %38 = arith.minimumf %36, %37 : vector<64x1280xf32>
      %cst_20 = arith.constant 1.000000e+00 : f32
      %39 = vector.broadcast %cst_20 : f32 to vector<64x1280xf32>
      %40 = arith.subf %39, %25 : vector<64x1280xf32>
      %c0_21 = arith.constant 0 : index
      %41 = memref.load %arg6[%c0_21] : memref<8xf32, #tpu.memory_space<smem>>
      %42 = arith.mulf %32, %25 : vector<64x1280xf32>
      %43 = vector.shape_cast %42 : vector<64x1280xf32> to vector<1x64x1280xf32>
      %cst_22 = arith.constant dense<0.000000e+00> : vector<1xf32>
      %44 = vector.multi_reduction <add>, %43, %cst_22 [1, 2] : vector<1x64x1280xf32> to vector<1xf32>
      %45 = vector.shape_cast %44 : vector<1xf32> to vector<1x1x1xf32>
      %46 = vector.extract %45[0, 0, 0] : f32 from vector<1x1x1xf32>
      %47 = arith.addf %41, %46 : f32
      %c0_23 = arith.constant 0 : index
      %48 = memref.load %arg6[%c0_23] : memref<8xf32, #tpu.memory_space<smem>>
      memref.store %47, %arg6[%c0_23] : memref<8xf32, #tpu.memory_space<smem>>
      %c1 = arith.constant 1 : index
      %49 = memref.load %arg6[%c1] : memref<8xf32, #tpu.memory_space<smem>>
      %50 = arith.mulf %38, %40 : vector<64x1280xf32>
      %51 = vector.shape_cast %50 : vector<64x1280xf32> to vector<1x64x1280xf32>
      %cst_24 = arith.constant dense<0.000000e+00> : vector<1xf32>
      %52 = vector.multi_reduction <add>, %51, %cst_24 [1, 2] : vector<1x64x1280xf32> to vector<1xf32>
      %53 = vector.shape_cast %52 : vector<1xf32> to vector<1x1x1xf32>
      %54 = vector.extract %53[0, 0, 0] : f32 from vector<1x1x1xf32>
      %55 = arith.addf %49, %54 : f32
      %c1_25 = arith.constant 1 : index
      %56 = memref.load %arg6[%c1_25] : memref<8xf32, #tpu.memory_space<smem>>
      memref.store %55, %arg6[%c1_25] : memref<8xf32, #tpu.memory_space<smem>>
      %c2 = arith.constant 2 : index
      %57 = memref.load %arg6[%c2] : memref<8xf32, #tpu.memory_space<smem>>
      %58 = vector.shape_cast %25 : vector<64x1280xf32> to vector<1x64x1280xf32>
      %cst_26 = arith.constant dense<0.000000e+00> : vector<1xf32>
      %59 = vector.multi_reduction <add>, %58, %cst_26 [1, 2] : vector<1x64x1280xf32> to vector<1xf32>
      %60 = vector.shape_cast %59 : vector<1xf32> to vector<1x1x1xf32>
      %61 = vector.extract %60[0, 0, 0] : f32 from vector<1x1x1xf32>
      %62 = arith.addf %57, %61 : f32
      %c2_27 = arith.constant 2 : index
      %63 = memref.load %arg6[%c2_27] : memref<8xf32, #tpu.memory_space<smem>>
      memref.store %62, %arg6[%c2_27] : memref<8xf32, #tpu.memory_space<smem>>
      %c3 = arith.constant 3 : index
      %64 = memref.load %arg6[%c3] : memref<8xf32, #tpu.memory_space<smem>>
      %65 = vector.shape_cast %40 : vector<64x1280xf32> to vector<1x64x1280xf32>
      %cst_28 = arith.constant dense<0.000000e+00> : vector<1xf32>
      %66 = vector.multi_reduction <add>, %65, %cst_28 [1, 2] : vector<1x64x1280xf32> to vector<1xf32>
      %67 = vector.shape_cast %66 : vector<1xf32> to vector<1x1x1xf32>
      %68 = vector.extract %67[0, 0, 0] : f32 from vector<1x1x1xf32>
      %69 = arith.addf %64, %68 : f32
      %c3_29 = arith.constant 3 : index
      %70 = memref.load %arg6[%c3_29] : memref<8xf32, #tpu.memory_space<smem>>
      memref.store %69, %arg6[%c3_29] : memref<8xf32, #tpu.memory_space<smem>>
      %c4 = arith.constant 4 : index
      %71 = memref.load %arg6[%c4] : memref<8xf32, #tpu.memory_space<smem>>
      %72 = arith.subf %32, %25 : vector<64x1280xf32>
      %73 = arith.mulf %72, %72 : vector<64x1280xf32>
      %74 = vector.shape_cast %73 : vector<64x1280xf32> to vector<1x64x1280xf32>
      %cst_30 = arith.constant dense<0.000000e+00> : vector<1xf32>
      %75 = vector.multi_reduction <add>, %74, %cst_30 [1, 2] : vector<1x64x1280xf32> to vector<1xf32>
      %76 = vector.shape_cast %75 : vector<1xf32> to vector<1x1x1xf32>
      %77 = vector.extract %76[0, 0, 0] : f32 from vector<1x1x1xf32>
      %78 = arith.addf %71, %77 : f32
      %c4_31 = arith.constant 4 : index
      %79 = memref.load %arg6[%c4_31] : memref<8xf32, #tpu.memory_space<smem>>
      memref.store %78, %arg6[%c4_31] : memref<8xf32, #tpu.memory_space<smem>>
    } else {
    }
    %c1_i32 = arith.constant 1 : i32
    %13 = arith.cmpi eq, %arg0, %c1_i32 : i32
    %14 = arith.andi %13, %2 : i1
    %15 = arith.extui %14 : i1 to i32
    %c0_i32_7 = arith.constant 0 : i32
    %16 = arith.cmpi ne, %15, %c0_i32_7 : i32
    scf.if %16 {
      %c0 = arith.constant 0 : index
      %24 = memref.load %arg6[%c0] : memref<8xf32, #tpu.memory_space<smem>>
      %c2 = arith.constant 2 : index
      %25 = memref.load %arg6[%c2] : memref<8xf32, #tpu.memory_space<smem>>
      %cst = arith.constant 9.99999993E-9 : f32
      %26 = arith.addf %25, %cst : f32
      %27 = arith.divf %24, %26 : f32
      %c1 = arith.constant 1 : index
      %28 = memref.load %arg6[%c1] : memref<8xf32, #tpu.memory_space<smem>>
      %c3 = arith.constant 3 : index
      %29 = memref.load %arg6[%c3] : memref<8xf32, #tpu.memory_space<smem>>
      %cst_12 = arith.constant 9.99999993E-9 : f32
      %30 = arith.addf %29, %cst_12 : f32
      %31 = arith.divf %28, %30 : f32
      %32 = arith.subf %27, %31 : f32
      %cst_13 = arith.constant 1.000000e-01 : f32
      %33 = arith.subf %32, %cst_13 : f32
      %cst_14 = arith.constant 1.000000e-01 : f32
      %34 = arith.mulf %cst_14, %33 : f32
      %cst_15 = arith.constant 1.000000e+00 : f32
      %35 = arith.subf %cst_15, %34 : f32
      %c6 = arith.constant 6 : index
      %36 = memref.load %arg6[%c6] : memref<8xf32, #tpu.memory_space<smem>>
      memref.store %35, %arg6[%c6] : memref<8xf32, #tpu.memory_space<smem>>
    } else {
    }
    %c1_i32_8 = arith.constant 1 : i32
    %17 = arith.cmpi eq, %arg0, %c1_i32_8 : i32
    %18 = arith.extui %17 : i1 to i32
    %c0_i32_9 = arith.constant 0 : i32
    %19 = arith.cmpi ne, %18, %c0_i32_9 : i32
    scf.if %19 {
      %c0 = arith.constant 0 : index
      %c0_12 = arith.constant 0 : index
      %24 = vector.load %arg3[%c0, %c0_12] : memref<64x1280xf32, #tpu.memory_space<vmem>>, vector<64x1280xf32>
      %cst = arith.constant 5.000000e-01 : f32
      %25 = vector.broadcast %cst : f32 to vector<64x1280xf32>
      %26 = arith.mulf %25, %24 : vector<64x1280xf32>
      %27 = math.tanh %26 : vector<64x1280xf32>
      %cst_13 = arith.constant 5.000000e-01 : f32
      %28 = vector.broadcast %cst_13 : f32 to vector<64x1280xf32>
      %29 = arith.mulf %28, %27 : vector<64x1280xf32>
      %cst_14 = arith.constant 5.000000e-01 : f32
      %30 = vector.broadcast %cst_14 : f32 to vector<64x1280xf32>
      %31 = arith.addf %29, %30 : vector<64x1280xf32>
      %c0_15 = arith.constant 0 : index
      %c0_16 = arith.constant 0 : index
      %32 = vector.load %arg4[%c0_15, %c0_16] : memref<64x1280xf32, #tpu.memory_space<vmem>>, vector<64x1280xf32>
      %cst_17 = arith.constant 1.000000e+00 : f32
      %33 = vector.broadcast %cst_17 : f32 to vector<64x1280xf32>
      %34 = arith.subf %33, %31 : vector<64x1280xf32>
      %cst_18 = arith.constant 5.000000e-02 : f32
      %35 = vector.broadcast %cst_18 : f32 to vector<64x1280xf32>
      %36 = arith.addf %34, %35 : vector<64x1280xf32>
      %cst_19 = arith.constant 1.000000e+00 : f32
      %37 = vector.broadcast %cst_19 : f32 to vector<64x1280xf32>
      %38 = arith.minimumf %36, %37 : vector<64x1280xf32>
      %cst_20 = arith.constant 1.000000e+00 : f32
      %39 = vector.broadcast %cst_20 : f32 to vector<64x1280xf32>
      %40 = arith.subf %39, %32 : vector<64x1280xf32>
      %c6 = arith.constant 6 : index
      %41 = memref.load %arg6[%c6] : memref<8xf32, #tpu.memory_space<smem>>
      %cst_21 = arith.constant 9.99999993E-9 : f32
      %42 = vector.broadcast %cst_21 : f32 to vector<64x1280xf32>
      %43 = arith.maximumf %31, %42 : vector<64x1280xf32>
      %44 = math.log %43 : vector<64x1280xf32>
      %45 = arith.mulf %32, %44 : vector<64x1280xf32>
      %cst_22 = arith.constant 9.99999993E-9 : f32
      %46 = vector.broadcast %cst_22 : f32 to vector<64x1280xf32>
      %47 = arith.maximumf %38, %46 : vector<64x1280xf32>
      %48 = math.log %47 : vector<64x1280xf32>
      %49 = arith.mulf %40, %48 : vector<64x1280xf32>
      %50 = arith.addf %45, %49 : vector<64x1280xf32>
      %51 = arith.mulf %31, %32 : vector<64x1280xf32>
      %52 = arith.mulf %38, %40 : vector<64x1280xf32>
      %53 = arith.addf %51, %52 : vector<64x1280xf32>
      %cst_23 = arith.constant 1.000000e+00 : f32
      %54 = vector.broadcast %cst_23 : f32 to vector<64x1280xf32>
      %55 = arith.subf %54, %53 : vector<64x1280xf32>
      %cst_24 = arith.constant 1.000000e+00 : f32
      %56 = vector.broadcast %cst_24 : f32 to vector<64x1280xf32>
      %57 = arith.mulf %56, %32 : vector<64x1280xf32>
      %58 = vector.broadcast %41 : f32 to vector<64x1280xf32>
      %59 = arith.mulf %58, %40 : vector<64x1280xf32>
      %60 = arith.addf %57, %59 : vector<64x1280xf32>
      %cst_25 = arith.constant 0.000000e+00 : f32
      %61 = vector.broadcast %cst_25 : f32 to vector<64x1280xf32>
      %62 = arith.cmpf ogt, %55, %61 : vector<64x1280xf32>
      %cst_26 = arith.constant 1.000000e-30 : f32
      %63 = vector.broadcast %cst_26 : f32 to vector<64x1280xf32>
      %64 = arith.maximumf %55, %63 : vector<64x1280xf32>
      %65 = math.log %64 : vector<64x1280xf32>
      %66 = arith.mulf %60, %65 : vector<64x1280xf32>
      %67 = math.exp %66 : vector<64x1280xf32>
      %cst_27 = arith.constant 0.000000e+00 : f32
      %68 = vector.broadcast %cst_27 : f32 to vector<64x1280xf32>
      %69 = arith.select %62, %67, %68 : vector<64x1280xi1>, vector<64x1280xf32>
      %c5 = arith.constant 5 : index
      %70 = memref.load %arg6[%c5] : memref<8xf32, #tpu.memory_space<smem>>
      %71 = arith.mulf %50, %69 : vector<64x1280xf32>
      %72 = vector.shape_cast %71 : vector<64x1280xf32> to vector<1x64x1280xf32>
      %cst_28 = arith.constant dense<0.000000e+00> : vector<1xf32>
      %73 = vector.multi_reduction <add>, %72, %cst_28 [1, 2] : vector<1x64x1280xf32> to vector<1xf32>
      %74 = vector.shape_cast %73 : vector<1xf32> to vector<1x1x1xf32>
      %75 = vector.extract %74[0, 0, 0] : f32 from vector<1x1x1xf32>
      %76 = arith.addf %70, %75 : f32
      %c5_29 = arith.constant 5 : index
      %77 = memref.load %arg6[%c5_29] : memref<8xf32, #tpu.memory_space<smem>>
      memref.store %76, %arg6[%c5_29] : memref<8xf32, #tpu.memory_space<smem>>
    } else {
    }
    %c1_i32_10 = arith.constant 1 : i32
    %20 = arith.cmpi eq, %arg0, %c1_i32_10 : i32
    %21 = arith.andi %20, %5 : i1
    %22 = arith.extui %21 : i1 to i32
    %c0_i32_11 = arith.constant 0 : i32
    %23 = arith.cmpi ne, %22, %c0_i32_11 : i32
    scf.if %23 {
      %c5 = arith.constant 5 : index
      %24 = memref.load %arg6[%c5] : memref<8xf32, #tpu.memory_space<smem>>
      %cst = arith.constant 0.000000e+00 : f32
      %25 = arith.subf %cst, %24 : f32
      %c4 = arith.constant 4 : index
      %26 = memref.load %arg6[%c4] : memref<8xf32, #tpu.memory_space<smem>>
      %27 = arith.addf %25, %26 : f32
      %c0 = arith.constant 0 : index
      %28 = memref.load %arg5[%c0] : memref<2xf32, #tpu.memory_space<smem>>
      memref.store %27, %arg5[%c0] : memref<2xf32, #tpu.memory_space<smem>>
      %c6 = arith.constant 6 : index
      %29 = memref.load %arg6[%c6] : memref<8xf32, #tpu.memory_space<smem>>
      %c1 = arith.constant 1 : index
      %30 = memref.load %arg5[%c1] : memref<2xf32, #tpu.memory_space<smem>>
      memref.store %29, %arg5[%c1] : memref<2xf32, #tpu.memory_space<smem>>
    } else {
    }
    return
  }
  func.func @transform_0(%arg0: i32, %arg1: i32, %arg2: i32) -> (i32, i32) {
    %c0_i32 = arith.constant 0 : i32
    return %arg1, %arg2 : i32, i32
  }
  func.func @transform_1(%arg0: i32, %arg1: i32, %arg2: i32) -> (i32, i32) {
    %c0_i32 = arith.constant 0 : i32
    return %arg1, %arg2 : i32, i32
  }
  func.func @transform_2(%arg0: i32, %arg1: i32, %arg2: i32) -> i32 {
    %c0_i32 = arith.constant 0 : i32
    %c0_i32_0 = arith.constant 0 : i32
    return %c0_i32 : i32
  }
}

</mosaic_0001>

<llo_original>
// kernel: asymmetric_loss_adaptive.1
$region0: #{asymmetric_loss_adaptive.1}
  #allocation0 [shape = 'u32[]', space=smem, size = 0x4, offset = 0x4, fixed_abs, tag = 'smem constant byte address 0x4 - core index']
  #allocation1 [shape = 'u32[144,128]{1,0:T(1,128)}', space=vmem, size = 0x12000, scoped, tag = 'internal scratch']
  #allocation2 [shape = 'f32[8]{0:T(128)}', space=smem, size = 0x200, scoped, tag = 'scratch operand']
  %s0 = inlined_call_operand.hbm [shape: f32[64,1280], index: 0, kind: input, shape index: {}]
  %s1 = inlined_call_operand.hbm [shape: f32[64,1280], index: 1, kind: input, shape index: {}]
  %s2 = inlined_call_operand.vmem [shape: f32[2], index: 2, kind: output, shape index: {}]
  %s3 = sld [smem:[#allocation0]]
  $region69: #{asymmetric_loss_adaptive.1} parent=0
    _
  %s5 = ssub.s32 1, %s3
  %s6 = scalar_select 0, %s5, %s3
  $region1: #{asymmetric_loss_adaptive.1} parent=0
    #allocation3 [shape = 'u8[327680]{0}', space=vmem, size = 0x50000, scoped, tag = 'input window, operand 0, single buffered']
    #allocation4 [shape = 's32[2]{0}', space=sflag, size = 0x8, scoped, tag = 'scoped memory for asymmetric_loss_adaptive.1']
    #allocation5 [shape = 's32[2]{0}', space=sflag, size = 0x8, scoped, tag = 'scoped memory for asymmetric_loss_adaptive.1']
    #allocation6 [shape = 'u8[327680]{0}', space=vmem, size = 0x50000, scoped, tag = 'input window, operand 1, single buffered']
    #allocation7 [shape = 's32[1]{0}', space=sflag, size = 0x4, scoped, tag = 'scoped memory for asymmetric_loss_adaptive.1']
    #allocation8 [shape = 'u8[512]{0}', space=smem, size = 0x200, scoped, tag = 'output window, operand 0, single buffered']
    %7 = vsyncpa [#allocation4], 0
    %8 = vsyncpa [#allocation7], 0
    %9 = vsyncpa [#allocation5], 0
    loop: start=0, step=1, limit=4
    $region2: #{asymmetric_loss_adaptive.1} parent=1 // loop_pre_header
      _
    $region3: #{asymmetric_loss_adaptive.1} parent=1 // loop_header
      %s11 = sphi 0, %s15
      %p12 = scmp.ge.s32.totalorder %s11, 4
      %s18 = sphi 0, %s37
      %s19 = sphi 0, %s33
      %s20 = sphi 0, %s29
      %s21 = sphi 0, %s18
      %s22 = sphi 0, %s19
      %s23 = sphi 0, %s20
      %s24 = sphi 0, %s21
      %s25 = sphi 0, %s22
      %s26 = sphi 0, %s23
      %s42 = sphi 0, %s44
      %s45 = sphi 0, %s42
      %s46 = sphi 0, %s45
      %s62 = sphi 0, %s46
      %s70 = sphi 0, %s72
      %s73 = sphi 0, %s70
      %s74 = sphi 0, %s73
      %s90 = sphi 0, %s74
      %s94 = sphi 0, %s94
      %s96 = sphi 0, %s94
      %s97 = sphi 0, %s96
      %s111 = sphi 0, %s97
    $region4: #{asymmetric_loss_adaptive.1} parent=1 // loop_header_branch
      %14 = sbr.rel (%p12) target = $region8
    $region5: #{asymmetric_loss_adaptive.1} parent=1 // loop_body
      %s16 = ssub.s32 %s11, 1
      %s17 = ssub.s32 %s11, 2
      %s27 = sadd.s32 1, %s20
      %p28 = scmp.ge.s32.totalorder %s27, 1
      %s29 = scalar_select %p28, 0, %s27
      %s30 = sadd.s32 1, %s19
      %s31 = scalar_select %p28, %s30, %s19
      %p32 = scmp.ge.s32.totalorder %s31, 1
      %s33 = scalar_select %p32, 0, %s31
      %s34 = sadd.s32 1, %s18
      %s35 = scalar_select %p32, %s34, %s18
      %p36 = scmp.ge.s32.totalorder %s35, 2
      %s37 = scalar_select %p36, 0, %s35
      %s38 = ssub.s32 %s19, %s33
      %s39 = ssub.s32 %s20, %s29
      %s40 = sor.u32 %s38, %s39
      %p41 = scmp.eq.s32.totalorder %s40, 0
      %s43 = sadd.s32 %s42, 1
      %s44 = scalar_select %p41, %s42, %s43
      %p47 = pneg %p41
      %p48 = scmp.eq.s32.totalorder %s11, 1
      %p49 = por %p47, %p48
      %p50 = scmp.ne.s32.totalorder %s42, %s45
      %p51 = scmp.eq.s32.totalorder %s11, 0
      %p52 = por %p50, %p51
      %p53 = scmp.ne.s32.totalorder %s42, %s45
      %p54 = scmp.eq.s32.totalorder %s16, 1
      %p55 = por %p53, %p54
      %p56 = scmp.ne.s32.totalorder %s45, %s46
      %p57 = scmp.eq.s32.totalorder %s16, 0
      %p58 = por %p56, %p57
      %p59 = scmp.ne.s32.totalorder %s45, %s46
      %p60 = scmp.eq.s32.totalorder %s17, 1
      %p61 = por %p59, %p60
      %p63 = scmp.ne.s32.totalorder %s46, %s62
      %p64 = scmp.eq.s32.totalorder %s17, 0
      %p65 = por %p63, %p64
      %s66 = ssub.s32 %s19, %s33
      %s67 = ssub.s32 %s20, %s29
      %s68 = sor.u32 %s66, %s67
      %p69 = scmp.eq.s32.totalorder %s68, 0
      %s71 = sadd.s32 %s70, 1
      %s72 = scalar_select %p69, %s70, %s71
      %p75 = pneg %p69
      %p76 = scmp.eq.s32.totalorder %s11, 1
      %p77 = por %p75, %p76
      %p78 = scmp.ne.s32.totalorder %s70, %s73
      %p79 = scmp.eq.s32.totalorder %s11, 0
      %p80 = por %p78, %p79
      %p81 = scmp.ne.s32.totalorder %s70, %s73
      %p82 = scmp.eq.s32.totalorder %s16, 1
      %p83 = por %p81, %p82
      %p84 = scmp.ne.s32.totalorder %s73, %s74
      %p85 = scmp.eq.s32.totalorder %s16, 0
      %p86 = por %p84, %p85
      %p87 = scmp.ne.s32.totalorder %s73, %s74
      %p88 = scmp.eq.s32.totalorder %s17, 1
      %p89 = por %p87, %p88
      %p91 = scmp.ne.s32.totalorder %s74, %s90
      %p92 = scmp.eq.s32.totalorder %s17, 0
      %p93 = por %p91, %p92
      %s95 = sadd.s32 %s94, 1
      %p98 = scmp.eq.s32.totalorder %s11, 1
      %p99 = scmp.ne.s32.totalorder %s94, %s96
      %p100 = scmp.eq.s32.totalorder %s11, 0
      %p101 = por %p99, %p100
      %p102 = scmp.ne.s32.totalorder %s94, %s96
      %p103 = scmp.eq.s32.totalorder %s16, 1
      %p104 = por %p102, %p103
      %p105 = scmp.ne.s32.totalorder %s96, %s97
      %p106 = scmp.eq.s32.totalorder %s16, 0
      %p107 = por %p105, %p106
      %p108 = scmp.ne.s32.totalorder %s96, %s97
      %p109 = scmp.eq.s32.totalorder %s17, 1
      %p110 = por %p108, %p109
      %p112 = scmp.ne.s32.totalorder %s97, %s111
      %p113 = scmp.eq.s32.totalorder %s17, 0
      %p114 = por %p112, %p113
      %p115 = scmp.le.s32.totalorder 1, %s11
      %p116 = scmp.lt.s32.totalorder %s11, 3
      %p117 = pnand %p115, %p116
      %p118 = pneg %p117
      // Predicated region
      $region9: #{asymmetric_loss_adaptive.1} parent=5 // pred_check
        _
      $region10: #{asymmetric_loss_adaptive.1} parent=5 // pred_check_branch
        %120 = sbr.rel (%p117) target = $region12
      $region11: #{asymmetric_loss_adaptive.1} parent=5 // pred_region
        %s121 = ssub.s32 %s11, 1
        // Predicated region
        $region13: #{asymmetric_loss_adaptive.1} parent=11 // pred_check
          %p122 = pneg %p58
        $region14: #{asymmetric_loss_adaptive.1} parent=11 // pred_check_branch
          %124 = sbr.rel (%p122) target = $region16
        $region15: #{asymmetric_loss_adaptive.1} parent=11 // pred_region
          %s125 = smul.u32 8, %s22
          %s126 = smul.u32 10, %s23
          %s128 = ssub.s32 10240, 10240
          %129 = vsyncadd [#allocation4], %s128
          %s130 = smul.addr %s125, 10
          %s131 = sadd.s32 %s126, %s130
          %s132 = smul.addr %s131, 128
          %s133 = scalar_lea.hbm %s0, %s132
          %s134 = sshll.u32 [#allocation3], 4
          %s135 = int_to_ptr.vmem [resolvable:$true] %s134
          %140 = dma.hbm_to_vmem [thread:$0]  %s133, 10240, %s135, [#allocation4], 1280, 1280, 80
        $region16: #{asymmetric_loss_adaptive.1} parent=11 // pred_fallthru
          _
        // Predicated region
        $region17: #{asymmetric_loss_adaptive.1} parent=11 // pred_check
          %p141 = pneg %p86
        $region18: #{asymmetric_loss_adaptive.1} parent=11 // pred_check_branch
          %143 = sbr.rel (%p141) target = $region20
        $region19: #{asymmetric_loss_adaptive.1} parent=11 // pred_region
          %s144 = smul.u32 8, %s22
          %s145 = smul.u32 10, %s23
          %s147 = ssub.s32 10240, 10240
          %148 = vsyncadd [#allocation7], %s147
          %s149 = smul.addr %s144, 10
          %s150 = sadd.s32 %s145, %s149
          %s151 = smul.addr %s150, 128
          %s152 = scalar_lea.hbm %s1, %s151
          %s153 = sshll.u32 [#allocation6], 4
          %s154 = int_to_ptr.vmem [resolvable:$true] %s153
          %159 = dma.hbm_to_vmem [thread:$0]  %s152, 10240, %s154, [#allocation7], 1280, 1280, 80
        $region20: #{asymmetric_loss_adaptive.1} parent=11 // pred_fallthru
          _
      $region12: #{asymmetric_loss_adaptive.1} parent=5 // pred_fallthru
        _
      %p160 = scmp.lt.s32.totalorder %s11, 2
      // Predicated region
      $region21: #{asymmetric_loss_adaptive.1} parent=5 // pred_check
        %p161 = pneg %p160
      $region22: #{asymmetric_loss_adaptive.1} parent=5 // pred_check_branch
        %163 = sbr.rel (%p161) target = $region24
      $region23: #{asymmetric_loss_adaptive.1} parent=5 // pred_region
        _
      $region24: #{asymmetric_loss_adaptive.1} parent=5 // pred_fallthru
        _
      %p164 = scmp.le.s32.totalorder 1, %s11
      %p165 = scmp.lt.s32.totalorder %s11, 3
      %p166 = pnand %p164, %p165
      %p167 = pneg %p166
      // Predicated region
      $region25: #{asymmetric_loss_adaptive.1} parent=5 // pred_check
        _
      $region26: #{asymmetric_loss_adaptive.1} parent=5 // pred_check_branch
        %169 = sbr.rel (%p166) target = $region28
      $region27: #{asymmetric_loss_adaptive.1} parent=5 // pred_region
        %s170 = ssub.s32 %s11, 1
        // Predicated region
        $region29: #{asymmetric_loss_adaptive.1} parent=27 // pred_check
          %p171 = pneg %p58
        $region30: #{asymmetric_loss_adaptive.1} parent=27 // pred_check_branch
          %173 = sbr.rel (%p171) target = $region32
        $region31: #{asymmetric_loss_adaptive.1} parent=27 // pred_region
          %174 = dma.done [#allocation4], 10240
        $region32: #{asymmetric_loss_adaptive.1} parent=27 // pred_fallthru
          _
        // Predicated region
        $region33: #{asymmetric_loss_adaptive.1} parent=27 // pred_check
          %p175 = pneg %p86
        $region34: #{asymmetric_loss_adaptive.1} parent=27 // pred_check_branch
          %177 = sbr.rel (%p175) target = $region36
        $region35: #{asymmetric_loss_adaptive.1} parent=27 // pred_region
          %178 = dma.done [#allocation7], 10240
        $region36: #{asymmetric_loss_adaptive.1} parent=27 // pred_fallthru
          _
        %p179 = pneg %p58
        %p180 = pneg %p55
        %p181 = pneg %p86
        %p182 = pneg %p83
        %p183 = pneg %p107
        %p184 = pneg %p104
        %s185 = smul.u32 8, %s22
        %s186 = smul.u32 10, %s23
        %s187 = smul.u32 8, %s22
        %s188 = smul.u32 10, %s23
        %p189 = scmp.eq.s32.totalorder %s22, 0
        %p190 = scmp.eq.s32.totalorder %s23, 0
        %p191 = pnand %p189, %p190
        %p192 = pneg %p191
        %p193 = scmp.eq.s32.totalorder %s21, 0
        %p194 = pnand %p193, %p192
        %p195 = pneg %p194
        // Predicated region
        $region37: #{asymmetric_loss_adaptive.1} parent=27 // pred_check
          _
        $region38: #{asymmetric_loss_adaptive.1} parent=27 // pred_check_branch
          %197 = sbr.rel (%p194) target = $region40
        $region39: #{asymmetric_loss_adaptive.1} parent=27 // pred_region
          %s198 = scalar_lea.smem [#allocation2], 0
          %199 = sst [smem:[%s198]] 0.0
          %s200 = scalar_lea.smem [#allocation2], 1
          %201 = sst [smem:[%s200]] 0.0
          %s202 = scalar_lea.smem [#allocation2], 2
          %203 = sst [smem:[%s202]] 0.0
          %s204 = scalar_lea.smem [#allocation2], 3
          %205 = sst [smem:[%s204]] 0.0
          %s206 = scalar_lea.smem [#allocation2], 4
          %207 = sst [smem:[%s206]] 0.0
          %s208 = scalar_lea.smem [#allocation2], 5
          %209 = sst [smem:[%s208]] 0.0
          %s210 = scalar_lea.smem [#allocation2], 6
          %211 = sst [smem:[%s210]] 0.0
        $region40: #{asymmetric_loss_adaptive.1} parent=27 // pred_fallthru
          _
        // Predicated region
        $region41: #{asymmetric_loss_adaptive.1} parent=27 // pred_check
          %p212 = pneg %p193
        $region42: #{asymmetric_loss_adaptive.1} parent=27 // pred_check_branch
          %214 = sbr.rel (%p212) target = $region44
        $region43: #{asymmetric_loss_adaptive.1} parent=27 // pred_region
          %v215 = vld [vmem:[#allocation3] sm:$0xff]
          %v216 = vld [vmem:[#allocation3 + $0x8] sm:$0xff]
          %v217 = vld [vmem:[#allocation3 + $0x10] sm:$0xff]
          %v218 = vld [vmem:[#allocation3 + $0x18] sm:$0xff]
          %v219 = vld [vmem:[#allocation3 + $0x20] sm:$0xff]
          %v220 = vld [vmem:[#allocation3 + $0x28] sm:$0xff]
          %v221 = vld [vmem:[#allocation3 + $0x30] sm:$0xff]
          %v222 = vld [vmem:[#allocation3 + $0x38] sm:$0xff]
          %v223 = vld [vmem:[#allocation3 + $0x40] sm:$0xff]
          %v224 = vld [vmem:[#allocation3 + $0x48] sm:$0xff]
          %v225 = vld [vmem:[#allocation3 + $0x50] sm:$0xff]
          %v226 = vld [vmem:[#allocation3 + $0x58] sm:$0xff]
          %v227 = vld [vmem:[#allocation3 + $0x60] sm:$0xff]
          %v228 = vld [vmem:[#allocation3 + $0x68] sm:$0xff]
          %v229 = vld [vmem:[#allocation3 + $0x70] sm:$0xff]
          %v230 = vld [vmem:[#allocation3 + $0x78] sm:$0xff]
          %v231 = vld [vmem:[#allocation3 + $0x80] sm:$0xff]
          %v232 = vld [vmem:[#allocation3 + $0x88] sm:$0xff]
          %v233 = vld [vmem:[#allocation3 + $0x90] sm:$0xff]
          %v234 = vld [vmem:[#allocation3 + $0x98] sm:$0xff]
          %v235 = vld [vmem:[#allocation3 + $0xa0] sm:$0xff]
          %v236 = vld [vmem:[#allocation3 + $0xa8] sm:$0xff]
          %v237 = vld [vmem:[#allocation3 + $0xb0] sm:$0xff]
          %v238 = vld [vmem:[#allocation3 + $0xb8] sm:$0xff]
          %v239 = vld [vmem:[#allocation3 + $0xc0] sm:$0xff]
          %v240 = vld [vmem:[#allocation3 + $0xc8] sm:$0xff]
          %v241 = vld [vmem:[#allocation3 + $0xd0] sm:$0xff]
          %v242 = vld [vmem:[#allocation3 + $0xd8] sm:$0xff]
          %v243 = vld [vmem:[#allocation3 + $0xe0] sm:$0xff]
          %v244 = vld [vmem:[#allocation3 + $0xe8] sm:$0xff]
          %v245 = vld [vmem:[#allocation3 + $0xf0] sm:$0xff]
          %v246 = vld [vmem:[#allocation3 + $0xf8] sm:$0xff]
          %v247 = vld [vmem:[#allocation3 + $0x100] sm:$0xff]
          %v248 = vld [vmem:[#allocation3 + $0x108] sm:$0xff]
          %v249 = vld [vmem:[#allocation3 + $0x110] sm:$0xff]
          %v250 = vld [vmem:[#allocation3 + $0x118] sm:$0xff]
          %v251 = vld [vmem:[#allocation3 + $0x120] sm:$0xff]
          %v252 = vld [vmem:[#allocation3 + $0x128] sm:$0xff]
          %v253 = vld [vmem:[#allocation3 + $0x130] sm:$0xff]
          %v254 = vld [vmem:[#allocation3 + $0x138] sm:$0xff]
          %v255 = vld [vmem:[#allocation3 + $0x140] sm:$0xff]
          %v256 = vld [vmem:[#allocation3 + $0x148] sm:$0xff]
          %v257 = vld [vmem:[#allocation3 + $0x150] sm:$0xff]
          %v258 = vld [vmem:[#allocation3 + $0x158] sm:$0xff]
          %v259 = vld [vmem:[#allocation3 + $0x160] sm:$0xff]
          %v260 = vld [vmem:[#allocation3 + $0x168] sm:$0xff]
          %v261 = vld [vmem:[#allocation3 + $0x170] sm:$0xff]
          %v262 = vld [vmem:[#allocation3 + $0x178] sm:$0xff]
          %v263 = vld [vmem:[#allocation3 + $0x180] sm:$0xff]
          %v264 = vld [vmem:[#allocation3 + $0x188] sm:$0xff]
          %v265 = vld [vmem:[#allocation3 + $0x190] sm:$0xff]
          %v266 = vld [vmem:[#allocation3 + $0x198] sm:$0xff]
          %v267 = vld [vmem:[#allocation3 + $0x1a0] sm:$0xff]
          %v268 = vld [vmem:[#allocation3 + $0x1a8] sm:$0xff]
          %v269 = vld [vmem:[#allocation3 + $0x1b0] sm:$0xff]
          %v270 = vld [vmem:[#allocation3 + $0x1b8] sm:$0xff]
          %v271 = vld [vmem:[#allocation3 + $0x1c0] sm:$0xff]
          %v272 = vld [vmem:[#allocation3 + $0x1c8] sm:$0xff]
          %v273 = vld [vmem:[#allocation3 + $0x1d0] sm:$0xff]
          %v274 = vld [vmem:[#allocation3 + $0x1d8] sm:$0xff]
          %v275 = vld [vmem:[#allocation3 + $0x1e0] sm:$0xff]
          %v276 = vld [vmem:[#allocation3 + $0x1e8] sm:$0xff]
          %v277 = vld [vmem:[#allocation3 + $0x1f0] sm:$0xff]
          %v278 = vld [vmem:[#allocation3 + $0x1f8] sm:$0xff]
          %v279 = vld [vmem:[#allocation3 + $0x200] sm:$0xff]
          %v280 = vld [vmem:[#allocation3 + $0x208] sm:$0xff]
          %v281 = vld [vmem:[#allocation3 + $0x210] sm:$0xff]
          %v282 = vld [vmem:[#allocation3 + $0x218] sm:$0xff]
          %v283 = vld [vmem:[#allocation3 + $0x220] sm:$0xff]
          %v284 = vld [vmem:[#allocation3 + $0x228] sm:$0xff]
          %v285 = vld [vmem:[#allocation3 + $0x230] sm:$0xff]
          %v286 = vld [vmem:[#allocation3 + $0x238] sm:$0xff]
          %v287 = vld [vmem:[#allocation3 + $0x240] sm:$0xff]
          %v288 = vld [vmem:[#allocation3 + $0x248] sm:$0xff]
          %v289 = vld [vmem:[#allocation3 + $0x250] sm:$0xff]
          %v290 = vld [vmem:[#allocation3 + $0x258] sm:$0xff]
          %v291 = vld [vmem:[#allocation3 + $0x260] sm:$0xff]
          %v292 = vld [vmem:[#allocation3 + $0x268] sm:$0xff]
          %v293 = vld [vmem:[#allocation3 + $0x270] sm:$0xff]
          %v294 = vld [vmem:[#allocation3 + $0x278] sm:$0xff]
          %v295 = vld [vmem:[#allocation6] sm:$0xff]
          %v296 = vld [vmem:[#allocation6 + $0x8] sm:$0xff]
          %v297 = vld [vmem:[#allocation6 + $0x10] sm:$0xff]
          %v298 = vld [vmem:[#allocation6 + $0x18] sm:$0xff]
          %v299 = vld [vmem:[#allocation6 + $0x20] sm:$0xff]
          %v300 = vld [vmem:[#allocation6 + $0x28] sm:$0xff]
          %v301 = vld [vmem:[#allocation6 + $0x30] sm:$0xff]
          %v302 = vld [vmem:[#allocation6 + $0x38] sm:$0xff]
          %v303 = vld [vmem:[#allocation6 + $0x40] sm:$0xff]
          %v304 = vld [vmem:[#allocation6 + $0x48] sm:$0xff]
          %v305 = vld [vmem:[#allocation6 + $0x50] sm:$0xff]
          %v306 = vld [vmem:[#allocation6 + $0x58] sm:$0xff]
          %v307 = vld [vmem:[#allocation6 + $0x60] sm:$0xff]
          %v308 = vld [vmem:[#allocation6 + $0x68] sm:$0xff]
          %v309 = vld [vmem:[#allocation6 + $0x70] sm:$0xff]
          %v310 = vld [vmem:[#allocation6 + $0x78] sm:$0xff]
          %v311 = vld [vmem:[#allocation6 + $0x80] sm:$0xff]
          %v312 = vld [vmem:[#allocation6 + $0x88] sm:$0xff]
          %v313 = vld [vmem:[#allocation6 + $0x90] sm:$0xff]
          %v314 = vld [vmem:[#allocation6 + $0x98] sm:$0xff]
          %v315 = vld [vmem:[#allocation6 + $0xa0] sm:$0xff]
          %v316 = vld [vmem:[#allocation6 + $0xa8] sm:$0xff]
          %v317 = vld [vmem:[#allocation6 + $0xb0] sm:$0xff]
          %v318 = vld [vmem:[#allocation6 + $0xb8] sm:$0xff]
          %v319 = vld [vmem:[#allocation6 + $0xc0] sm:$0xff]
          %v320 = vld [vmem:[#allocation6 + $0xc8] sm:$0xff]
          %v321 = vld [vmem:[#allocation6 + $0xd0] sm:$0xff]
          %v322 = vld [vmem:[#allocation6 + $0xd8] sm:$0xff]
          %v323 = vld [vmem:[#allocation6 + $0xe0] sm:$0xff]
          %v324 = vld [vmem:[#allocation6 + $0xe8] sm:$0xff]
          %v325 = vld [vmem:[#allocation6 + $0xf0] sm:$0xff]
          %v326 = vld [vmem:[#allocation6 + $0xf8] sm:$0xff]
          %v327 = vld [vmem:[#allocation6 + $0x100] sm:$0xff]
          %v328 = vld [vmem:[#allocation6 + $0x108] sm:$0xff]
          %v329 = vld [vmem:[#allocation6 + $0x110] sm:$0xff]
          %v330 = vld [vmem:[#allocation6 + $0x118] sm:$0xff]
          %v331 = vld [vmem:[#allocation6 + $0x120] sm:$0xff]
          %v332 = vld [vmem:[#allocation6 + $0x128] sm:$0xff]
          %v333 = vld [vmem:[#allocation6 + $0x130] sm:$0xff]
          %v334 = vld [vmem:[#allocation6 + $0x138] sm:$0xff]
          %v335 = vld [vmem:[#allocation6 + $0x140] sm:$0xff]
          %v336 = vld [vmem:[#allocation6 + $0x148] sm:$0xff]
          %v337 = vld [vmem:[#allocation6 + $0x150] sm:$0xff]
          %v338 = vld [vmem:[#allocation6 + $0x158] sm:$0xff]
          %v339 = vld [vmem:[#allocation6 + $0x160] sm:$0xff]
          %v340 = vld [vmem:[#allocation6 + $0x168] sm:$0xff]
          %v341 = vld [vmem:[#allocation6 + $0x170] sm:$0xff]
          %v342 = vld [vmem:[#allocation6 + $0x178] sm:$0xff]
          %v343 = vld [vmem:[#allocation6 + $0x180] sm:$0xff]
          %v344 = vld [vmem:[#allocation6 + $0x188] sm:$0xff]
          %v345 = vld [vmem:[#allocation6 + $0x190] sm:$0xff]
          %v346 = vld [vmem:[#allocation6 + $0x198] sm:$0xff]
          %v347 = vld [vmem:[#allocation6 + $0x1a0] sm:$0xff]
          %v348 = vld [vmem:[#allocation6 + $0x1a8] sm:$0xff]
          %v349 = vld [vmem:[#allocation6 + $0x1b0] sm:$0xff]
          %v350 = vld [vmem:[#allocation6 + $0x1b8] sm:$0xff]
          %v351 = vld [vmem:[#allocation6 + $0x1c0] sm:$0xff]
          %v352 = vld [vmem:[#allocation6 + $0x1c8] sm:$0xff]
          %v353 = vld [vmem:[#allocation6 + $0x1d0] sm:$0xff]
          %v354 = vld [vmem:[#allocation6 + $0x1d8] sm:$0xff]
          %v355 = vld [vmem:[#allocation6 + $0x1e0] sm:$0xff]
          %v356 = vld [vmem:[#allocation6 + $0x1e8] sm:$0xff]
          %v357 = vld [vmem:[#allocation6 + $0x1f0] sm:$0xff]
          %v358 = vld [vmem:[#allocation6 + $0x1f8] sm:$0xff]
          %v359 = vld [vmem:[#allocation6 + $0x200] sm:$0xff]
          %v360 = vld [vmem:[#allocation6 + $0x208] sm:$0xff]
          %v361 = vld [vmem:[#allocation6 + $0x210] sm:$0xff]
          %v362 = vld [vmem:[#allocation6 + $0x218] sm:$0xff]
          %v363 = vld [vmem:[#allocation6 + $0x220] sm:$0xff]
          %v364 = vld [vmem:[#allocation6 + $0x228] sm:$0xff]
          %v365 = vld [vmem:[#allocation6 + $0x230] sm:$0xff]
          %v366 = vld [vmem:[#allocation6 + $0x238] sm:$0xff]
          %v367 = vld [vmem:[#allocation6 + $0x240] sm:$0xff]
          %v368 = vld [vmem:[#allocation6 + $0x248] sm:$0xff]
          %v369 = vld [vmem:[#allocation6 + $0x250] sm:$0xff]
          %v370 = vld [vmem:[#allocation6 + $0x258] sm:$0xff]
          %v371 = vld [vmem:[#allocation6 + $0x260] sm:$0xff]
          %v372 = vld [vmem:[#allocation6 + $0x268] sm:$0xff]
          %v373 = vld [vmem:[#allocation6 + $0x270] sm:$0xff]
          %v374 = vld [vmem:[#allocation6 + $0x278] sm:$0xff]
          %v375 = vmul.f32 %v215, 0.5
          %v376 = vmul.f32 %v216, 0.5
          %v377 = vmul.f32 %v217, 0.5
          %v378 = vmul.f32 %v218, 0.5
          %v379 = vmul.f32 %v219, 0.5
          %v380 = vmul.f32 %v220, 0.5
          %v381 = vmul.f32 %v221, 0.5
          %v382 = vmul.f32 %v222, 0.5
          %v383 = vmul.f32 %v223, 0.5
          %v384 = vmul.f32 %v224, 0.5
          %v385 = vmul.f32 %v225, 0.5
          %v386 = vmul.f32 %v226, 0.5
          %v387 = vmul.f32 %v227, 0.5
          %v388 = vmul.f32 %v228, 0.5
          %v389 = vmul.f32 %v229, 0.5
          %v390 = vmul.f32 %v230, 0.5
          %v391 = vmul.f32 %v231, 0.5
          %v392 = vmul.f32 %v232, 0.5
          %v393 = vmul.f32 %v233, 0.5
          %v394 = vmul.f32 %v234, 0.5
          %v395 = vmul.f32 %v235, 0.5
          %v396 = vmul.f32 %v236, 0.5
          %v397 = vmul.f32 %v237, 0.5
          %v398 = vmul.f32 %v238, 0.5
          %v399 = vmul.f32 %v239, 0.5
          %v400 = vmul.f32 %v240, 0.5
          %v401 = vmul.f32 %v241, 0.5
          %v402 = vmul.f32 %v242, 0.5
          %v403 = vmul.f32 %v243, 0.5
          %v404 = vmul.f32 %v244, 0.5
          %v405 = vmul.f32 %v245, 0.5
          %v406 = vmul.f32 %v246, 0.5
          %v407 = vmul.f32 %v247, 0.5
          %v408 = vmul.f32 %v248, 0.5
          %v409 = vmul.f32 %v249, 0.5
          %v410 = vmul.f32 %v250, 0.5
          %v411 = vmul.f32 %v251, 0.5
          %v412 = vmul.f32 %v252, 0.5
          %v413 = vmul.f32 %v253, 0.5
          %v414 = vmul.f32 %v254, 0.5
          %v415 = vmul.f32 %v255, 0.5
          %v416 = vmul.f32 %v256, 0.5
          %v417 = vmul.f32 %v257, 0.5
          %v418 = vmul.f32 %v258, 0.5
          %v419 = vmul.f32 %v259, 0.5
          %v420 = vmul.f32 %v260, 0.5
          %v421 = vmul.f32 %v261, 0.5
          %v422 = vmul.f32 %v262, 0.5
          %v423 = vmul.f32 %v263, 0.5
          %v424 = vmul.f32 %v264, 0.5
          %v425 = vmul.f32 %v265, 0.5
          %v426 = vmul.f32 %v266, 0.5
          %v427 = vmul.f32 %v267, 0.5
          %v428 = vmul.f32 %v268, 0.5
          %v429 = vmul.f32 %v269, 0.5
          %v430 = vmul.f32 %v270, 0.5
          %v431 = vmul.f32 %v271, 0.5
          %v432 = vmul.f32 %v272, 0.5
          %v433 = vmul.f32 %v273, 0.5
          %v434 = vmul.f32 %v274, 0.5
          %v435 = vmul.f32 %v275, 0.5
          %v436 = vmul.f32 %v276, 0.5
          %v437 = vmul.f32 %v277, 0.5
          %v438 = vmul.f32 %v278, 0.5
          %v439 = vmul.f32 %v279, 0.5
          %v440 = vmul.f32 %v280, 0.5
          %v441 = vmul.f32 %v281, 0.5
          %v442 = vmul.f32 %v282, 0.5
          %v443 = vmul.f32 %v283, 0.5
          %v444 = vmul.f32 %v284, 0.5
          %v445 = vmul.f32 %v285, 0.5
          %v446 = vmul.f32 %v286, 0.5
          %v447 = vmul.f32 %v287, 0.5
          %v448 = vmul.f32 %v288, 0.5
          %v449 = vmul.f32 %v289, 0.5
          %v450 = vmul.f32 %v290, 0.5
          %v451 = vmul.f32 %v291, 0.5
          %v452 = vmul.f32 %v292, 0.5
          %v453 = vmul.f32 %v293, 0.5
          %v454 = vmul.f32 %v294, 0.5
          %v455 = vtanh.pop %v375
          %v456 = vtanh.pop %v376
          %v457 = vtanh.pop %v377
          %v458 = vtanh.pop %v378
          %v459 = vtanh.pop %v379
          %v460 = vtanh.pop %v380
          %v461 = vtanh.pop %v381
          %v462 = vtanh.pop %v382
          %v463 = vtanh.pop %v383
          %v464 = vtanh.pop %v384
          %v465 = vtanh.pop %v385
          %v466 = vtanh.pop %v386
          %v467 = vtanh.pop %v387
          %v468 = vtanh.pop %v388
          %v469 = vtanh.pop %v389
          %v470 = vtanh.pop %v390
          %v471 = vtanh.pop %v391
          %v472 = vtanh.pop %v392
          %v473 = vtanh.pop %v393
          %v474 = vtanh.pop %v394
          %v475 = vtanh.pop %v395
          %v476 = vtanh.pop %v396
          %v477 = vtanh.pop %v397
          %v478 = vtanh.pop %v398
          %v479 = vtanh.pop %v399
          %v480 = vtanh.pop %v400
          %v481 = vtanh.pop %v401
          %v482 = vtanh.pop %v402
          %v483 = vtanh.pop %v403
          %v484 = vtanh.pop %v404
          %v485 = vtanh.pop %v405
          %v486 = vtanh.pop %v406
          %v487 = vtanh.pop %v407
          %v488 = vtanh.pop %v408
          %v489 = vtanh.pop %v409
          %v490 = vtanh.pop %v410
          %v491 = vtanh.pop %v411
          %v492 = vtanh.pop %v412
          %v493 = vtanh.pop %v413
          %v494 = vtanh.pop %v414
          %v495 = vtanh.pop %v415
          %v496 = vtanh.pop %v416
          %v497 = vtanh.pop %v417
          %v498 = vtanh.pop %v418
          %v499 = vtanh.pop %v419
          %v500 = vtanh.pop %v420
          %v501 = vtanh.pop %v421
          %v502 = vtanh.pop %v422
          %v503 = vtanh.pop %v423
          %v504 = vtanh.pop %v424
          %v505 = vtanh.pop %v425
          %v506 = vtanh.pop %v426
          %v507 = vtanh.pop %v427
          %v508 = vtanh.pop %v428
          %v509 = vtanh.pop %v429
          %v510 = vtanh.pop %v430
          %v511 = vtanh.pop %v431
          %v512 = vtanh.pop %v432
          %v513 = vtanh.pop %v433
          %v514 = vtanh.pop %v434
          %v515 = vtanh.pop %v435
          %v516 = vtanh.pop %v436
          %v517 = vtanh.pop %v437
          %v518 = vtanh.pop %v438
          %v519 = vtanh.pop %v439
          %v520 = vtanh.pop %v440
          %v521 = vtanh.pop %v441
          %v522 = vtanh.pop %v442
          %v523 = vtanh.pop %v443
          %v524 = vtanh.pop %v444
          %v525 = vtanh.pop %v445
          %v526 = vtanh.pop %v446
          %v527 = vtanh.pop %v447
          %v528 = vtanh.pop %v448
          %v529 = vtanh.pop %v449
          %v530 = vtanh.pop %v450
          %v531 = vtanh.pop %v451
          %v532 = vtanh.pop %v452
          %v533 = vtanh.pop %v453
          %v534 = vtanh.pop %v454
          %v535 = vmul.f32 %v455, 0.5
          %v536 = vmul.f32 %v456, 0.5
          %v537 = vmul.f32 %v457, 0.5
          %v538 = vmul.f32 %v458, 0.5
          %v539 = vmul.f32 %v459, 0.5
          %v540 = vmul.f32 %v460, 0.5
          %v541 = vmul.f32 %v461, 0.5
          %v542 = vmul.f32 %v462, 0.5
          %v543 = vmul.f32 %v463, 0.5
          %v544 = vmul.f32 %v464, 0.5
          %v545 = vmul.f32 %v465, 0.5
          %v546 = vmul.f32 %v466, 0.5
          %v547 = vmul.f32 %v467, 0.5
          %v548 = vmul.f32 %v468, 0.5
          %v549 = vmul.f32 %v469, 0.5
          %v550 = vmul.f32 %v470, 0.5
          %v551 = vmul.f32 %v471, 0.5
          %v552 = vmul.f32 %v472, 0.5
          %v553 = vmul.f32 %v473, 0.5
          %v554 = vmul.f32 %v474, 0.5
          %v555 = vmul.f32 %v475, 0.5
          %v556 = vmul.f32 %v476, 0.5
          %v557 = vmul.f32 %v477, 0.5
          %v558 = vmul.f32 %v478, 0.5
          %v559 = vmul.f32 %v479, 0.5
          %v560 = vmul.f32 %v480, 0.5
          %v561 = vmul.f32 %v481, 0.5
          %v562 = vmul.f32 %v482, 0.5
          %v563 = vmul.f32 %v483, 0.5
          %v564 = vmul.f32 %v484, 0.5
          %v565 = vmul.f32 %v485, 0.5
          %v566 = vmul.f32 %v486, 0.5
          %v567 = vmul.f32 %v487, 0.5
          %v568 = vmul.f32 %v488, 0.5
          %v569 = vmul.f32 %v489, 0.5
          %v570 = vmul.f32 %v490, 0.5
          %v571 = vmul.f32 %v491, 0.5
          %v572 = vmul.f32 %v492, 0.5
          %v573 = vmul.f32 %v493, 0.5
          %v574 = vmul.f32 %v494, 0.5
          %v575 = vmul.f32 %v495, 0.5
          %v576 = vmul.f32 %v496, 0.5
          %v577 = vmul.f32 %v497, 0.5
          %v578 = vmul.f32 %v498, 0.5
          %v579 = vmul.f32 %v499, 0.5
          %v580 = vmul.f32 %v500, 0.5
          %v581 = vmul.f32 %v501, 0.5
          %v582 = vmul.f32 %v502, 0.5
          %v583 = vmul.f32 %v503, 0.5
          %v584 = vmul.f32 %v504, 0.5
          %v585 = vmul.f32 %v505, 0.5
          %v586 = vmul.f32 %v506, 0.5
          %v587 = vmul.f32 %v507, 0.5
          %v588 = vmul.f32 %v508, 0.5
          %v589 = vmul.f32 %v509, 0.5
          %v590 = vmul.f32 %v510, 0.5
          %v591 = vmul.f32 %v511, 0.5
          %v592 = vmul.f32 %v512, 0.5
          %v593 = vmul.f32 %v513, 0.5
          %v594 = vmul.f32 %v514, 0.5
          %v595 = vmul.f32 %v515, 0.5
          %v596 = vmul.f32 %v516, 0.5
          %v597 = vmul.f32 %v517, 0.5
          %v598 = vmul.f32 %v518, 0.5
          %v599 = vmul.f32 %v519, 0.5
          %v600 = vmul.f32 %v520, 0.5
          %v601 = vmul.f32 %v521, 0.5
          %v602 = vmul.f32 %v522, 0.5
          %v603 = vmul.f32 %v523, 0.5
          %v604 = vmul.f32 %v524, 0.5
          %v605 = vmul.f32 %v525, 0.5
          %v606 = vmul.f32 %v526, 0.5
          %v607 = vmul.f32 %v527, 0.5
          %v608 = vmul.f32 %v528, 0.5
          %v609 = vmul.f32 %v529, 0.5
          %v610 = vmul.f32 %v530, 0.5
          %v611 = vmul.f32 %v531, 0.5
          %v612 = vmul.f32 %v532, 0.5
          %v613 = vmul.f32 %v533, 0.5
          %v614 = vmul.f32 %v534, 0.5
          %v615 = vadd.f32 %v535, 0.5
          %v616 = vadd.f32 %v536, 0.5
          %v617 = vadd.f32 %v537, 0.5
          %v618 = vadd.f32 %v538, 0.5
          %v619 = vadd.f32 %v539, 0.5
          %v620 = vadd.f32 %v540, 0.5
          %v621 = vadd.f32 %v541, 0.5
          %v622 = vadd.f32 %v542, 0.5
          %v623 = vadd.f32 %v543, 0.5
          %v624 = vadd.f32 %v544, 0.5
          %v625 = vadd.f32 %v545, 0.5
          %v626 = vadd.f32 %v546, 0.5
          %v627 = vadd.f32 %v547, 0.5
          %v628 = vadd.f32 %v548, 0.5
          %v629 = vadd.f32 %v549, 0.5
          %v630 = vadd.f32 %v550, 0.5
          %v631 = vadd.f32 %v551, 0.5
          %v632 = vadd.f32 %v552, 0.5
          %v633 = vadd.f32 %v553, 0.5
          %v634 = vadd.f32 %v554, 0.5
          %v635 = vadd.f32 %v555, 0.5
          %v636 = vadd.f32 %v556, 0.5
          %v637 = vadd.f32 %v557, 0.5
          %v638 = vadd.f32 %v558, 0.5
          %v639 = vadd.f32 %v559, 0.5
          %v640 = vadd.f32 %v560, 0.5
          %v641 = vadd.f32 %v561, 0.5
          %v642 = vadd.f32 %v562, 0.5
          %v643 = vadd.f32 %v563, 0.5
          %v644 = vadd.f32 %v564, 0.5
          %v645 = vadd.f32 %v565, 0.5
          %v646 = vadd.f32 %v566, 0.5
          %v647 = vadd.f32 %v567, 0.5
          %v648 = vadd.f32 %v568, 0.5
          %v649 = vadd.f32 %v569, 0.5
          %v650 = vadd.f32 %v570, 0.5
          %v651 = vadd.f32 %v571, 0.5
          %v652 = vadd.f32 %v572, 0.5
          %v653 = vadd.f32 %v573, 0.5
          %v654 = vadd.f32 %v574, 0.5
          %v655 = vadd.f32 %v575, 0.5
          %v656 = vadd.f32 %v576, 0.5
          %v657 = vadd.f32 %v577, 0.5
          %v658 = vadd.f32 %v578, 0.5
          %v659 = vadd.f32 %v579, 0.5
          %v660 = vadd.f32 %v580, 0.5
          %v661 = vadd.f32 %v581, 0.5
          %v662 = vadd.f32 %v582, 0.5
          %v663 = vadd.f32 %v583, 0.5
          %v664 = vadd.f32 %v584, 0.5
          %v665 = vadd.f32 %v585, 0.5
          %v666 = vadd.f32 %v586, 0.5
          %v667 = vadd.f32 %v587, 0.5
          %v668 = vadd.f32 %v588, 0.5
          %v669 = vadd.f32 %v589, 0.5
          %v670 = vadd.f32 %v590, 0.5
          %v671 = vadd.f32 %v591, 0.5
          %v672 = vadd.f32 %v592, 0.5
          %v673 = vadd.f32 %v593, 0.5
          %v674 = vadd.f32 %v594, 0.5
          %v675 = vadd.f32 %v595, 0.5
          %v676 = vadd.f32 %v596, 0.5
          %v677 = vadd.f32 %v597, 0.5
          %v678 = vadd.f32 %v598, 0.5
          %v679 = vadd.f32 %v599, 0.5
          %v680 = vadd.f32 %v600, 0.5
          %v681 = vadd.f32 %v601, 0.5
          %v682 = vadd.f32 %v602, 0.5
          %v683 = vadd.f32 %v603, 0.5
          %v684 = vadd.f32 %v604, 0.5
          %v685 = vadd.f32 %v605, 0.5
          %v686 = vadd.f32 %v606, 0.5
          %v687 = vadd.f32 %v607, 0.5
          %v688 = vadd.f32 %v608, 0.5
          %v689 = vadd.f32 %v609, 0.5
          %v690 = vadd.f32 %v610, 0.5
          %v691 = vadd.f32 %v611, 0.5
          %v692 = vadd.f32 %v612, 0.5
          %v693 = vadd.f32 %v613, 0.5
          %v694 = vadd.f32 %v614, 0.5
          %v695 = vsub.f32 1.0, %v615
          %v696 = vsub.f32 1.0, %v616
          %v697 = vsub.f32 1.0, %v617
          %v698 = vsub.f32 1.0, %v618
          %v699 = vsub.f32 1.0, %v619
          %v700 = vsub.f32 1.0, %v620
          %v701 = vsub.f32 1.0, %v621
          %v702 = vsub.f32 1.0, %v622
          %v703 = vsub.f32 1.0, %v623
          %v704 = vsub.f32 1.0, %v624
          %v705 = vsub.f32 1.0, %v625
          %v706 = vsub.f32 1.0, %v626
          %v707 = vsub.f32 1.0, %v627
          %v708 = vsub.f32 1.0, %v628
          %v709 = vsub.f32 1.0, %v629
          %v710 = vsub.f32 1.0, %v630
          %v711 = vsub.f32 1.0, %v631
          %v712 = vsub.f32 1.0, %v632
          %v713 = vsub.f32 1.0, %v633
          %v714 = vsub.f32 1.0, %v634
          %v715 = vsub.f32 1.0, %v635
          %v716 = vsub.f32 1.0, %v636
          %v717 = vsub.f32 1.0, %v637
          %v718 = vsub.f32 1.0, %v638
          %v719 = vsub.f32 1.0, %v639
          %v720 = vsub.f32 1.0, %v640
          %v721 = vsub.f32 1.0, %v641
          %v722 = vsub.f32 1.0, %v642
          %v723 = vsub.f32 1.0, %v643
          %v724 = vsub.f32 1.0, %v644
          %v725 = vsub.f32 1.0, %v645
          %v726 = vsub.f32 1.0, %v646
          %v727 = vsub.f32 1.0, %v647
          %v728 = vsub.f32 1.0, %v648
          %v729 = vsub.f32 1.0, %v649
          %v730 = vsub.f32 1.0, %v650
          %v731 = vsub.f32 1.0, %v651
          %v732 = vsub.f32 1.0, %v652
          %v733 = vsub.f32 1.0, %v653
          %v734 = vsub.f32 1.0, %v654
          %v735 = vsub.f32 1.0, %v655
          %v736 = vsub.f32 1.0, %v656
          %v737 = vsub.f32 1.0, %v657
          %v738 = vsub.f32 1.0, %v658
          %v739 = vsub.f32 1.0, %v659
          %v740 = vsub.f32 1.0, %v660
          %v741 = vsub.f32 1.0, %v661
          %v742 = vsub.f32 1.0, %v662
          %v743 = vsub.f32 1.0, %v663
          %v744 = vsub.f32 1.0, %v664
          %v745 = vsub.f32 1.0, %v665
          %v746 = vsub.f32 1.0, %v666
          %v747 = vsub.f32 1.0, %v667
          %v748 = vsub.f32 1.0, %v668
          %v749 = vsub.f32 1.0, %v669
          %v750 = vsub.f32 1.0, %v670
          %v751 = vsub.f32 1.0, %v671
          %v752 = vsub.f32 1.0, %v672
          %v753 = vsub.f32 1.0, %v673
          %v754 = vsub.f32 1.0, %v674
          %v755 = vsub.f32 1.0, %v675
          %v756 = vsub.f32 1.0, %v676
          %v757 = vsub.f32 1.0, %v677
          %v758 = vsub.f32 1.0, %v678
          %v759 = vsub.f32 1.0, %v679
          %v760 = vsub.f32 1.0, %v680
          %v761 = vsub.f32 1.0, %v681
          %v762 = vsub.f32 1.0, %v682
          %v763 = vsub.f32 1.0, %v683
          %v764 = vsub.f32 1.0, %v684
          %v765 = vsub.f32 1.0, %v685
          %v766 = vsub.f32 1.0, %v686
          %v767 = vsub.f32 1.0, %v687
          %v768 = vsub.f32 1.0, %v688
          %v769 = vsub.f32 1.0, %v689
          %v770 = vsub.f32 1.0, %v690
          %v771 = vsub.f32 1.0, %v691
          %v772 = vsub.f32 1.0, %v692
          %v773 = vsub.f32 1.0, %v693
          %v774 = vsub.f32 1.0, %v694
          %v775 = vadd.f32 %v695, 0.05
          %v776 = vadd.f32 %v696, 0.05
          %v777 = vadd.f32 %v697, 0.05
          %v778 = vadd.f32 %v698, 0.05
          %v779 = vadd.f32 %v699, 0.05
          %v780 = vadd.f32 %v700, 0.05
          %v781 = vadd.f32 %v701, 0.05
          %v782 = vadd.f32 %v702, 0.05
          %v783 = vadd.f32 %v703, 0.05
          %v784 = vadd.f32 %v704, 0.05
          %v785 = vadd.f32 %v705, 0.05
          %v786 = vadd.f32 %v706, 0.05
          %v787 = vadd.f32 %v707, 0.05
          %v788 = vadd.f32 %v708, 0.05
          %v789 = vadd.f32 %v709, 0.05
          %v790 = vadd.f32 %v710, 0.05
          %v791 = vadd.f32 %v711, 0.05
          %v792 = vadd.f32 %v712, 0.05
          %v793 = vadd.f32 %v713, 0.05
          %v794 = vadd.f32 %v714, 0.05
          %v795 = vadd.f32 %v715, 0.05
          %v796 = vadd.f32 %v716, 0.05
          %v797 = vadd.f32 %v717, 0.05
          %v798 = vadd.f32 %v718, 0.05
          %v799 = vadd.f32 %v719, 0.05
          %v800 = vadd.f32 %v720, 0.05
          %v801 = vadd.f32 %v721, 0.05
          %v802 = vadd.f32 %v722, 0.05
          %v803 = vadd.f32 %v723, 0.05
          %v804 = vadd.f32 %v724, 0.05
          %v805 = vadd.f32 %v725, 0.05
          %v806 = vadd.f32 %v726, 0.05
          %v807 = vadd.f32 %v727, 0.05
          %v808 = vadd.f32 %v728, 0.05
          %v809 = vadd.f32 %v729, 0.05
          %v810 = vadd.f32 %v730, 0.05
          %v811 = vadd.f32 %v731, 0.05
          %v812 = vadd.f32 %v732, 0.05
          %v813 = vadd.f32 %v733, 0.05
          %v814 = vadd.f32 %v734, 0.05
          %v815 = vadd.f32 %v735, 0.05
          %v816 = vadd.f32 %v736, 0.05
          %v817 = vadd.f32 %v737, 0.05
          %v818 = vadd.f32 %v738, 0.05
          %v819 = vadd.f32 %v739, 0.05
          %v820 = vadd.f32 %v740, 0.05
          %v821 = vadd.f32 %v741, 0.05
          %v822 = vadd.f32 %v742, 0.05
          %v823 = vadd.f32 %v743, 0.05
          %v824 = vadd.f32 %v744, 0.05
          %v825 = vadd.f32 %v745, 0.05
          %v826 = vadd.f32 %v746, 0.05
          %v827 = vadd.f32 %v747, 0.05
          %v828 = vadd.f32 %v748, 0.05
          %v829 = vadd.f32 %v749, 0.05
          %v830 = vadd.f32 %v750, 0.05
          %v831 = vadd.f32 %v751, 0.05
          %v832 = vadd.f32 %v752, 0.05
          %v833 = vadd.f32 %v753, 0.05
          %v834 = vadd.f32 %v754, 0.05
          %v835 = vadd.f32 %v755, 0.05
          %v836 = vadd.f32 %v756, 0.05
          %v837 = vadd.f32 %v757, 0.05
          %v838 = vadd.f32 %v758, 0.05
          %v839 = vadd.f32 %v759, 0.05
          %v840 = vadd.f32 %v760, 0.05
          %v841 = vadd.f32 %v761, 0.05
          %v842 = vadd.f32 %v762, 0.05
          %v843 = vadd.f32 %v763, 0.05
          %v844 = vadd.f32 %v764, 0.05
          %v845 = vadd.f32 %v765, 0.05
          %v846 = vadd.f32 %v766, 0.05
          %v847 = vadd.f32 %v767, 0.05
          %v848 = vadd.f32 %v768, 0.05
          %v849 = vadd.f32 %v769, 0.05
          %v850 = vadd.f32 %v770, 0.05
          %v851 = vadd.f32 %v771, 0.05
          %v852 = vadd.f32 %v772, 0.05
          %v853 = vadd.f32 %v773, 0.05
          %v854 = vadd.f32 %v774, 0.05
          %v855 = vmin.f32 %v775, 1.0
          %v856 = vmin.f32 %v776, 1.0
          %v857 = vmin.f32 %v777, 1.0
          %v858 = vmin.f32 %v778, 1.0
          %v859 = vmin.f32 %v779, 1.0
          %v860 = vmin.f32 %v780, 1.0
          %v861 = vmin.f32 %v781, 1.0
          %v862 = vmin.f32 %v782, 1.0
          %v863 = vmin.f32 %v783, 1.0
          %v864 = vmin.f32 %v784, 1.0
          %v865 = vmin.f32 %v785, 1.0
          %v866 = vmin.f32 %v786, 1.0
          %v867 = vmin.f32 %v787, 1.0
          %v868 = vmin.f32 %v788, 1.0
          %v869 = vmin.f32 %v789, 1.0
          %v870 = vmin.f32 %v790, 1.0
          %v871 = vmin.f32 %v791, 1.0
          %v872 = vmin.f32 %v792, 1.0
          %v873 = vmin.f32 %v793, 1.0
          %v874 = vmin.f32 %v794, 1.0
          %v875 = vmin.f32 %v795, 1.0
          %v876 = vmin.f32 %v796, 1.0
          %v877 = vmin.f32 %v797, 1.0
          %v878 = vmin.f32 %v798, 1.0
          %v879 = vmin.f32 %v799, 1.0
          %v880 = vmin.f32 %v800, 1.0
          %v881 = vmin.f32 %v801, 1.0
          %v882 = vmin.f32 %v802, 1.0
          %v883 = vmin.f32 %v803, 1.0
          %v884 = vmin.f32 %v804, 1.0
          %v885 = vmin.f32 %v805, 1.0
          %v886 = vmin.f32 %v806, 1.0
          %v887 = vmin.f32 %v807, 1.0
          %v888 = vmin.f32 %v808, 1.0
          %v889 = vmin.f32 %v809, 1.0
          %v890 = vmin.f32 %v810, 1.0
          %v891 = vmin.f32 %v811, 1.0
          %v892 = vmin.f32 %v812, 1.0
          %v893 = vmin.f32 %v813, 1.0
          %v894 = vmin.f32 %v814, 1.0
          %v895 = vmin.f32 %v815, 1.0
          %v896 = vmin.f32 %v816, 1.0
          %v897 = vmin.f32 %v817, 1.0
          %v898 = vmin.f32 %v818, 1.0
          %v899 = vmin.f32 %v819, 1.0
          %v900 = vmin.f32 %v820, 1.0
          %v901 = vmin.f32 %v821, 1.0
          %v902 = vmin.f32 %v822, 1.0
          %v903 = vmin.f32 %v823, 1.0
          %v904 = vmin.f32 %v824, 1.0
          %v905 = vmin.f32 %v825, 1.0
          %v906 = vmin.f32 %v826, 1.0
          %v907 = vmin.f32 %v827, 1.0
          %v908 = vmin.f32 %v828, 1.0
          %v909 = vmin.f32 %v829, 1.0
          %v910 = vmin.f32 %v830, 1.0
          %v911 = vmin.f32 %v831, 1.0
          %v912 = vmin.f32 %v832, 1.0
          %v913 = vmin.f32 %v833, 1.0
          %v914 = vmin.f32 %v834, 1.0
          %v915 = vmin.f32 %v835, 1.0
          %v916 = vmin.f32 %v836, 1.0
          %v917 = vmin.f32 %v837, 1.0
          %v918 = vmin.f32 %v838, 1.0
          %v919 = vmin.f32 %v839, 1.0
          %v920 = vmin.f32 %v840, 1.0
          %v921 = vmin.f32 %v841, 1.0
          %v922 = vmin.f32 %v842, 1.0
          %v923 = vmin.f32 %v843, 1.0
          %v924 = vmin.f32 %v844, 1.0
          %v925 = vmin.f32 %v845, 1.0
          %v926 = vmin.f32 %v846, 1.0
          %v927 = vmin.f32 %v847, 1.0
          %v928 = vmin.f32 %v848, 1.0
          %v929 = vmin.f32 %v849, 1.0
          %v930 = vmin.f32 %v850, 1.0
          %v931 = vmin.f32 %v851, 1.0
          %v932 = vmin.f32 %v852, 1.0
          %v933 = vmin.f32 %v853, 1.0
          %v934 = vmin.f32 %v854, 1.0
          %v935 = vsub.f32 1.0, %v295
          %v936 = vsub.f32 1.0, %v296
          %v937 = vsub.f32 1.0, %v297
          %v938 = vsub.f32 1.0, %v298
          %v939 = vsub.f32 1.0, %v299
          %v940 = vsub.f32 1.0, %v300
          %v941 = vsub.f32 1.0, %v301
          %v942 = vsub.f32 1.0, %v302
          %v943 = vsub.f32 1.0, %v303
          %v944 = vsub.f32 1.0, %v304
          %v945 = vsub.f32 1.0, %v305
          %v946 = vsub.f32 1.0, %v306
          %v947 = vsub.f32 1.0, %v307
          %v948 = vsub.f32 1.0, %v308
          %v949 = vsub.f32 1.0, %v309
          %v950 = vsub.f32 1.0, %v310
          %v951 = vsub.f32 1.0, %v311
          %v952 = vsub.f32 1.0, %v312
          %v953 = vsub.f32 1.0, %v313
          %v954 = vsub.f32 1.0, %v314
          %v955 = vsub.f32 1.0, %v315
          %v956 = vsub.f32 1.0, %v316
          %v957 = vsub.f32 1.0, %v317
          %v958 = vsub.f32 1.0, %v318
          %v959 = vsub.f32 1.0, %v319
          %v960 = vsub.f32 1.0, %v320
          %v961 = vsub.f32 1.0, %v321
          %v962 = vsub.f32 1.0, %v322
          %v963 = vsub.f32 1.0, %v323
          %v964 = vsub.f32 1.0, %v324
          %v965 = vsub.f32 1.0, %v325
          %v966 = vsub.f32 1.0, %v326
          %v967 = vsub.f32 1.0, %v327
          %v968 = vsub.f32 1.0, %v328
          %v969 = vsub.f32 1.0, %v329
          %v970 = vsub.f32 1.0, %v330
          %v971 = vsub.f32 1.0, %v331
          %v972 = vsub.f32 1.0, %v332
          %v973 = vsub.f32 1.0, %v333
          %v974 = vsub.f32 1.0, %v334
          %v975 = vsub.f32 1.0, %v335
          %v976 = vsub.f32 1.0, %v336
          %v977 = vsub.f32 1.0, %v337
          %v978 = vsub.f32 1.0, %v338
          %v979 = vsub.f32 1.0, %v339
          %v980 = vsub.f32 1.0, %v340
          %v981 = vsub.f32 1.0, %v341
          %v982 = vsub.f32 1.0, %v342
          %v983 = vsub.f32 1.0, %v343
          %v984 = vsub.f32 1.0, %v344
          %v985 = vsub.f32 1.0, %v345
          %v986 = vsub.f32 1.0, %v346
          %v987 = vsub.f32 1.0, %v347
          %v988 = vsub.f32 1.0, %v348
          %v989 = vsub.f32 1.0, %v349
          %v990 = vsub.f32 1.0, %v350
          %v991 = vsub.f32 1.0, %v351
          %v992 = vsub.f32 1.0, %v352
          %v993 = vsub.f32 1.0, %v353
          %v994 = vsub.f32 1.0, %v354
          %v995 = vsub.f32 1.0, %v355
          %v996 = vsub.f32 1.0, %v356
          %v997 = vsub.f32 1.0, %v357
          %v998 = vsub.f32 1.0, %v358
          %v999 = vsub.f32 1.0, %v359
          %v1000 = vsub.f32 1.0, %v360
          %v1001 = vsub.f32 1.0, %v361
          %v1002 = vsub.f32 1.0, %v362
          %v1003 = vsub.f32 1.0, %v363
          %v1004 = vsub.f32 1.0, %v364
          %v1005 = vsub.f32 1.0, %v365
          %v1006 = vsub.f32 1.0, %v366
          %v1007 = vsub.f32 1.0, %v367
          %v1008 = vsub.f32 1.0, %v368
          %v1009 = vsub.f32 1.0, %v369
          %v1010 = vsub.f32 1.0, %v370
          %v1011 = vsub.f32 1.0, %v371
          %v1012 = vsub.f32 1.0, %v372
          %v1013 = vsub.f32 1.0, %v373
          %v1014 = vsub.f32 1.0, %v374
          %s1015 = sld [smem:[#allocation2]]
          %v1016 = vmul.f32 %v615, %v295
          %v1017 = vmul.f32 %v616, %v296
          %v1018 = vmul.f32 %v617, %v297
          %v1019 = vmul.f32 %v618, %v298
          %v1020 = vmul.f32 %v619, %v299
          %v1021 = vmul.f32 %v620, %v300
          %v1022 = vmul.f32 %v621, %v301
          %v1023 = vmul.f32 %v622, %v302
          %v1024 = vmul.f32 %v623, %v303
          %v1025 = vmul.f32 %v624, %v304
          %v1026 = vmul.f32 %v625, %v305
          %v1027 = vmul.f32 %v626, %v306
          %v1028 = vmul.f32 %v627, %v307
          %v1029 = vmul.f32 %v628, %v308
          %v1030 = vmul.f32 %v629, %v309
          %v1031 = vmul.f32 %v630, %v310
          %v1032 = vmul.f32 %v631, %v311
          %v1033 = vmul.f32 %v632, %v312
          %v1034 = vmul.f32 %v633, %v313
          %v1035 = vmul.f32 %v634, %v314
          %v1036 = vmul.f32 %v635, %v315
          %v1037 = vmul.f32 %v636, %v316
          %v1038 = vmul.f32 %v637, %v317
          %v1039 = vmul.f32 %v638, %v318
          %v1040 = vmul.f32 %v639, %v319
          %v1041 = vmul.f32 %v640, %v320
          %v1042 = vmul.f32 %v641, %v321
          %v1043 = vmul.f32 %v642, %v322
          %v1044 = vmul.f32 %v643, %v323
          %v1045 = vmul.f32 %v644, %v324
          %v1046 = vmul.f32 %v645, %v325
          %v1047 = vmul.f32 %v646, %v326
          %v1048 = vmul.f32 %v647, %v327
          %v1049 = vmul.f32 %v648, %v328
          %v1050 = vmul.f32 %v649, %v329
          %v1051 = vmul.f32 %v650, %v330
          %v1052 = vmul.f32 %v651, %v331
          %v1053 = vmul.f32 %v652, %v332
          %v1054 = vmul.f32 %v653, %v333
          %v1055 = vmul.f32 %v654, %v334
          %v1056 = vmul.f32 %v655, %v335
          %v1057 = vmul.f32 %v656, %v336
          %v1058 = vmul.f32 %v657, %v337
          %v1059 = vmul.f32 %v658, %v338
          %v1060 = vmul.f32 %v659, %v339
          %v1061 = vmul.f32 %v660, %v340
          %v1062 = vmul.f32 %v661, %v341
          %v1063 = vmul.f32 %v662, %v342
          %v1064 = vmul.f32 %v663, %v343
          %v1065 = vmul.f32 %v664, %v344
          %v1066 = vmul.f32 %v665, %v345
          %v1067 = vmul.f32 %v666, %v346
          %v1068 = vmul.f32 %v667, %v347
          %v1069 = vmul.f32 %v668, %v348
          %v1070 = vmul.f32 %v669, %v349
          %v1071 = vmul.f32 %v670, %v350
          %v1072 = vmul.f32 %v671, %v351
          %v1073 = vmul.f32 %v672, %v352
          %v1074 = vmul.f32 %v673, %v353
          %v1075 = vmul.f32 %v674, %v354
          %v1076 = vmul.f32 %v675, %v355
          %v1077 = vmul.f32 %v676, %v356
          %v1078 = vmul.f32 %v677, %v357
          %v1079 = vmul.f32 %v678, %v358
          %v1080 = vmul.f32 %v679, %v359
          %v1081 = vmul.f32 %v680, %v360
          %v1082 = vmul.f32 %v681, %v361
          %v1083 = vmul.f32 %v682, %v362
          %v1084 = vmul.f32 %v683, %v363
          %v1085 = vmul.f32 %v684, %v364
          %v1086 = vmul.f32 %v685, %v365
          %v1087 = vmul.f32 %v686, %v366
          %v1088 = vmul.f32 %v687, %v367
          %v1089 = vmul.f32 %v688, %v368
          %v1090 = vmul.f32 %v689, %v369
          %v1091 = vmul.f32 %v690, %v370
          %v1092 = vmul.f32 %v691, %v371
          %v1093 = vmul.f32 %v692, %v372
          %v1094 = vmul.f32 %v693, %v373
          %v1095 = vmul.f32 %v694, %v374
          %v1096 = vadd.f32 %v1016, %v1017
          %v1097 = vadd.f32 %v1096, %v1018
          %v1098 = vadd.f32 %v1097, %v1019
          %v1099 = vadd.f32 %v1098, %v1020
          %v1100 = vadd.f32 %v1099, %v1021
          %v1101 = vadd.f32 %v1100, %v1022
          %v1102 = vadd.f32 %v1101, %v1023
          %v1103 = vadd.f32 %v1102, %v1024
          %v1104 = vadd.f32 %v1103, %v1025
          %v1105 = vadd.f32 %v1104, %v1026
          %v1106 = vadd.f32 %v1105, %v1027
          %v1107 = vadd.f32 %v1106, %v1028
          %v1108 = vadd.f32 %v1107, %v1029
          %v1109 = vadd.f32 %v1108, %v1030
          %v1110 = vadd.f32 %v1109, %v1031
          %v1111 = vadd.f32 %v1110, %v1032
          %v1112 = vadd.f32 %v1111, %v1033
          %v1113 = vadd.f32 %v1112, %v1034
          %v1114 = vadd.f32 %v1113, %v1035
          %v1115 = vadd.f32 %v1114, %v1036
          %v1116 = vadd.f32 %v1115, %v1037
          %v1117 = vadd.f32 %v1116, %v1038
          %v1118 = vadd.f32 %v1117, %v1039
          %v1119 = vadd.f32 %v1118, %v1040
          %v1120 = vadd.f32 %v1119, %v1041
          %v1121 = vadd.f32 %v1120, %v1042
          %v1122 = vadd.f32 %v1121, %v1043
          %v1123 = vadd.f32 %v1122, %v1044
          %v1124 = vadd.f32 %v1123, %v1045
          %v1125 = vadd.f32 %v1124, %v1046
          %v1126 = vadd.f32 %v1125, %v1047
          %v1127 = vadd.f32 %v1126, %v1048
          %v1128 = vadd.f32 %v1127, %v1049
          %v1129 = vadd.f32 %v1128, %v1050
          %v1130 = vadd.f32 %v1129, %v1051
          %v1131 = vadd.f32 %v1130, %v1052
          %v1132 = vadd.f32 %v1131, %v1053
          %v1133 = vadd.f32 %v1132, %v1054
          %v1134 = vadd.f32 %v1133, %v1055
          %v1135 = vadd.f32 %v1134, %v1056
          %v1136 = vadd.f32 %v1135, %v1057
          %v1137 = vadd.f32 %v1136, %v1058
          %v1138 = vadd.f32 %v1137, %v1059
          %v1139 = vadd.f32 %v1138, %v1060
          %v1140 = vadd.f32 %v1139, %v1061
          %v1141 = vadd.f32 %v1140, %v1062
          %v1142 = vadd.f32 %v1141, %v1063
          %v1143 = vadd.f32 %v1142, %v1064
          %v1144 = vadd.f32 %v1143, %v1065
          %v1145 = vadd.f32 %v1144, %v1066
          %v1146 = vadd.f32 %v1145, %v1067
          %v1147 = vadd.f32 %v1146, %v1068
          %v1148 = vadd.f32 %v1147, %v1069
          %v1149 = vadd.f32 %v1148, %v1070
          %v1150 = vadd.f32 %v1149, %v1071
          %v1151 = vadd.f32 %v1150, %v1072
          %v1152 = vadd.f32 %v1151, %v1073
          %v1153 = vadd.f32 %v1152, %v1074
          %v1154 = vadd.f32 %v1153, %v1075
          %v1155 = vadd.f32 %v1154, %v1076
          %v1156 = vadd.f32 %v1155, %v1077
          %v1157 = vadd.f32 %v1156, %v1078
          %v1158 = vadd.f32 %v1157, %v1079
          %v1159 = vadd.f32 %v1158, %v1080
          %v1160 = vadd.f32 %v1159, %v1081
          %v1161 = vadd.f32 %v1160, %v1082
          %v1162 = vadd.f32 %v1161, %v1083
          %v1163 = vadd.f32 %v1162, %v1084
          %v1164 = vadd.f32 %v1163, %v1085
          %v1165 = vadd.f32 %v1164, %v1086
          %v1166 = vadd.f32 %v1165, %v1087
          %v1167 = vadd.f32 %v1166, %v1088
          %v1168 = vadd.f32 %v1167, %v1089
          %v1169 = vadd.f32 %v1168, %v1090
          %v1170 = vadd.f32 %v1169, %v1091
          %v1171 = vadd.f32 %v1170, %v1092
          %v1172 = vadd.f32 %v1171, %v1093
          %v1173 = vadd.f32 %v1172, %v1094
          %v1174 = vadd.f32 %v1173, %v1095
          %1175 = vadd.xlane.f32.xlu0 %v1174
          %v1176 = vpop.xlane.xlu0 %1175
          %v1177 = vrot.slane %v1176, 4
          %v1178 = vadd.f32 %v1176, %v1177
          %v1179 = vrot.slane %v1178, 2
          %v1180 = vadd.f32 %v1178, %v1179
          %v1181 = vrot.slane %v1180, 1
          %v1182 = vadd.f32 %v1180, %v1181
          %s1183 = vtos %v1182
          %s1184 = sadd.f32 %s1015, %s1183
          %s1185 = scalar_lea.smem [#allocation2], 0
          %1186 = sst [smem:[%s1185]] %s1184
          %s1187 = sld [smem:[#allocation2 + $0x1]]
          %v1188 = vmul.f32 %v855, %v935
          %v1189 = vmul.f32 %v856, %v936
          %v1190 = vmul.f32 %v857, %v937
          %v1191 = vmul.f32 %v858, %v938
          %v1192 = vmul.f32 %v859, %v939
          %v1193 = vmul.f32 %v860, %v940
          %v1194 = vmul.f32 %v861, %v941
          %v1195 = vmul.f32 %v862, %v942
          %v1196 = vmul.f32 %v863, %v943
          %v1197 = vmul.f32 %v864, %v944
          %v1198 = vmul.f32 %v865, %v945
          %v1199 = vmul.f32 %v866, %v946
          %v1200 = vmul.f32 %v867, %v947
          %v1201 = vmul.f32 %v868, %v948
          %v1202 = vmul.f32 %v869, %v949
          %v1203 = vmul.f32 %v870, %v950
          %v1204 = vmul.f32 %v871, %v951
          %v1205 = vmul.f32 %v872, %v952
          %v1206 = vmul.f32 %v873, %v953
          %v1207 = vmul.f32 %v874, %v954
          %v1208 = vmul.f32 %v875, %v955
          %v1209 = vmul.f32 %v876, %v956
          %v1210 = vmul.f32 %v877, %v957
          %v1211 = vmul.f32 %v878, %v958
          %v1212 = vmul.f32 %v879, %v959
          %v1213 = vmul.f32 %v880, %v960
          %v1214 = vmul.f32 %v881, %v961
          %v1215 = vmul.f32 %v882, %v962
          %v1216 = vmul.f32 %v883, %v963
          %v1217 = vmul.f32 %v884, %v964
          %v1218 = vmul.f32 %v885, %v965
          %v1219 = vmul.f32 %v886, %v966
          %v1220 = vmul.f32 %v887, %v967
          %v1221 = vmul.f32 %v888, %v968
          %v1222 = vmul.f32 %v889, %v969
          %v1223 = vmul.f32 %v890, %v970
          %v1224 = vmul.f32 %v891, %v971
          %v1225 = vmul.f32 %v892, %v972
          %v1226 = vmul.f32 %v893, %v973
          %v1227 = vmul.f32 %v894, %v974
          %v1228 = vmul.f32 %v895, %v975
          %v1229 = vmul.f32 %v896, %v976
          %v1230 = vmul.f32 %v897, %v977
          %v1231 = vmul.f32 %v898, %v978
          %v1232 = vmul.f32 %v899, %v979
          %v1233 = vmul.f32 %v900, %v980
          %v1234 = vmul.f32 %v901, %v981
          %v1235 = vmul.f32 %v902, %v982
          %v1236 = vmul.f32 %v903, %v983
          %v1237 = vmul.f32 %v904, %v984
          %v1238 = vmul.f32 %v905, %v985
          %v1239 = vmul.f32 %v906, %v986
          %v1240 = vmul.f32 %v907, %v987
          %v1241 = vmul.f32 %v908, %v988
          %v1242 = vmul.f32 %v909, %v989
          %v1243 = vmul.f32 %v910, %v990
          %v1244 = vmul.f32 %v911, %v991
          %v1245 = vmul.f32 %v912, %v992
          %v1246 = vmul.f32 %v913, %v993
          %v1247 = vmul.f32 %v914, %v994
          %v1248 = vmul.f32 %v915, %v995
          %v1249 = vmul.f32 %v916, %v996
          %v1250 = vmul.f32 %v917, %v997
          %v1251 = vmul.f32 %v918, %v998
          %v1252 = vmul.f32 %v919, %v999
          %v1253 = vmul.f32 %v920, %v1000
          %v1254 = vmul.f32 %v921, %v1001
          %v1255 = vmul.f32 %v922, %v1002
          %v1256 = vmul.f32 %v923, %v1003
          %v1257 = vmul.f32 %v924, %v1004
          %v1258 = vmul.f32 %v925, %v1005
          %v1259 = vmul.f32 %v926, %v1006
          %v1260 = vmul.f32 %v927, %v1007
          %v1261 = vmul.f32 %v928, %v1008
          %v1262 = vmul.f32 %v929, %v1009
          %v1263 = vmul.f32 %v930, %v1010
          %v1264 = vmul.f32 %v931, %v1011
          %v1265 = vmul.f32 %v932, %v1012
          %v1266 = vmul.f32 %v933, %v1013
          %v1267 = vmul.f32 %v934, %v1014
          %v1268 = vadd.f32 %v1188, %v1189
          %v1269 = vadd.f32 %v1268, %v1190
          %v1270 = vadd.f32 %v1269, %v1191
          %v1271 = vadd.f32 %v1270, %v1192
          %v1272 = vadd.f32 %v1271, %v1193
          %v1273 = vadd.f32 %v1272, %v1194
          %v1274 = vadd.f32 %v1273, %v1195
          %v1275 = vadd.f32 %v1274, %v1196
          %v1276 = vadd.f32 %v1275, %v1197
          %v1277 = vadd.f32 %v1276, %v1198
          %v1278 = vadd.f32 %v1277, %v1199
          %v1279 = vadd.f32 %v1278, %v1200
          %v1280 = vadd.f32 %v1279, %v1201
          %v1281 = vadd.f32 %v1280, %v1202
          %v1282 = vadd.f32 %v1281, %v1203
          %v1283 = vadd.f32 %v1282, %v1204
          %v1284 = vadd.f32 %v1283, %v1205
          %v1285 = vadd.f32 %v1284, %v1206
          %v1286 = vadd.f32 %v1285, %v1207
          %v1287 = vadd.f32 %v1286, %v1208
          %v1288 = vadd.f32 %v1287, %v1209
          %v1289 = vadd.f32 %v1288, %v1210
          %v1290 = vadd.f32 %v1289, %v1211
          %v1291 = vadd.f32 %v1290, %v1212
          %v1292 = vadd.f32 %v1291, %v1213
          %v1293 = vadd.f32 %v1292, %v1214
          %v1294 = vadd.f32 %v1293, %v1215
          %v1295 = vadd.f32 %v1294, %v1216
          %v1296 = vadd.f32 %v1295, %v1217
          %v1297 = vadd.f32 %v1296, %v1218
          %v1298 = vadd.f32 %v1297, %v1219
          %v1299 = vadd.f32 %v1298, %v1220
          %v1300 = vadd.f32 %v1299, %v1221
          %v1301 = vadd.f32 %v1300, %v1222
          %v1302 = vadd.f32 %v1301, %v1223
          %v1303 = vadd.f32 %v1302, %v1224
          %v1304 = vadd.f32 %v1303, %v1225
          %v1305 = vadd.f32 %v1304, %v1226
          %v1306 = vadd.f32 %v1305, %v1227
          %v1307 = vadd.f32 %v1306, %v1228
          %v1308 = vadd.f32 %v1307, %v1229
          %v1309 = vadd.f32 %v1308, %v1230
          %v1310 = vadd.f32 %v1309, %v1231
          %v1311 = vadd.f32 %v1310, %v1232
          %v1312 = vadd.f32 %v1311, %v1233
          %v1313 = vadd.f32 %v1312, %v1234
          %v1314 = vadd.f32 %v1313, %v1235
          %v1315 = vadd.f32 %v1314, %v1236
          %v1316 = vadd.f32 %v1315, %v1237
          %v1317 = vadd.f32 %v1316, %v1238
          %v1318 = vadd.f32 %v1317, %v1239
          %v1319 = vadd.f32 %v1318, %v1240
          %v1320 = vadd.f32 %v1319, %v1241
          %v1321 = vadd.f32 %v1320, %v1242
          %v1322 = vadd.f32 %v1321, %v1243
          %v1323 = vadd.f32 %v1322, %v1244
          %v1324 = vadd.f32 %v1323, %v1245
          %v1325 = vadd.f32 %v1324, %v1246
          %v1326 = vadd.f32 %v1325, %v1247
          %v1327 = vadd.f32 %v1326, %v1248
          %v1328 = vadd.f32 %v1327, %v1249
          %v1329 = vadd.f32 %v1328, %v1250
          %v1330 = vadd.f32 %v1329, %v1251
          %v1331 = vadd.f32 %v1330, %v1252
          %v1332 = vadd.f32 %v1331, %v1253
          %v1333 = vadd.f32 %v1332, %v1254
          %v1334 = vadd.f32 %v1333, %v1255
          %v1335 = vadd.f32 %v1334, %v1256
          %v1336 = vadd.f32 %v1335, %v1257
          %v1337 = vadd.f32 %v1336, %v1258
          %v1338 = vadd.f32 %v1337, %v1259
          %v1339 = vadd.f32 %v1338, %v1260
          %v1340 = vadd.f32 %v1339, %v1261
          %v1341 = vadd.f32 %v1340, %v1262
          %v1342 = vadd.f32 %v1341, %v1263
          %v1343 = vadd.f32 %v1342, %v1264
          %v1344 = vadd.f32 %v1343, %v1265
          %v1345 = vadd.f32 %v1344, %v1266
          %v1346 = vadd.f32 %v1345, %v1267
          %1347 = vadd.xlane.f32.xlu0 %v1346
          %v1348 = vpop.xlane.xlu0 %1347
          %v1349 = vrot.slane %v1348, 4
          %v1350 = vadd.f32 %v1348, %v1349
          %v1351 = vrot.slane %v1350, 2
          %v1352 = vadd.f32 %v1350, %v1351
          %v1353 = vrot.slane %v1352, 1
          %v1354 = vadd.f32 %v1352, %v1353
          %s1355 = vtos %v1354
          %s1356 = sadd.f32 %s1187, %s1355
          %s1357 = scalar_lea.smem [#allocation2], 1
          %1358 = sst [smem:[%s1357]] %s1356
          %s1359 = sld [smem:[#allocation2 + $0x2]]
          %v1360 = vadd.f32 %v295, %v296
          %v1361 = vadd.f32 %v1360, %v297
          %v1362 = vadd.f32 %v1361, %v298
          %v1363 = vadd.f32 %v1362, %v299
          %v1364 = vadd.f32 %v1363, %v300
          %v1365 = vadd.f32 %v1364, %v301
          %v1366 = vadd.f32 %v1365, %v302
          %v1367 = vadd.f32 %v1366, %v303
          %v1368 = vadd.f32 %v1367, %v304
          %v1369 = vadd.f32 %v1368, %v305
          %v1370 = vadd.f32 %v1369, %v306
          %v1371 = vadd.f32 %v1370, %v307
          %v1372 = vadd.f32 %v1371, %v308
          %v1373 = vadd.f32 %v1372, %v309
          %v1374 = vadd.f32 %v1373, %v310
          %v1375 = vadd.f32 %v1374, %v311
          %v1376 = vadd.f32 %v1375, %v312
          %v1377 = vadd.f32 %v1376, %v313
          %v1378 = vadd.f32 %v1377, %v314
          %v1379 = vadd.f32 %v1378, %v315
          %v1380 = vadd.f32 %v1379, %v316
          %v1381 = vadd.f32 %v1380, %v317
          %v1382 = vadd.f32 %v1381, %v318
          %v1383 = vadd.f32 %v1382, %v319
          %v1384 = vadd.f32 %v1383, %v320
          %v1385 = vadd.f32 %v1384, %v321
          %v1386 = vadd.f32 %v1385, %v322
          %v1387 = vadd.f32 %v1386, %v323
          %v1388 = vadd.f32 %v1387, %v324
          %v1389 = vadd.f32 %v1388, %v325
          %v1390 = vadd.f32 %v1389, %v326
          %v1391 = vadd.f32 %v1390, %v327
          %v1392 = vadd.f32 %v1391, %v328
          %v1393 = vadd.f32 %v1392, %v329
          %v1394 = vadd.f32 %v1393, %v330
          %v1395 = vadd.f32 %v1394, %v331
          %v1396 = vadd.f32 %v1395, %v332
          %v1397 = vadd.f32 %v1396, %v333
          %v1398 = vadd.f32 %v1397, %v334
          %v1399 = vadd.f32 %v1398, %v335
          %v1400 = vadd.f32 %v1399, %v336
          %v1401 = vadd.f32 %v1400, %v337
          %v1402 = vadd.f32 %v1401, %v338
          %v1403 = vadd.f32 %v1402, %v339
          %v1404 = vadd.f32 %v1403, %v340
          %v1405 = vadd.f32 %v1404, %v341
          %v1406 = vadd.f32 %v1405, %v342
          %v1407 = vadd.f32 %v1406, %v343
          %v1408 = vadd.f32 %v1407, %v344
          %v1409 = vadd.f32 %v1408, %v345
          %v1410 = vadd.f32 %v1409, %v346
          %v1411 = vadd.f32 %v1410, %v347
          %v1412 = vadd.f32 %v1411, %v348
          %v1413 = vadd.f32 %v1412, %v349
          %v1414 = vadd.f32 %v1413, %v350
          %v1415 = vadd.f32 %v1414, %v351
          %v1416 = vadd.f32 %v1415, %v352
          %v1417 = vadd.f32 %v1416, %v353
          %v1418 = vadd.f32 %v1417, %v354
          %v1419 = vadd.f32 %v1418, %v355
          %v1420 = vadd.f32 %v1419, %v356
          %v1421 = vadd.f32 %v1420, %v357
          %v1422 = vadd.f32 %v1421, %v358
          %v1423 = vadd.f32 %v1422, %v359
          %v1424 = vadd.f32 %v1423, %v360
          %v1425 = vadd.f32 %v1424, %v361
          %v1426 = vadd.f32 %v1425, %v362
          %v1427 = vadd.f32 %v1426, %v363
          %v1428 = vadd.f32 %v1427, %v364
          %v1429 = vadd.f32 %v1428, %v365
          %v1430 = vadd.f32 %v1429, %v366
          %v1431 = vadd.f32 %v1430, %v367
          %v1432 = vadd.f32 %v1431, %v368
          %v1433 = vadd.f32 %v1432, %v369
          %v1434 = vadd.f32 %v1433, %v370
          %v1435 = vadd.f32 %v1434, %v371
          %v1436 = vadd.f32 %v1435, %v372
          %v1437 = vadd.f32 %v1436, %v373
          %v1438 = vadd.f32 %v1437, %v374
          %1439 = vadd.xlane.f32.xlu0 %v1438
          %v1440 = vpop.xlane.xlu0 %1439
          %v1441 = vrot.slane %v1440, 4
          %v1442 = vadd.f32 %v1440, %v1441
          %v1443 = vrot.slane %v1442, 2
          %v1444 = vadd.f32 %v1442, %v1443
          %v1445 = vrot.slane %v1444, 1
          %v1446 = vadd.f32 %v1444, %v1445
          %s1447 = vtos %v1446
          %s1448 = sadd.f32 %s1359, %s1447
          %s1449 = scalar_lea.smem [#allocation2], 2
          %1450 = sst [smem:[%s1449]] %s1448
          %s1451 = sld [smem:[#allocation2 + $0x3]]
          %v1452 = vadd.f32 %v935, %v936
          %v1453 = vadd.f32 %v1452, %v937
          %v1454 = vadd.f32 %v1453, %v938
          %v1455 = vadd.f32 %v1454, %v939
          %v1456 = vadd.f32 %v1455, %v940
          %v1457 = vadd.f32 %v1456, %v941
          %v1458 = vadd.f32 %v1457, %v942
          %v1459 = vadd.f32 %v1458, %v943
          %v1460 = vadd.f32 %v1459, %v944
          %v1461 = vadd.f32 %v1460, %v945
          %v1462 = vadd.f32 %v1461, %v946
          %v1463 = vadd.f32 %v1462, %v947
          %v1464 = vadd.f32 %v1463, %v948
          %v1465 = vadd.f32 %v1464, %v949
          %v1466 = vadd.f32 %v1465, %v950
          %v1467 = vadd.f32 %v1466, %v951
          %v1468 = vadd.f32 %v1467, %v952
          %v1469 = vadd.f32 %v1468, %v953
          %v1470 = vadd.f32 %v1469, %v954
          %v1471 = vadd.f32 %v1470, %v955
          %v1472 = vadd.f32 %v1471, %v956
          %v1473 = vadd.f32 %v1472, %v957
          %v1474 = vadd.f32 %v1473, %v958
          %v1475 = vadd.f32 %v1474, %v959
          %v1476 = vadd.f32 %v1475, %v960
          %v1477 = vadd.f32 %v1476, %v961
          %v1478 = vadd.f32 %v1477, %v962
          %v1479 = vadd.f32 %v1478, %v963
          %v1480 = vadd.f32 %v1479, %v964
          %v1481 = vadd.f32 %v1480, %v965
          %v1482 = vadd.f32 %v1481, %v966
          %v1483 = vadd.f32 %v1482, %v967
          %v1484 = vadd.f32 %v1483, %v968
          %v1485 = vadd.f32 %v1484, %v969
          %v1486 = vadd.f32 %v1485, %v970
          %v1487 = vadd.f32 %v1486, %v971
          %v1488 = vadd.f32 %v1487, %v972
          %v1489 = vadd.f32 %v1488, %v973
          %v1490 = vadd.f32 %v1489, %v974
          %v1491 = vadd.f32 %v1490, %v975
          %v1492 = vadd.f32 %v1491, %v976
          %v1493 = vadd.f32 %v1492, %v977
          %v1494 = vadd.f32 %v1493, %v978
          %v1495 = vadd.f32 %v1494, %v979
          %v1496 = vadd.f32 %v1495, %v980
          %v1497 = vadd.f32 %v1496, %v981
          %v1498 = vadd.f32 %v1497, %v982
          %v1499 = vadd.f32 %v1498, %v983
          %v1500 = vadd.f32 %v1499, %v984
          %v1501 = vadd.f32 %v1500, %v985
          %v1502 = vadd.f32 %v1501, %v986
          %v1503 = vadd.f32 %v1502, %v987
          %v1504 = vadd.f32 %v1503, %v988
          %v1505 = vadd.f32 %v1504, %v989
          %v1506 = vadd.f32 %v1505, %v990
          %v1507 = vadd.f32 %v1506, %v991
          %v1508 = vadd.f32 %v1507, %v992
          %v1509 = vadd.f32 %v1508, %v993
          %v1510 = vadd.f32 %v1509, %v994
          %v1511 = vadd.f32 %v1510, %v995
          %v1512 = vadd.f32 %v1511, %v996
          %v1513 = vadd.f32 %v1512, %v997
          %v1514 = vadd.f32 %v1513, %v998
          %v1515 = vadd.f32 %v1514, %v999
          %v1516 = vadd.f32 %v1515, %v1000
          %v1517 = vadd.f32 %v1516, %v1001
          %v1518 = vadd.f32 %v1517, %v1002
          %v1519 = vadd.f32 %v1518, %v1003
          %v1520 = vadd.f32 %v1519, %v1004
          %v1521 = vadd.f32 %v1520, %v1005
          %v1522 = vadd.f32 %v1521, %v1006
          %v1523 = vadd.f32 %v1522, %v1007
          %v1524 = vadd.f32 %v1523, %v1008
          %v1525 = vadd.f32 %v1524, %v1009
          %v1526 = vadd.f32 %v1525, %v1010
          %v1527 = vadd.f32 %v1526, %v1011
          %v1528 = vadd.f32 %v1527, %v1012
          %v1529 = vadd.f32 %v1528, %v1013
          %v1530 = vadd.f32 %v1529, %v1014
          %1531 = vadd.xlane.f32.xlu0 %v1530
          %v1532 = vpop.xlane.xlu0 %1531
          %v1533 = vrot.slane %v1532, 4
          %v1534 = vadd.f32 %v1532, %v1533
          %v1535 = vrot.slane %v1534, 2
          %v1536 = vadd.f32 %v1534, %v1535
          %v1537 = vrot.slane %v1536, 1
          %v1538 = vadd.f32 %v1536, %v1537
          %s1539 = vtos %v1538
          %s1540 = sadd.f32 %s1451, %s1539
          %s1541 = scalar_lea.smem [#allocation2], 3
          %1542 = sst [smem:[%s1541]] %s1540
          %s1543 = sld [smem:[#allocation2 + $0x4]]
          %v1544 = vsub.f32 %v615, %v295
          %v1545 = vsub.f32 %v616, %v296
          %v1546 = vsub.f32 %v617, %v297
          %v1547 = vsub.f32 %v618, %v298
          %v1548 = vsub.f32 %v619, %v299
          %v1549 = vsub.f32 %v620, %v300
          %v1550 = vsub.f32 %v621, %v301
          %v1551 = vsub.f32 %v622, %v302
          %v1552 = vsub.f32 %v623, %v303
          %v1553 = vsub.f32 %v624, %v304
          %v1554 = vsub.f32 %v625, %v305
          %v1555 = vsub.f32 %v626, %v306
          %v1556 = vsub.f32 %v627, %v307
          %v1557 = vsub.f32 %v628, %v308
          %v1558 = vsub.f32 %v629, %v309
          %v1559 = vsub.f32 %v630, %v310
          %v1560 = vsub.f32 %v631, %v311
          %v1561 = vsub.f32 %v632, %v312
          %v1562 = vsub.f32 %v633, %v313
          %v1563 = vsub.f32 %v634, %v314
          %v1564 = vsub.f32 %v635, %v315
          %v1565 = vsub.f32 %v636, %v316
          %v1566 = vsub.f32 %v637, %v317
          %v1567 = vsub.f32 %v638, %v318
          %v1568 = vsub.f32 %v639, %v319
          %v1569 = vsub.f32 %v640, %v320
          %v1570 = vsub.f32 %v641, %v321
          %v1571 = vsub.f32 %v642, %v322
          %v1572 = vsub.f32 %v643, %v323
          %v1573 = vsub.f32 %v644, %v324
          %v1574 = vsub.f32 %v645, %v325
          %v1575 = vsub.f32 %v646, %v326
          %v1576 = vsub.f32 %v647, %v327
          %v1577 = vsub.f32 %v648, %v328
          %v1578 = vsub.f32 %v649, %v329
          %v1579 = vsub.f32 %v650, %v330
          %v1580 = vsub.f32 %v651, %v331
          %v1581 = vsub.f32 %v652, %v332
          %v1582 = vsub.f32 %v653, %v333
          %v1583 = vsub.f32 %v654, %v334
          %v1584 = vsub.f32 %v655, %v335
          %v1585 = vsub.f32 %v656, %v336
          %v1586 = vsub.f32 %v657, %v337
          %v1587 = vsub.f32 %v658, %v338
          %v1588 = vsub.f32 %v659, %v339
          %v1589 = vsub.f32 %v660, %v340
          %v1590 = vsub.f32 %v661, %v341
          %v1591 = vsub.f32 %v662, %v342
          %v1592 = vsub.f32 %v663, %v343
          %v1593 = vsub.f32 %v664, %v344
          %v1594 = vsub.f32 %v665, %v345
          %v1595 = vsub.f32 %v666, %v346
          %v1596 = vsub.f32 %v667, %v347
          %v1597 = vsub.f32 %v668, %v348
          %v1598 = vsub.f32 %v669, %v349
          %v1599 = vsub.f32 %v670, %v350
          %v1600 = vsub.f32 %v671, %v351
          %v1601 = vsub.f32 %v672, %v352
          %v1602 = vsub.f32 %v673, %v353
          %v1603 = vsub.f32 %v674, %v354
          %v1604 = vsub.f32 %v675, %v355
          %v1605 = vsub.f32 %v676, %v356
          %v1606 = vsub.f32 %v677, %v357
          %v1607 = vsub.f32 %v678, %v358
          %v1608 = vsub.f32 %v679, %v359
          %v1609 = vsub.f32 %v680, %v360
          %v1610 = vsub.f32 %v681, %v361
          %v1611 = vsub.f32 %v682, %v362
          %v1612 = vsub.f32 %v683, %v363
          %v1613 = vsub.f32 %v684, %v364
          %v1614 = vsub.f32 %v685, %v365
          %v1615 = vsub.f32 %v686, %v366
          %v1616 = vsub.f32 %v687, %v367
          %v1617 = vsub.f32 %v688, %v368
          %v1618 = vsub.f32 %v689, %v369
          %v1619 = vsub.f32 %v690, %v370
          %v1620 = vsub.f32 %v691, %v371
          %v1621 = vsub.f32 %v692, %v372
          %v1622 = vsub.f32 %v693, %v373
          %v1623 = vsub.f32 %v694, %v374
          %v1624 = vmul.f32 %v1544, %v1544
          %v1625 = vmul.f32 %v1545, %v1545
          %v1626 = vmul.f32 %v1546, %v1546
          %v1627 = vmul.f32 %v1547, %v1547
          %v1628 = vmul.f32 %v1548, %v1548
          %v1629 = vmul.f32 %v1549, %v1549
          %v1630 = vmul.f32 %v1550, %v1550
          %v1631 = vmul.f32 %v1551, %v1551
          %v1632 = vmul.f32 %v1552, %v1552
          %v1633 = vmul.f32 %v1553, %v1553
          %v1634 = vmul.f32 %v1554, %v1554
          %v1635 = vmul.f32 %v1555, %v1555
          %v1636 = vmul.f32 %v1556, %v1556
          %v1637 = vmul.f32 %v1557, %v1557
          %v1638 = vmul.f32 %v1558, %v1558
          %v1639 = vmul.f32 %v1559, %v1559
          %v1640 = vmul.f32 %v1560, %v1560
          %v1641 = vmul.f32 %v1561, %v1561
          %v1642 = vmul.f32 %v1562, %v1562
          %v1643 = vmul.f32 %v1563, %v1563
          %v1644 = vmul.f32 %v1564, %v1564
          %v1645 = vmul.f32 %v1565, %v1565
          %v1646 = vmul.f32 %v1566, %v1566
          %v1647 = vmul.f32 %v1567, %v1567
          %v1648 = vmul.f32 %v1568, %v1568
          %v1649 = vmul.f32 %v1569, %v1569
          %v1650 = vmul.f32 %v1570, %v1570
          %v1651 = vmul.f32 %v1571, %v1571
          %v1652 = vmul.f32 %v1572, %v1572
          %v1653 = vmul.f32 %v1573, %v1573
          %v1654 = vmul.f32 %v1574, %v1574
          %v1655 = vmul.f32 %v1575, %v1575
          %v1656 = vmul.f32 %v1576, %v1576
          %v1657 = vmul.f32 %v1577, %v1577
          %v1658 = vmul.f32 %v1578, %v1578
          %v1659 = vmul.f32 %v1579, %v1579
          %v1660 = vmul.f32 %v1580, %v1580
          %v1661 = vmul.f32 %v1581, %v1581
          %v1662 = vmul.f32 %v1582, %v1582
          %v1663 = vmul.f32 %v1583, %v1583
          %v1664 = vmul.f32 %v1584, %v1584
          %v1665 = vmul.f32 %v1585, %v1585
          %v1666 = vmul.f32 %v1586, %v1586
          %v1667 = vmul.f32 %v1587, %v1587
          %v1668 = vmul.f32 %v1588, %v1588
          %v1669 = vmul.f32 %v1589, %v1589
          %v1670 = vmul.f32 %v1590, %v1590
          %v1671 = vmul.f32 %v1591, %v1591
          %v1672 = vmul.f32 %v1592, %v1592
          %v1673 = vmul.f32 %v1593, %v1593
          %v1674 = vmul.f32 %v1594, %v1594
          %v1675 = vmul.f32 %v1595, %v1595
          %v1676 = vmul.f32 %v1596, %v1596
          %v1677 = vmul.f32 %v1597, %v1597
          %v1678 = vmul.f32 %v1598, %v1598
          %v1679 = vmul.f32 %v1599, %v1599
          %v1680 = vmul.f32 %v1600, %v1600
          %v1681 = vmul.f32 %v1601, %v1601
          %v1682 = vmul.f32 %v1602, %v1602
          %v1683 = vmul.f32 %v1603, %v1603
          %v1684 = vmul.f32 %v1604, %v1604
          %v1685 = vmul.f32 %v1605, %v1605
          %v1686 = vmul.f32 %v1606, %v1606
          %v1687 = vmul.f32 %v1607, %v1607
          %v1688 = vmul.f32 %v1608, %v1608
          %v1689 = vmul.f32 %v1609, %v1609
          %v1690 = vmul.f32 %v1610, %v1610
          %v1691 = vmul.f32 %v1611, %v1611
          %v1692 = vmul.f32 %v1612, %v1612
          %v1693 = vmul.f32 %v1613, %v1613
          %v1694 = vmul.f32 %v1614, %v1614
          %v1695 = vmul.f32 %v1615, %v1615
          %v1696 = vmul.f32 %v1616, %v1616
          %v1697 = vmul.f32 %v1617, %v1617
          %v1698 = vmul.f32 %v1618, %v1618
          %v1699 = vmul.f32 %v1619, %v1619
          %v1700 = vmul.f32 %v1620, %v1620
          %v1701 = vmul.f32 %v1621, %v1621
          %v1702 = vmul.f32 %v1622, %v1622
          %v1703 = vmul.f32 %v1623, %v1623
          %v1704 = vadd.f32 %v1624, %v1625
          %v1705 = vadd.f32 %v1704, %v1626
          %v1706 = vadd.f32 %v1705, %v1627
          %v1707 = vadd.f32 %v1706, %v1628
          %v1708 = vadd.f32 %v1707, %v1629
          %v1709 = vadd.f32 %v1708, %v1630
          %v1710 = vadd.f32 %v1709, %v1631
          %v1711 = vadd.f32 %v1710, %v1632
          %v1712 = vadd.f32 %v1711, %v1633
          %v1713 = vadd.f32 %v1712, %v1634
          %v1714 = vadd.f32 %v1713, %v1635
          %v1715 = vadd.f32 %v1714, %v1636
          %v1716 = vadd.f32 %v1715, %v1637
          %v1717 = vadd.f32 %v1716, %v1638
          %v1718 = vadd.f32 %v1717, %v1639
          %v1719 = vadd.f32 %v1718, %v1640
          %v1720 = vadd.f32 %v1719, %v1641
          %v1721 = vadd.f32 %v1720, %v1642
          %v1722 = vadd.f32 %v1721, %v1643
          %v1723 = vadd.f32 %v1722, %v1644
          %v1724 = vadd.f32 %v1723, %v1645
          %v1725 = vadd.f32 %v1724, %v1646
          %v1726 = vadd.f32 %v1725, %v1647
          %v1727 = vadd.f32 %v1726, %v1648
          %v1728 = vadd.f32 %v1727, %v1649
          %v1729 = vadd.f32 %v1728, %v1650
          %v1730 = vadd.f32 %v1729, %v1651
          %v1731 = vadd.f32 %v1730, %v1652
          %v1732 = vadd.f32 %v1731, %v1653
          %v1733 = vadd.f32 %v1732, %v1654
          %v1734 = vadd.f32 %v1733, %v1655
          %v1735 = vadd.f32 %v1734, %v1656
          %v1736 = vadd.f32 %v1735, %v1657
          %v1737 = vadd.f32 %v1736, %v1658
          %v1738 = vadd.f32 %v1737, %v1659
          %v1739 = vadd.f32 %v1738, %v1660
          %v1740 = vadd.f32 %v1739, %v1661
          %v1741 = vadd.f32 %v1740, %v1662
          %v1742 = vadd.f32 %v1741, %v1663
          %v1743 = vadd.f32 %v1742, %v1664
          %v1744 = vadd.f32 %v1743, %v1665
          %v1745 = vadd.f32 %v1744, %v1666
          %v1746 = vadd.f32 %v1745, %v1667
          %v1747 = vadd.f32 %v1746, %v1668
          %v1748 = vadd.f32 %v1747, %v1669
          %v1749 = vadd.f32 %v1748, %v1670
          %v1750 = vadd.f32 %v1749, %v1671
          %v1751 = vadd.f32 %v1750, %v1672
          %v1752 = vadd.f32 %v1751, %v1673
          %v1753 = vadd.f32 %v1752, %v1674
          %v1754 = vadd.f32 %v1753, %v1675
          %v1755 = vadd.f32 %v1754, %v1676
          %v1756 = vadd.f32 %v1755, %v1677
          %v1757 = vadd.f32 %v1756, %v1678
          %v1758 = vadd.f32 %v1757, %v1679
          %v1759 = vadd.f32 %v1758, %v1680
          %v1760 = vadd.f32 %v1759, %v1681
          %v1761 = vadd.f32 %v1760, %v1682
          %v1762 = vadd.f32 %v1761, %v1683
          %v1763 = vadd.f32 %v1762, %v1684
          %v1764 = vadd.f32 %v1763, %v1685
          %v1765 = vadd.f32 %v1764, %v1686
          %v1766 = vadd.f32 %v1765, %v1687
          %v1767 = vadd.f32 %v1766, %v1688
          %v1768 = vadd.f32 %v1767, %v1689
          %v1769 = vadd.f32 %v1768, %v1690
          %v1770 = vadd.f32 %v1769, %v1691
          %v1771 = vadd.f32 %v1770, %v1692
          %v1772 = vadd.f32 %v1771, %v1693
          %v1773 = vadd.f32 %v1772, %v1694
          %v1774 = vadd.f32 %v1773, %v1695
          %v1775 = vadd.f32 %v1774, %v1696
          %v1776 = vadd.f32 %v1775, %v1697
          %v1777 = vadd.f32 %v1776, %v1698
          %v1778 = vadd.f32 %v1777, %v1699
          %v1779 = vadd.f32 %v1778, %v1700
          %v1780 = vadd.f32 %v1779, %v1701
          %v1781 = vadd.f32 %v1780, %v1702
          %v1782 = vadd.f32 %v1781, %v1703
          %1783 = vadd.xlane.f32.xlu0 %v1782
          %v1784 = vpop.xlane.xlu0 %1783
          %v1785 = vrot.slane %v1784, 4
          %v1786 = vadd.f32 %v1784, %v1785
          %v1787 = vrot.slane %v1786, 2
          %v1788 = vadd.f32 %v1786, %v1787
          %v1789 = vrot.slane %v1788, 1
          %v1790 = vadd.f32 %v1788, %v1789
          %s1791 = vtos %v1790
          %s1792 = sadd.f32 %s1543, %s1791
          %s1793 = scalar_lea.smem [#allocation2], 4
          %1794 = sst [smem:[%s1793]] %s1792
        $region44: #{asymmetric_loss_adaptive.1} parent=27 // pred_fallthru
          _
        %p1795 = scmp.eq.s32.totalorder %s21, 1
        %p1796 = pnand %p1795, %p192
        %p1797 = pneg %p1796
        // Predicated region
        $region45: #{asymmetric_loss_adaptive.1} parent=27 // pred_check
          _
        $region46: #{asymmetric_loss_adaptive.1} parent=27 // pred_check_branch
          %1799 = sbr.rel (%p1796) target = $region48
        $region47: #{asymmetric_loss_adaptive.1} parent=27 // pred_region
          %s1800 = sld [smem:[#allocation2]]
          %s1801 = sld [smem:[#allocation2 + $0x2]]
          %s1802 = sadd.f32 %s1801, 1e-08
          %v1803 = vstv %s1802
          %v1804 = vrcp.pop %v1803
          %s1805 = vtos %v1804
          %s1806 = smul.f32 %s1800, %s1805
          %s1807 = sld [smem:[#allocation2 + $0x1]]
          %s1808 = sld [smem:[#allocation2 + $0x3]]
          %s1809 = sadd.f32 %s1808, 1e-08
          %v1810 = vstv %s1809
          %v1811 = vrcp.pop %v1810
          %s1812 = vtos %v1811
          %s1813 = smul.f32 %s1807, %s1812
          %s1814 = ssub.f32 %s1806, %s1813
          %s1815 = ssub.f32 %s1814, 0.1
          %s1816 = smul.f32 %s1815, 0.1
          %s1817 = ssub.f32 1.0, %s1816
          %s1818 = scalar_lea.smem [#allocation2], 6
          %1819 = sst [smem:[%s1818]] %s1817
        $region48: #{asymmetric_loss_adaptive.1} parent=27 // pred_fallthru
          _
        // Predicated region
        $region49: #{asymmetric_loss_adaptive.1} parent=27 // pred_check
          %p1820 = pneg %p1795
        $region50: #{asymmetric_loss_adaptive.1} parent=27 // pred_check_branch
          %1822 = sbr.rel (%p1820) target = $region52
        $region51: #{asymmetric_loss_adaptive.1} parent=27 // pred_region
          %v1823 = vld [vmem:[#allocation3] sm:$0xff]
          %v1824 = vld [vmem:[#allocation3 + $0x8] sm:$0xff]
          %v1825 = vld [vmem:[#allocation3 + $0x10] sm:$0xff]
          %v1826 = vld [vmem:[#allocation3 + $0x18] sm:$0xff]
          %v1827 = vld [vmem:[#allocation3 + $0x20] sm:$0xff]
          %v1828 = vld [vmem:[#allocation3 + $0x28] sm:$0xff]
          %v1829 = vld [vmem:[#allocation3 + $0x30] sm:$0xff]
          %v1830 = vld [vmem:[#allocation3 + $0x38] sm:$0xff]
          %v1831 = vld [vmem:[#allocation3 + $0x40] sm:$0xff]
          %v1832 = vld [vmem:[#allocation3 + $0x48] sm:$0xff]
          %v1833 = vld [vmem:[#allocation3 + $0x50] sm:$0xff]
          %v1834 = vld [vmem:[#allocation3 + $0x58] sm:$0xff]
          %v1835 = vld [vmem:[#allocation3 + $0x60] sm:$0xff]
          %v1836 = vld [vmem:[#allocation3 + $0x68] sm:$0xff]
          %v1837 = vld [vmem:[#allocation3 + $0x70] sm:$0xff]
          %v1838 = vld [vmem:[#allocation3 + $0x78] sm:$0xff]
          %v1839 = vld [vmem:[#allocation3 + $0x80] sm:$0xff]
          %v1840 = vld [vmem:[#allocation3 + $0x88] sm:$0xff]
          %v1841 = vld [vmem:[#allocation3 + $0x90] sm:$0xff]
          %v1842 = vld [vmem:[#allocation3 + $0x98] sm:$0xff]
          %v1843 = vld [vmem:[#allocation3 + $0xa0] sm:$0xff]
          %v1844 = vld [vmem:[#allocation3 + $0xa8] sm:$0xff]
          %v1845 = vld [vmem:[#allocation3 + $0xb0] sm:$0xff]
          %v1846 = vld [vmem:[#allocation3 + $0xb8] sm:$0xff]
          %v1847 = vld [vmem:[#allocation3 + $0xc0] sm:$0xff]
          %v1848 = vld [vmem:[#allocation3 + $0xc8] sm:$0xff]
          %v1849 = vld [vmem:[#allocation3 + $0xd0] sm:$0xff]
          %v1850 = vld [vmem:[#allocation3 + $0xd8] sm:$0xff]
          %v1851 = vld [vmem:[#allocation3 + $0xe0] sm:$0xff]
          %v1852 = vld [vmem:[#allocation3 + $0xe8] sm:$0xff]
          %v1853 = vld [vmem:[#allocation3 + $0xf0] sm:$0xff]
          %v1854 = vld [vmem:[#allocation3 + $0xf8] sm:$0xff]
          %v1855 = vld [vmem:[#allocation3 + $0x100] sm:$0xff]
          %v1856 = vld [vmem:[#allocation3 + $0x108] sm:$0xff]
          %v1857 = vld [vmem:[#allocation3 + $0x110] sm:$0xff]
          %v1858 = vld [vmem:[#allocation3 + $0x118] sm:$0xff]
          %v1859 = vld [vmem:[#allocation3 + $0x120] sm:$0xff]
          %v1860 = vld [vmem:[#allocation3 + $0x128] sm:$0xff]
          %v1861 = vld [vmem:[#allocation3 + $0x130] sm:$0xff]
          %v1862 = vld [vmem:[#allocation3 + $0x138] sm:$0xff]
          %v1863 = vld [vmem:[#allocation3 + $0x140] sm:$0xff]
          %v1864 = vld [vmem:[#allocation3 + $0x148] sm:$0xff]
          %v1865 = vld [vmem:[#allocation3 + $0x150] sm:$0xff]
          %v1866 = vld [vmem:[#allocation3 + $0x158] sm:$0xff]
          %v1867 = vld [vmem:[#allocation3 + $0x160] sm:$0xff]
          %v1868 = vld [vmem:[#allocation3 + $0x168] sm:$0xff]
          %v1869 = vld [vmem:[#allocation3 + $0x170] sm:$0xff]
          %v1870 = vld [vmem:[#allocation3 + $0x178] sm:$0xff]
          %v1871 = vld [vmem:[#allocation3 + $0x180] sm:$0xff]
          %v1872 = vld [vmem:[#allocation3 + $0x188] sm:$0xff]
          %v1873 = vld [vmem:[#allocation3 + $0x190] sm:$0xff]
          %v1874 = vld [vmem:[#allocation3 + $0x198] sm:$0xff]
          %v1875 = vld [vmem:[#allocation3 + $0x1a0] sm:$0xff]
          %v1876 = vld [vmem:[#allocation3 + $0x1a8] sm:$0xff]
          %v1877 = vld [vmem:[#allocation3 + $0x1b0] sm:$0xff]
          %v1878 = vld [vmem:[#allocation3 + $0x1b8] sm:$0xff]
          %v1879 = vld [vmem:[#allocation3 + $0x1c0] sm:$0xff]
          %v1880 = vld [vmem:[#allocation3 + $0x1c8] sm:$0xff]
          %v1881 = vld [vmem:[#allocation3 + $0x1d0] sm:$0xff]
          %v1882 = vld [vmem:[#allocation3 + $0x1d8] sm:$0xff]
          %v1883 = vld [vmem:[#allocation3 + $0x1e0] sm:$0xff]
          %v1884 = vld [vmem:[#allocation3 + $0x1e8] sm:$0xff]
          %v1885 = vld [vmem:[#allocation3 + $0x1f0] sm:$0xff]
          %v1886 = vld [vmem:[#allocation3 + $0x1f8] sm:$0xff]
          %v1887 = vld [vmem:[#allocation3 + $0x200] sm:$0xff]
          %v1888 = vld [vmem:[#allocation3 + $0x208] sm:$0xff]
          %v1889 = vld [vmem:[#allocation3 + $0x210] sm:$0xff]
          %v1890 = vld [vmem:[#allocation3 + $0x218] sm:$0xff]
          %v1891 = vld [vmem:[#allocation3 + $0x220] sm:$0xff]
          %v1892 = vld [vmem:[#allocation3 + $0x228] sm:$0xff]
          %v1893 = vld [vmem:[#allocation3 + $0x230] sm:$0xff]
          %v1894 = vld [vmem:[#allocation3 + $0x238] sm:$0xff]
          %v1895 = vld [vmem:[#allocation3 + $0x240] sm:$0xff]
          %v1896 = vld [vmem:[#allocation3 + $0x248] sm:$0xff]
          %v1897 = vld [vmem:[#allocation3 + $0x250] sm:$0xff]
          %v1898 = vld [vmem:[#allocation3 + $0x258] sm:$0xff]
          %v1899 = vld [vmem:[#allocation3 + $0x260] sm:$0xff]
          %v1900 = vld [vmem:[#allocation3 + $0x268] sm:$0xff]
          %v1901 = vld [vmem:[#allocation3 + $0x270] sm:$0xff]
          %v1902 = vld [vmem:[#allocation3 + $0x278] sm:$0xff]
          %v1903 = vmul.f32 %v1823, 0.5
          %v1904 = vmul.f32 %v1824, 0.5
          %v1905 = vmul.f32 %v1825, 0.5
          %v1906 = vmul.f32 %v1826, 0.5
          %v1907 = vmul.f32 %v1827, 0.5
          %v1908 = vmul.f32 %v1828, 0.5
          %v1909 = vmul.f32 %v1829, 0.5
          %v1910 = vmul.f32 %v1830, 0.5
          %v1911 = vmul.f32 %v1831, 0.5
          %v1912 = vmul.f32 %v1832, 0.5
          %v1913 = vmul.f32 %v1833, 0.5
          %v1914 = vmul.f32 %v1834, 0.5
          %v1915 = vmul.f32 %v1835, 0.5
          %v1916 = vmul.f32 %v1836, 0.5
          %v1917 = vmul.f32 %v1837, 0.5
          %v1918 = vmul.f32 %v1838, 0.5
          %v1919 = vmul.f32 %v1839, 0.5
          %v1920 = vmul.f32 %v1840, 0.5
          %v1921 = vmul.f32 %v1841, 0.5
          %v1922 = vmul.f32 %v1842, 0.5
          %v1923 = vmul.f32 %v1843, 0.5
          %v1924 = vmul.f32 %v1844, 0.5
          %v1925 = vmul.f32 %v1845, 0.5
          %v1926 = vmul.f32 %v1846, 0.5
          %v1927 = vmul.f32 %v1847, 0.5
          %v1928 = vmul.f32 %v1848, 0.5
          %v1929 = vmul.f32 %v1849, 0.5
          %v1930 = vmul.f32 %v1850, 0.5
          %v1931 = vmul.f32 %v1851, 0.5
          %v1932 = vmul.f32 %v1852, 0.5
          %v1933 = vmul.f32 %v1853, 0.5
          %v1934 = vmul.f32 %v1854, 0.5
          %v1935 = vmul.f32 %v1855, 0.5
          %v1936 = vmul.f32 %v1856, 0.5
          %v1937 = vmul.f32 %v1857, 0.5
          %v1938 = vmul.f32 %v1858, 0.5
          %v1939 = vmul.f32 %v1859, 0.5
          %v1940 = vmul.f32 %v1860, 0.5
          %v1941 = vmul.f32 %v1861, 0.5
          %v1942 = vmul.f32 %v1862, 0.5
          %v1943 = vmul.f32 %v1863, 0.5
          %v1944 = vmul.f32 %v1864, 0.5
          %v1945 = vmul.f32 %v1865, 0.5
          %v1946 = vmul.f32 %v1866, 0.5
          %v1947 = vmul.f32 %v1867, 0.5
          %v1948 = vmul.f32 %v1868, 0.5
          %v1949 = vmul.f32 %v1869, 0.5
          %v1950 = vmul.f32 %v1870, 0.5
          %v1951 = vmul.f32 %v1871, 0.5
          %v1952 = vmul.f32 %v1872, 0.5
          %v1953 = vmul.f32 %v1873, 0.5
          %v1954 = vmul.f32 %v1874, 0.5
          %v1955 = vmul.f32 %v1875, 0.5
          %v1956 = vmul.f32 %v1876, 0.5
          %v1957 = vmul.f32 %v1877, 0.5
          %v1958 = vmul.f32 %v1878, 0.5
          %v1959 = vmul.f32 %v1879, 0.5
          %v1960 = vmul.f32 %v1880, 0.5
          %v1961 = vmul.f32 %v1881, 0.5
          %v1962 = vmul.f32 %v1882, 0.5
          %v1963 = vmul.f32 %v1883, 0.5
          %v1964 = vmul.f32 %v1884, 0.5
          %v1965 = vmul.f32 %v1885, 0.5
          %v1966 = vmul.f32 %v1886, 0.5
          %v1967 = vmul.f32 %v1887, 0.5
          %v1968 = vmul.f32 %v1888, 0.5
          %v1969 = vmul.f32 %v1889, 0.5
          %v1970 = vmul.f32 %v1890, 0.5
          %v1971 = vmul.f32 %v1891, 0.5
          %v1972 = vmul.f32 %v1892, 0.5
          %v1973 = vmul.f32 %v1893, 0.5
          %v1974 = vmul.f32 %v1894, 0.5
          %v1975 = vmul.f32 %v1895, 0.5
          %v1976 = vmul.f32 %v1896, 0.5
          %v1977 = vmul.f32 %v1897, 0.5
          %v1978 = vmul.f32 %v1898, 0.5
          %v1979 = vmul.f32 %v1899, 0.5
          %v1980 = vmul.f32 %v1900, 0.5
          %v1981 = vmul.f32 %v1901, 0.5
          %v1982 = vmul.f32 %v1902, 0.5
          %v1983 = vtanh.pop %v1903
          %v1984 = vtanh.pop %v1904
          %v1985 = vtanh.pop %v1905
          %v1986 = vtanh.pop %v1906
          %v1987 = vtanh.pop %v1907
          %v1988 = vtanh.pop %v1908
          %v1989 = vtanh.pop %v1909
          %v1990 = vtanh.pop %v1910
          %v1991 = vtanh.pop %v1911
          %v1992 = vtanh.pop %v1912
          %v1993 = vtanh.pop %v1913
          %v1994 = vtanh.pop %v1914
          %v1995 = vtanh.pop %v1915
          %v1996 = vtanh.pop %v1916
          %v1997 = vtanh.pop %v1917
          %v1998 = vtanh.pop %v1918
          %v1999 = vtanh.pop %v1919
          %v2000 = vtanh.pop %v1920
          %v2001 = vtanh.pop %v1921
          %v2002 = vtanh.pop %v1922
          %v2003 = vtanh.pop %v1923
          %v2004 = vtanh.pop %v1924
          %v2005 = vtanh.pop %v1925
          %v2006 = vtanh.pop %v1926
          %v2007 = vtanh.pop %v1927
          %v2008 = vtanh.pop %v1928
          %v2009 = vtanh.pop %v1929
          %v2010 = vtanh.pop %v1930
          %v2011 = vtanh.pop %v1931
          %v2012 = vtanh.pop %v1932
          %v2013 = vtanh.pop %v1933
          %v2014 = vtanh.pop %v1934
          %v2015 = vtanh.pop %v1935
          %v2016 = vtanh.pop %v1936
          %v2017 = vtanh.pop %v1937
          %v2018 = vtanh.pop %v1938
          %v2019 = vtanh.pop %v1939
          %v2020 = vtanh.pop %v1940
          %v2021 = vtanh.pop %v1941
          %v2022 = vtanh.pop %v1942
          %v2023 = vtanh.pop %v1943
          %v2024 = vtanh.pop %v1944
          %v2025 = vtanh.pop %v1945
          %v2026 = vtanh.pop %v1946
          %v2027 = vtanh.pop %v1947
          %v2028 = vtanh.pop %v1948
          %v2029 = vtanh.pop %v1949
          %v2030 = vtanh.pop %v1950
          %v2031 = vtanh.pop %v1951
          %v2032 = vtanh.pop %v1952
          %v2033 = vtanh.pop %v1953
          %v2034 = vtanh.pop %v1954
          %v2035 = vtanh.pop %v1955
          %v2036 = vtanh.pop %v1956
          %v2037 = vtanh.pop %v1957
          %v2038 = vtanh.pop %v1958
          %v2039 = vtanh.pop %v1959
          %v2040 = vtanh.pop %v1960
          %v2041 = vtanh.pop %v1961
          %v2042 = vtanh.pop %v1962
          %v2043 = vtanh.pop %v1963
          %v2044 = vtanh.pop %v1964
          %v2045 = vtanh.pop %v1965
          %v2046 = vtanh.pop %v1966
          %v2047 = vtanh.pop %v1967
          %v2048 = vtanh.pop %v1968
          %v2049 = vtanh.pop %v1969
          %v2050 = vtanh.pop %v1970
          %v2051 = vtanh.pop %v1971
          %v2052 = vtanh.pop %v1972
          %v2053 = vtanh.pop %v1973
          %v2054 = vtanh.pop %v1974
          %v2055 = vtanh.pop %v1975
          %v2056 = vtanh.pop %v1976
          %v2057 = vtanh.pop %v1977
          %v2058 = vtanh.pop %v1978
          %v2059 = vtanh.pop %v1979
          %v2060 = vtanh.pop %v1980
          %v2061 = vtanh.pop %v1981
          %v2062 = vtanh.pop %v1982
          %v2063 = vmul.f32 %v1983, 0.5
          %v2064 = vmul.f32 %v1984, 0.5
          %v2065 = vmul.f32 %v1985, 0.5
          %v2066 = vmul.f32 %v1986, 0.5
          %v2067 = vmul.f32 %v1987, 0.5
          %v2068 = vmul.f32 %v1988, 0.5
          %v2069 = vmul.f32 %v1989, 0.5
          %v2070 = vmul.f32 %v1990, 0.5
          %v2071 = vmul.f32 %v1991, 0.5
          %v2072 = vmul.f32 %v1992, 0.5
          %v2073 = vmul.f32 %v1993, 0.5
          %v2074 = vmul.f32 %v1994, 0.5
          %v2075 = vmul.f32 %v1995, 0.5
          %v2076 = vmul.f32 %v1996, 0.5
          %v2077 = vmul.f32 %v1997, 0.5
          %v2078 = vmul.f32 %v1998, 0.5
          %v2079 = vmul.f32 %v1999, 0.5
          %v2080 = vmul.f32 %v2000, 0.5
          %v2081 = vmul.f32 %v2001, 0.5
          %v2082 = vmul.f32 %v2002, 0.5
          %v2083 = vmul.f32 %v2003, 0.5
          %v2084 = vmul.f32 %v2004, 0.5
          %v2085 = vmul.f32 %v2005, 0.5
          %v2086 = vmul.f32 %v2006, 0.5
          %v2087 = vmul.f32 %v2007, 0.5
          %v2088 = vmul.f32 %v2008, 0.5
          %v2089 = vmul.f32 %v2009, 0.5
          %v2090 = vmul.f32 %v2010, 0.5
          %v2091 = vmul.f32 %v2011, 0.5
          %v2092 = vmul.f32 %v2012, 0.5
          %v2093 = vmul.f32 %v2013, 0.5
          %v2094 = vmul.f32 %v2014, 0.5
          %v2095 = vmul.f32 %v2015, 0.5
          %v2096 = vmul.f32 %v2016, 0.5
          %v2097 = vmul.f32 %v2017, 0.5
          %v2098 = vmul.f32 %v2018, 0.5
          %v2099 = vmul.f32 %v2019, 0.5
          %v2100 = vmul.f32 %v2020, 0.5
          %v2101 = vmul.f32 %v2021, 0.5
          %v2102 = vmul.f32 %v2022, 0.5
          %v2103 = vmul.f32 %v2023, 0.5
          %v2104 = vmul.f32 %v2024, 0.5
          %v2105 = vmul.f32 %v2025, 0.5
          %v2106 = vmul.f32 %v2026, 0.5
          %v2107 = vmul.f32 %v2027, 0.5
          %v2108 = vmul.f32 %v2028, 0.5
          %v2109 = vmul.f32 %v2029, 0.5
          %v2110 = vmul.f32 %v2030, 0.5
          %v2111 = vmul.f32 %v2031, 0.5
          %v2112 = vmul.f32 %v2032, 0.5
          %v2113 = vmul.f32 %v2033, 0.5
          %v2114 = vmul.f32 %v2034, 0.5
          %v2115 = vmul.f32 %v2035, 0.5
          %v2116 = vmul.f32 %v2036, 0.5
          %v2117 = vmul.f32 %v2037, 0.5
          %v2118 = vmul.f32 %v2038, 0.5
          %v2119 = vmul.f32 %v2039, 0.5
          %v2120 = vmul.f32 %v2040, 0.5
          %v2121 = vmul.f32 %v2041, 0.5
          %v2122 = vmul.f32 %v2042, 0.5
          %v2123 = vmul.f32 %v2043, 0.5
          %v2124 = vmul.f32 %v2044, 0.5
          %v2125 = vmul.f32 %v2045, 0.5
          %v2126 = vmul.f32 %v2046, 0.5
          %v2127 = vmul.f32 %v2047, 0.5
          %v2128 = vmul.f32 %v2048, 0.5
          %v2129 = vmul.f32 %v2049, 0.5
          %v2130 = vmul.f32 %v2050, 0.5
          %v2131 = vmul.f32 %v2051, 0.5
          %v2132 = vmul.f32 %v2052, 0.5
          %v2133 = vmul.f32 %v2053, 0.5
          %v2134 = vmul.f32 %v2054, 0.5
          %v2135 = vmul.f32 %v2055, 0.5
          %v2136 = vmul.f32 %v2056, 0.5
          %v2137 = vmul.f32 %v2057, 0.5
          %v2138 = vmul.f32 %v2058, 0.5
          %v2139 = vmul.f32 %v2059, 0.5
          %v2140 = vmul.f32 %v2060, 0.5
          %v2141 = vmul.f32 %v2061, 0.5
          %v2142 = vmul.f32 %v2062, 0.5
          %v2143 = vadd.f32 %v2063, 0.5
          %v2144 = vadd.f32 %v2064, 0.5
          %v2145 = vadd.f32 %v2065, 0.5
          %v2146 = vadd.f32 %v2066, 0.5
          %v2147 = vadd.f32 %v2067, 0.5
          %v2148 = vadd.f32 %v2068, 0.5
          %v2149 = vadd.f32 %v2069, 0.5
          %v2150 = vadd.f32 %v2070, 0.5
          %v2151 = vadd.f32 %v2071, 0.5
          %v2152 = vadd.f32 %v2072, 0.5
          %v2153 = vadd.f32 %v2073, 0.5
          %v2154 = vadd.f32 %v2074, 0.5
          %v2155 = vadd.f32 %v2075, 0.5
          %v2156 = vadd.f32 %v2076, 0.5
          %v2157 = vadd.f32 %v2077, 0.5
          %v2158 = vadd.f32 %v2078, 0.5
          %v2159 = vadd.f32 %v2079, 0.5
          %v2160 = vadd.f32 %v2080, 0.5
          %v2161 = vadd.f32 %v2081, 0.5
          %v2162 = vadd.f32 %v2082, 0.5
          %v2163 = vadd.f32 %v2083, 0.5
          %v2164 = vadd.f32 %v2084, 0.5
          %v2165 = vadd.f32 %v2085, 0.5
          %v2166 = vadd.f32 %v2086, 0.5
          %v2167 = vadd.f32 %v2087, 0.5
          %v2168 = vadd.f32 %v2088, 0.5
          %v2169 = vadd.f32 %v2089, 0.5
          %v2170 = vadd.f32 %v2090, 0.5
          %v2171 = vadd.f32 %v2091, 0.5
          %v2172 = vadd.f32 %v2092, 0.5
          %v2173 = vadd.f32 %v2093, 0.5
          %v2174 = vadd.f32 %v2094, 0.5
          %v2175 = vadd.f32 %v2095, 0.5
          %v2176 = vadd.f32 %v2096, 0.5
          %v2177 = vadd.f32 %v2097, 0.5
          %v2178 = vadd.f32 %v2098, 0.5
          %v2179 = vadd.f32 %v2099, 0.5
          %v2180 = vadd.f32 %v2100, 0.5
          %v2181 = vadd.f32 %v2101, 0.5
          %v2182 = vadd.f32 %v2102, 0.5
          %v2183 = vadd.f32 %v2103, 0.5
          %v2184 = vadd.f32 %v2104, 0.5
          %v2185 = vadd.f32 %v2105, 0.5
          %v2186 = vadd.f32 %v2106, 0.5
          %v2187 = vadd.f32 %v2107, 0.5
          %v2188 = vadd.f32 %v2108, 0.5
          %v2189 = vadd.f32 %v2109, 0.5
          %v2190 = vadd.f32 %v2110, 0.5
          %v2191 = vadd.f32 %v2111, 0.5
          %v2192 = vadd.f32 %v2112, 0.5
          %v2193 = vadd.f32 %v2113, 0.5
          %v2194 = vadd.f32 %v2114, 0.5
          %v2195 = vadd.f32 %v2115, 0.5
          %v2196 = vadd.f32 %v2116, 0.5
          %v2197 = vadd.f32 %v2117, 0.5
          %v2198 = vadd.f32 %v2118, 0.5
          %v2199 = vadd.f32 %v2119, 0.5
          %v2200 = vadd.f32 %v2120, 0.5
          %v2201 = vadd.f32 %v2121, 0.5
          %v2202 = vadd.f32 %v2122, 0.5
          %v2203 = vadd.f32 %v2123, 0.5
          %v2204 = vadd.f32 %v2124, 0.5
          %v2205 = vadd.f32 %v2125, 0.5
          %v2206 = vadd.f32 %v2126, 0.5
          %v2207 = vadd.f32 %v2127, 0.5
          %v2208 = vadd.f32 %v2128, 0.5
          %v2209 = vadd.f32 %v2129, 0.5
          %v2210 = vadd.f32 %v2130, 0.5
          %v2211 = vadd.f32 %v2131, 0.5
          %v2212 = vadd.f32 %v2132, 0.5
          %v2213 = vadd.f32 %v2133, 0.5
          %v2214 = vadd.f32 %v2134, 0.5
          %v2215 = vadd.f32 %v2135, 0.5
          %v2216 = vadd.f32 %v2136, 0.5
          %v2217 = vadd.f32 %v2137, 0.5
          %v2218 = vadd.f32 %v2138, 0.5
          %v2219 = vadd.f32 %v2139, 0.5
          %v2220 = vadd.f32 %v2140, 0.5
          %v2221 = vadd.f32 %v2141, 0.5
          %v2222 = vadd.f32 %v2142, 0.5
          %v2223 = vld [vmem:[#allocation6] sm:$0xff]
          %v2224 = vld [vmem:[#allocation6 + $0x8] sm:$0xff]
          %v2225 = vld [vmem:[#allocation6 + $0x10] sm:$0xff]
          %v2226 = vld [vmem:[#allocation6 + $0x18] sm:$0xff]
          %v2227 = vld [vmem:[#allocation6 + $0x20] sm:$0xff]
          %v2228 = vld [vmem:[#allocation6 + $0x28] sm:$0xff]
          %v2229 = vld [vmem:[#allocation6 + $0x30] sm:$0xff]
          %v2230 = vld [vmem:[#allocation6 + $0x38] sm:$0xff]
          %v2231 = vld [vmem:[#allocation6 + $0x40] sm:$0xff]
          %v2232 = vld [vmem:[#allocation6 + $0x48] sm:$0xff]
          %v2233 = vld [vmem:[#allocation6 + $0x50] sm:$0xff]
          %v2234 = vld [vmem:[#allocation6 + $0x58] sm:$0xff]
          %v2235 = vld [vmem:[#allocation6 + $0x60] sm:$0xff]
          %v2236 = vld [vmem:[#allocation6 + $0x68] sm:$0xff]
          %v2237 = vld [vmem:[#allocation6 + $0x70] sm:$0xff]
          %v2238 = vld [vmem:[#allocation6 + $0x78] sm:$0xff]
          %v2239 = vld [vmem:[#allocation6 + $0x80] sm:$0xff]
          %v2240 = vld [vmem:[#allocation6 + $0x88] sm:$0xff]
          %v2241 = vld [vmem:[#allocation6 + $0x90] sm:$0xff]
          %v2242 = vld [vmem:[#allocation6 + $0x98] sm:$0xff]
          %v2243 = vld [vmem:[#allocation6 + $0xa0] sm:$0xff]
          %v2244 = vld [vmem:[#allocation6 + $0xa8] sm:$0xff]
          %v2245 = vld [vmem:[#allocation6 + $0xb0] sm:$0xff]
          %v2246 = vld [vmem:[#allocation6 + $0xb8] sm:$0xff]
          %v2247 = vld [vmem:[#allocation6 + $0xc0] sm:$0xff]
          %v2248 = vld [vmem:[#allocation6 + $0xc8] sm:$0xff]
          %v2249 = vld [vmem:[#allocation6 + $0xd0] sm:$0xff]
          %v2250 = vld [vmem:[#allocation6 + $0xd8] sm:$0xff]
          %v2251 = vld [vmem:[#allocation6 + $0xe0] sm:$0xff]
          %v2252 = vld [vmem:[#allocation6 + $0xe8] sm:$0xff]
          %v2253 = vld [vmem:[#allocation6 + $0xf0] sm:$0xff]
          %v2254 = vld [vmem:[#allocation6 + $0xf8] sm:$0xff]
          %v2255 = vld [vmem:[#allocation6 + $0x100] sm:$0xff]
          %v2256 = vld [vmem:[#allocation6 + $0x108] sm:$0xff]
          %v2257 = vld [vmem:[#allocation6 + $0x110] sm:$0xff]
          %v2258 = vld [vmem:[#allocation6 + $0x118] sm:$0xff]
          %v2259 = vld [vmem:[#allocation6 + $0x120] sm:$0xff]
          %v2260 = vld [vmem:[#allocation6 + $0x128] sm:$0xff]
          %v2261 = vld [vmem:[#allocation6 + $0x130] sm:$0xff]
          %v2262 = vld [vmem:[#allocation6 + $0x138] sm:$0xff]
          %v2263 = vld [vmem:[#allocation6 + $0x140] sm:$0xff]
          %v2264 = vld [vmem:[#allocation6 + $0x148] sm:$0xff]
          %v2265 = vld [vmem:[#allocation6 + $0x150] sm:$0xff]
          %v2266 = vld [vmem:[#allocation6 + $0x158] sm:$0xff]
          %v2267 = vld [vmem:[#allocation6 + $0x160] sm:$0xff]
          %v2268 = vld [vmem:[#allocation6 + $0x168] sm:$0xff]
          %v2269 = vld [vmem:[#allocation6 + $0x170] sm:$0xff]
          %v2270 = vld [vmem:[#allocation6 + $0x178] sm:$0xff]
          %v2271 = vld [vmem:[#allocation6 + $0x180] sm:$0xff]
          %v2272 = vld [vmem:[#allocation6 + $0x188] sm:$0xff]
          %v2273 = vld [vmem:[#allocation6 + $0x190] sm:$0xff]
          %v2274 = vld [vmem:[#allocation6 + $0x198] sm:$0xff]
          %v2275 = vld [vmem:[#allocation6 + $0x1a0] sm:$0xff]
          %v2276 = vld [vmem:[#allocation6 + $0x1a8] sm:$0xff]
          %v2277 = vld [vmem:[#allocation6 + $0x1b0] sm:$0xff]
          %v2278 = vld [vmem:[#allocation6 + $0x1b8] sm:$0xff]
          %v2279 = vld [vmem:[#allocation6 + $0x1c0] sm:$0xff]
          %v2280 = vld [vmem:[#allocation6 + $0x1c8] sm:$0xff]
          %v2281 = vld [vmem:[#allocation6 + $0x1d0] sm:$0xff]
          %v2282 = vld [vmem:[#allocation6 + $0x1d8] sm:$0xff]
          %v2283 = vld [vmem:[#allocation6 + $0x1e0] sm:$0xff]
          %v2284 = vld [vmem:[#allocation6 + $0x1e8] sm:$0xff]
          %v2285 = vld [vmem:[#allocation6 + $0x1f0] sm:$0xff]
          %v2286 = vld [vmem:[#allocation6 + $0x1f8] sm:$0xff]
          %v2287 = vld [vmem:[#allocation6 + $0x200] sm:$0xff]
          %v2288 = vld [vmem:[#allocation6 + $0x208] sm:$0xff]
          %v2289 = vld [vmem:[#allocation6 + $0x210] sm:$0xff]
          %v2290 = vld [vmem:[#allocation6 + $0x218] sm:$0xff]
          %v2291 = vld [vmem:[#allocation6 + $0x220] sm:$0xff]
          %v2292 = vld [vmem:[#allocation6 + $0x228] sm:$0xff]
          %v2293 = vld [vmem:[#allocation6 + $0x230] sm:$0xff]
          %v2294 = vld [vmem:[#allocation6 + $0x238] sm:$0xff]
          %v2295 = vld [vmem:[#allocation6 + $0x240] sm:$0xff]
          %v2296 = vld [vmem:[#allocation6 + $0x248] sm:$0xff]
          %v2297 = vld [vmem:[#allocation6 + $0x250] sm:$0xff]
          %v2298 = vld [vmem:[#allocation6 + $0x258] sm:$0xff]
          %v2299 = vld [vmem:[#allocation6 + $0x260] sm:$0xff]
          %v2300 = vld [vmem:[#allocation6 + $0x268] sm:$0xff]
          %v2301 = vld [vmem:[#allocation6 + $0x270] sm:$0xff]
          %v2302 = vld [vmem:[#allocation6 + $0x278] sm:$0xff]
          %v2303 = vsub.f32 1.0, %v2143
          %v2304 = vsub.f32 1.0, %v2144
          %v2305 = vsub.f32 1.0, %v2145
          %v2306 = vsub.f32 1.0, %v2146
          %v2307 = vsub.f32 1.0, %v2147
          %v2308 = vsub.f32 1.0, %v2148
          %v2309 = vsub.f32 1.0, %v2149
          %v2310 = vsub.f32 1.0, %v2150
          %v2311 = vsub.f32 1.0, %v2151
          %v2312 = vsub.f32 1.0, %v2152
          %v2313 = vsub.f32 1.0, %v2153
          %v2314 = vsub.f32 1.0, %v2154
          %v2315 = vsub.f32 1.0, %v2155
          %v2316 = vsub.f32 1.0, %v2156
          %v2317 = vsub.f32 1.0, %v2157
          %v2318 = vsub.f32 1.0, %v2158
          %v2319 = vsub.f32 1.0, %v2159
          %v2320 = vsub.f32 1.0, %v2160
          %v2321 = vsub.f32 1.0, %v2161
          %v2322 = vsub.f32 1.0, %v2162
          %v2323 = vsub.f32 1.0, %v2163
          %v2324 = vsub.f32 1.0, %v2164
          %v2325 = vsub.f32 1.0, %v2165
          %v2326 = vsub.f32 1.0, %v2166
          %v2327 = vsub.f32 1.0, %v2167
          %v2328 = vsub.f32 1.0, %v2168
          %v2329 = vsub.f32 1.0, %v2169
          %v2330 = vsub.f32 1.0, %v2170
          %v2331 = vsub.f32 1.0, %v2171
          %v2332 = vsub.f32 1.0, %v2172
          %v2333 = vsub.f32 1.0, %v2173
          %v2334 = vsub.f32 1.0, %v2174
          %v2335 = vsub.f32 1.0, %v2175
          %v2336 = vsub.f32 1.0, %v2176
          %v2337 = vsub.f32 1.0, %v2177
          %v2338 = vsub.f32 1.0, %v2178
          %v2339 = vsub.f32 1.0, %v2179
          %v2340 = vsub.f32 1.0, %v2180
          %v2341 = vsub.f32 1.0, %v2181
          %v2342 = vsub.f32 1.0, %v2182
          %v2343 = vsub.f32 1.0, %v2183
          %v2344 = vsub.f32 1.0, %v2184
          %v2345 = vsub.f32 1.0, %v2185
          %v2346 = vsub.f32 1.0, %v2186
          %v2347 = vsub.f32 1.0, %v2187
          %v2348 = vsub.f32 1.0, %v2188
          %v2349 = vsub.f32 1.0, %v2189
          %v2350 = vsub.f32 1.0, %v2190
          %v2351 = vsub.f32 1.0, %v2191
          %v2352 = vsub.f32 1.0, %v2192
          %v2353 = vsub.f32 1.0, %v2193
          %v2354 = vsub.f32 1.0, %v2194
          %v2355 = vsub.f32 1.0, %v2195
          %v2356 = vsub.f32 1.0, %v2196
          %v2357 = vsub.f32 1.0, %v2197
          %v2358 = vsub.f32 1.0, %v2198
          %v2359 = vsub.f32 1.0, %v2199
          %v2360 = vsub.f32 1.0, %v2200
          %v2361 = vsub.f32 1.0, %v2201
          %v2362 = vsub.f32 1.0, %v2202
          %v2363 = vsub.f32 1.0, %v2203
          %v2364 = vsub.f32 1.0, %v2204
          %v2365 = vsub.f32 1.0, %v2205
          %v2366 = vsub.f32 1.0, %v2206
          %v2367 = vsub.f32 1.0, %v2207
          %v2368 = vsub.f32 1.0, %v2208
          %v2369 = vsub.f32 1.0, %v2209
          %v2370 = vsub.f32 1.0, %v2210
          %v2371 = vsub.f32 1.0, %v2211
          %v2372 = vsub.f32 1.0, %v2212
          %v2373 = vsub.f32 1.0, %v2213
          %v2374 = vsub.f32 1.0, %v2214
          %v2375 = vsub.f32 1.0, %v2215
          %v2376 = vsub.f32 1.0, %v2216
          %v2377 = vsub.f32 1.0, %v2217
          %v2378 = vsub.f32 1.0, %v2218
          %v2379 = vsub.f32 1.0, %v2219
          %v2380 = vsub.f32 1.0, %v2220
          %v2381 = vsub.f32 1.0, %v2221
          %v2382 = vsub.f32 1.0, %v2222
          %v2383 = vadd.f32 %v2303, 0.05
          %v2384 = vadd.f32 %v2304, 0.05
          %v2385 = vadd.f32 %v2305, 0.05
          %v2386 = vadd.f32 %v2306, 0.05
          %v2387 = vadd.f32 %v2307, 0.05
          %v2388 = vadd.f32 %v2308, 0.05
          %v2389 = vadd.f32 %v2309, 0.05
          %v2390 = vadd.f32 %v2310, 0.05
          %v2391 = vadd.f32 %v2311, 0.05
          %v2392 = vadd.f32 %v2312, 0.05
          %v2393 = vadd.f32 %v2313, 0.05
          %v2394 = vadd.f32 %v2314, 0.05
          %v2395 = vadd.f32 %v2315, 0.05
          %v2396 = vadd.f32 %v2316, 0.05
          %v2397 = vadd.f32 %v2317, 0.05
          %v2398 = vadd.f32 %v2318, 0.05
          %v2399 = vadd.f32 %v2319, 0.05
          %v2400 = vadd.f32 %v2320, 0.05
          %v2401 = vadd.f32 %v2321, 0.05
          %v2402 = vadd.f32 %v2322, 0.05
          %v2403 = vadd.f32 %v2323, 0.05
          %v2404 = vadd.f32 %v2324, 0.05
          %v2405 = vadd.f32 %v2325, 0.05
          %v2406 = vadd.f32 %v2326, 0.05
          %v2407 = vadd.f32 %v2327, 0.05
          %v2408 = vadd.f32 %v2328, 0.05
          %v2409 = vadd.f32 %v2329, 0.05
          %v2410 = vadd.f32 %v2330, 0.05
          %v2411 = vadd.f32 %v2331, 0.05
          %v2412 = vadd.f32 %v2332, 0.05
          %v2413 = vadd.f32 %v2333, 0.05
          %v2414 = vadd.f32 %v2334, 0.05
          %v2415 = vadd.f32 %v2335, 0.05
          %v2416 = vadd.f32 %v2336, 0.05
          %v2417 = vadd.f32 %v2337, 0.05
          %v2418 = vadd.f32 %v2338, 0.05
          %v2419 = vadd.f32 %v2339, 0.05
          %v2420 = vadd.f32 %v2340, 0.05
          %v2421 = vadd.f32 %v2341, 0.05
          %v2422 = vadd.f32 %v2342, 0.05
          %v2423 = vadd.f32 %v2343, 0.05
          %v2424 = vadd.f32 %v2344, 0.05
          %v2425 = vadd.f32 %v2345, 0.05
          %v2426 = vadd.f32 %v2346, 0.05
          %v2427 = vadd.f32 %v2347, 0.05
          %v2428 = vadd.f32 %v2348, 0.05
          %v2429 = vadd.f32 %v2349, 0.05
          %v2430 = vadd.f32 %v2350, 0.05
          %v2431 = vadd.f32 %v2351, 0.05
          %v2432 = vadd.f32 %v2352, 0.05
          %v2433 = vadd.f32 %v2353, 0.05
          %v2434 = vadd.f32 %v2354, 0.05
          %v2435 = vadd.f32 %v2355, 0.05
          %v2436 = vadd.f32 %v2356, 0.05
          %v2437 = vadd.f32 %v2357, 0.05
          %v2438 = vadd.f32 %v2358, 0.05
          %v2439 = vadd.f32 %v2359, 0.05
          %v2440 = vadd.f32 %v2360, 0.05
          %v2441 = vadd.f32 %v2361, 0.05
          %v2442 = vadd.f32 %v2362, 0.05
          %v2443 = vadd.f32 %v2363, 0.05
          %v2444 = vadd.f32 %v2364, 0.05
          %v2445 = vadd.f32 %v2365, 0.05
          %v2446 = vadd.f32 %v2366, 0.05
          %v2447 = vadd.f32 %v2367, 0.05
          %v2448 = vadd.f32 %v2368, 0.05
          %v2449 = vadd.f32 %v2369, 0.05
          %v2450 = vadd.f32 %v2370, 0.05
          %v2451 = vadd.f32 %v2371, 0.05
          %v2452 = vadd.f32 %v2372, 0.05
          %v2453 = vadd.f32 %v2373, 0.05
          %v2454 = vadd.f32 %v2374, 0.05
          %v2455 = vadd.f32 %v2375, 0.05
          %v2456 = vadd.f32 %v2376, 0.05
          %v2457 = vadd.f32 %v2377, 0.05
          %v2458 = vadd.f32 %v2378, 0.05
          %v2459 = vadd.f32 %v2379, 0.05
          %v2460 = vadd.f32 %v2380, 0.05
          %v2461 = vadd.f32 %v2381, 0.05
          %v2462 = vadd.f32 %v2382, 0.05
          %v2463 = vmin.f32 %v2383, 1.0
          %v2464 = vmin.f32 %v2384, 1.0
          %v2465 = vmin.f32 %v2385, 1.0
          %v2466 = vmin.f32 %v2386, 1.0
          %v2467 = vmin.f32 %v2387, 1.0
          %v2468 = vmin.f32 %v2388, 1.0
          %v2469 = vmin.f32 %v2389, 1.0
          %v2470 = vmin.f32 %v2390, 1.0
          %v2471 = vmin.f32 %v2391, 1.0
          %v2472 = vmin.f32 %v2392, 1.0
          %v2473 = vmin.f32 %v2393, 1.0
          %v2474 = vmin.f32 %v2394, 1.0
          %v2475 = vmin.f32 %v2395, 1.0
          %v2476 = vmin.f32 %v2396, 1.0
          %v2477 = vmin.f32 %v2397, 1.0
          %v2478 = vmin.f32 %v2398, 1.0
          %v2479 = vmin.f32 %v2399, 1.0
          %v2480 = vmin.f32 %v2400, 1.0
          %v2481 = vmin.f32 %v2401, 1.0
          %v2482 = vmin.f32 %v2402, 1.0
          %v2483 = vmin.f32 %v2403, 1.0
          %v2484 = vmin.f32 %v2404, 1.0
          %v2485 = vmin.f32 %v2405, 1.0
          %v2486 = vmin.f32 %v2406, 1.0
          %v2487 = vmin.f32 %v2407, 1.0
          %v2488 = vmin.f32 %v2408, 1.0
          %v2489 = vmin.f32 %v2409, 1.0
          %v2490 = vmin.f32 %v2410, 1.0
          %v2491 = vmin.f32 %v2411, 1.0
          %v2492 = vmin.f32 %v2412, 1.0
          %v2493 = vmin.f32 %v2413, 1.0
          %v2494 = vmin.f32 %v2414, 1.0
          %v2495 = vmin.f32 %v2415, 1.0
          %v2496 = vmin.f32 %v2416, 1.0
          %v2497 = vmin.f32 %v2417, 1.0
          %v2498 = vmin.f32 %v2418, 1.0
          %v2499 = vmin.f32 %v2419, 1.0
          %v2500 = vmin.f32 %v2420, 1.0
          %v2501 = vmin.f32 %v2421, 1.0
          %v2502 = vmin.f32 %v2422, 1.0
          %v2503 = vmin.f32 %v2423, 1.0
          %v2504 = vmin.f32 %v2424, 1.0
          %v2505 = vmin.f32 %v2425, 1.0
          %v2506 = vmin.f32 %v2426, 1.0
          %v2507 = vmin.f32 %v2427, 1.0
          %v2508 = vmin.f32 %v2428, 1.0
          %v2509 = vmin.f32 %v2429, 1.0
          %v2510 = vmin.f32 %v2430, 1.0
          %v2511 = vmin.f32 %v2431, 1.0
          %v2512 = vmin.f32 %v2432, 1.0
          %v2513 = vmin.f32 %v2433, 1.0
          %v2514 = vmin.f32 %v2434, 1.0
          %v2515 = vmin.f32 %v2435, 1.0
          %v2516 = vmin.f32 %v2436, 1.0
          %v2517 = vmin.f32 %v2437, 1.0
          %v2518 = vmin.f32 %v2438, 1.0
          %v2519 = vmin.f32 %v2439, 1.0
          %v2520 = vmin.f32 %v2440, 1.0
          %v2521 = vmin.f32 %v2441, 1.0
          %v2522 = vmin.f32 %v2442, 1.0
          %v2523 = vmin.f32 %v2443, 1.0
          %v2524 = vmin.f32 %v2444, 1.0
          %v2525 = vmin.f32 %v2445, 1.0
          %v2526 = vmin.f32 %v2446, 1.0
          %v2527 = vmin.f32 %v2447, 1.0
          %v2528 = vmin.f32 %v2448, 1.0
          %v2529 = vmin.f32 %v2449, 1.0
          %v2530 = vmin.f32 %v2450, 1.0
          %v2531 = vmin.f32 %v2451, 1.0
          %v2532 = vmin.f32 %v2452, 1.0
          %v2533 = vmin.f32 %v2453, 1.0
          %v2534 = vmin.f32 %v2454, 1.0
          %v2535 = vmin.f32 %v2455, 1.0
          %v2536 = vmin.f32 %v2456, 1.0
          %v2537 = vmin.f32 %v2457, 1.0
          %v2538 = vmin.f32 %v2458, 1.0
          %v2539 = vmin.f32 %v2459, 1.0
          %v2540 = vmin.f32 %v2460, 1.0
          %v2541 = vmin.f32 %v2461, 1.0
          %v2542 = vmin.f32 %v2462, 1.0
          %v2543 = vsub.f32 1.0, %v2223
          %v2544 = vsub.f32 1.0, %v2224
          %v2545 = vsub.f32 1.0, %v2225
          %v2546 = vsub.f32 1.0, %v2226
          %v2547 = vsub.f32 1.0, %v2227
          %v2548 = vsub.f32 1.0, %v2228
          %v2549 = vsub.f32 1.0, %v2229
          %v2550 = vsub.f32 1.0, %v2230
          %v2551 = vsub.f32 1.0, %v2231
          %v2552 = vsub.f32 1.0, %v2232
          %v2553 = vsub.f32 1.0, %v2233
          %v2554 = vsub.f32 1.0, %v2234
          %v2555 = vsub.f32 1.0, %v2235
          %v2556 = vsub.f32 1.0, %v2236
          %v2557 = vsub.f32 1.0, %v2237
          %v2558 = vsub.f32 1.0, %v2238
          %v2559 = vsub.f32 1.0, %v2239
          %v2560 = vsub.f32 1.0, %v2240
          %v2561 = vsub.f32 1.0, %v2241
          %v2562 = vsub.f32 1.0, %v2242
          %v2563 = vsub.f32 1.0, %v2243
          %v2564 = vsub.f32 1.0, %v2244
          %v2565 = vsub.f32 1.0, %v2245
          %v2566 = vsub.f32 1.0, %v2246
          %v2567 = vsub.f32 1.0, %v2247
          %v2568 = vsub.f32 1.0, %v2248
          %v2569 = vsub.f32 1.0, %v2249
          %v2570 = vsub.f32 1.0, %v2250
          %v2571 = vsub.f32 1.0, %v2251
          %v2572 = vsub.f32 1.0, %v2252
          %v2573 = vsub.f32 1.0, %v2253
          %v2574 = vsub.f32 1.0, %v2254
          %v2575 = vsub.f32 1.0, %v2255
          %v2576 = vsub.f32 1.0, %v2256
          %v2577 = vsub.f32 1.0, %v2257
          %v2578 = vsub.f32 1.0, %v2258
          %v2579 = vsub.f32 1.0, %v2259
          %v2580 = vsub.f32 1.0, %v2260
          %v2581 = vsub.f32 1.0, %v2261
          %v2582 = vsub.f32 1.0, %v2262
          %v2583 = vsub.f32 1.0, %v2263
          %v2584 = vsub.f32 1.0, %v2264
          %v2585 = vsub.f32 1.0, %v2265
          %v2586 = vsub.f32 1.0, %v2266
          %v2587 = vsub.f32 1.0, %v2267
          %v2588 = vsub.f32 1.0, %v2268
          %v2589 = vsub.f32 1.0, %v2269
          %v2590 = vsub.f32 1.0, %v2270
          %v2591 = vsub.f32 1.0, %v2271
          %v2592 = vsub.f32 1.0, %v2272
          %v2593 = vsub.f32 1.0, %v2273
          %v2594 = vsub.f32 1.0, %v2274
          %v2595 = vsub.f32 1.0, %v2275
          %v2596 = vsub.f32 1.0, %v2276
          %v2597 = vsub.f32 1.0, %v2277
          %v2598 = vsub.f32 1.0, %v2278
          %v2599 = vsub.f32 1.0, %v2279
          %v2600 = vsub.f32 1.0, %v2280
          %v2601 = vsub.f32 1.0, %v2281
          %v2602 = vsub.f32 1.0, %v2282
          %v2603 = vsub.f32 1.0, %v2283
          %v2604 = vsub.f32 1.0, %v2284
          %v2605 = vsub.f32 1.0, %v2285
          %v2606 = vsub.f32 1.0, %v2286
          %v2607 = vsub.f32 1.0, %v2287
          %v2608 = vsub.f32 1.0, %v2288
          %v2609 = vsub.f32 1.0, %v2289
          %v2610 = vsub.f32 1.0, %v2290
          %v2611 = vsub.f32 1.0, %v2291
          %v2612 = vsub.f32 1.0, %v2292
          %v2613 = vsub.f32 1.0, %v2293
          %v2614 = vsub.f32 1.0, %v2294
          %v2615 = vsub.f32 1.0, %v2295
          %v2616 = vsub.f32 1.0, %v2296
          %v2617 = vsub.f32 1.0, %v2297
          %v2618 = vsub.f32 1.0, %v2298
          %v2619 = vsub.f32 1.0, %v2299
          %v2620 = vsub.f32 1.0, %v2300
          %v2621 = vsub.f32 1.0, %v2301
          %v2622 = vsub.f32 1.0, %v2302
          %s2623 = sld [smem:[#allocation2 + $0x6]]
          %v2624 = vmax.f32 %v2143, 1e-08
          %v2625 = vmax.f32 %v2144, 1e-08
          %v2626 = vmax.f32 %v2145, 1e-08
          %v2627 = vmax.f32 %v2146, 1e-08
          %v2628 = vmax.f32 %v2147, 1e-08
          %v2629 = vmax.f32 %v2148, 1e-08
          %v2630 = vmax.f32 %v2149, 1e-08
          %v2631 = vmax.f32 %v2150, 1e-08
          %v2632 = vmax.f32 %v2151, 1e-08
          %v2633 = vmax.f32 %v2152, 1e-08
          %v2634 = vmax.f32 %v2153, 1e-08
          %v2635 = vmax.f32 %v2154, 1e-08
          %v2636 = vmax.f32 %v2155, 1e-08
          %v2637 = vmax.f32 %v2156, 1e-08
          %v2638 = vmax.f32 %v2157, 1e-08
          %v2639 = vmax.f32 %v2158, 1e-08
          %v2640 = vmax.f32 %v2159, 1e-08
          %v2641 = vmax.f32 %v2160, 1e-08
          %v2642 = vmax.f32 %v2161, 1e-08
          %v2643 = vmax.f32 %v2162, 1e-08
          %v2644 = vmax.f32 %v2163, 1e-08
          %v2645 = vmax.f32 %v2164, 1e-08
          %v2646 = vmax.f32 %v2165, 1e-08
          %v2647 = vmax.f32 %v2166, 1e-08
          %v2648 = vmax.f32 %v2167, 1e-08
          %v2649 = vmax.f32 %v2168, 1e-08
          %v2650 = vmax.f32 %v2169, 1e-08
          %v2651 = vmax.f32 %v2170, 1e-08
          %v2652 = vmax.f32 %v2171, 1e-08
          %v2653 = vmax.f32 %v2172, 1e-08
          %v2654 = vmax.f32 %v2173, 1e-08
          %v2655 = vmax.f32 %v2174, 1e-08
          %v2656 = vmax.f32 %v2175, 1e-08
          %v2657 = vmax.f32 %v2176, 1e-08
          %v2658 = vmax.f32 %v2177, 1e-08
          %v2659 = vmax.f32 %v2178, 1e-08
          %v2660 = vmax.f32 %v2179, 1e-08
          %v2661 = vmax.f32 %v2180, 1e-08
          %v2662 = vmax.f32 %v2181, 1e-08
          %v2663 = vmax.f32 %v2182, 1e-08
          %v2664 = vmax.f32 %v2183, 1e-08
          %v2665 = vmax.f32 %v2184, 1e-08
          %v2666 = vmax.f32 %v2185, 1e-08
          %v2667 = vmax.f32 %v2186, 1e-08
          %v2668 = vmax.f32 %v2187, 1e-08
          %v2669 = vmax.f32 %v2188, 1e-08
          %v2670 = vmax.f32 %v2189, 1e-08
          %v2671 = vmax.f32 %v2190, 1e-08
          %v2672 = vmax.f32 %v2191, 1e-08
          %v2673 = vmax.f32 %v2192, 1e-08
          %v2674 = vmax.f32 %v2193, 1e-08
          %v2675 = vmax.f32 %v2194, 1e-08
          %v2676 = vmax.f32 %v2195, 1e-08
          %v2677 = vmax.f32 %v2196, 1e-08
          %v2678 = vmax.f32 %v2197, 1e-08
          %v2679 = vmax.f32 %v2198, 1e-08
          %v2680 = vmax.f32 %v2199, 1e-08
          %v2681 = vmax.f32 %v2200, 1e-08
          %v2682 = vmax.f32 %v2201, 1e-08
          %v2683 = vmax.f32 %v2202, 1e-08
          %v2684 = vmax.f32 %v2203, 1e-08
          %v2685 = vmax.f32 %v2204, 1e-08
          %v2686 = vmax.f32 %v2205, 1e-08
          %v2687 = vmax.f32 %v2206, 1e-08
          %v2688 = vmax.f32 %v2207, 1e-08
          %v2689 = vmax.f32 %v2208, 1e-08
          %v2690 = vmax.f32 %v2209, 1e-08
          %v2691 = vmax.f32 %v2210, 1e-08
          %v2692 = vmax.f32 %v2211, 1e-08
          %v2693 = vmax.f32 %v2212, 1e-08
          %v2694 = vmax.f32 %v2213, 1e-08
          %v2695 = vmax.f32 %v2214, 1e-08
          %v2696 = vmax.f32 %v2215, 1e-08
          %v2697 = vmax.f32 %v2216, 1e-08
          %v2698 = vmax.f32 %v2217, 1e-08
          %v2699 = vmax.f32 %v2218, 1e-08
          %v2700 = vmax.f32 %v2219, 1e-08
          %v2701 = vmax.f32 %v2220, 1e-08
          %v2702 = vmax.f32 %v2221, 1e-08
          %v2703 = vmax.f32 %v2222, 1e-08
          %v2704 = vlog2.pop %v2624
          %v2705 = vmul.f32 %v2704, 0.6931472
          %v2706 = vlog2.pop %v2625
          %v2707 = vmul.f32 %v2706, 0.6931472
          %v2708 = vlog2.pop %v2626
          %v2709 = vmul.f32 %v2708, 0.6931472
          %v2710 = vlog2.pop %v2627
          %v2711 = vmul.f32 %v2710, 0.6931472
          %v2712 = vlog2.pop %v2628
          %v2713 = vmul.f32 %v2712, 0.6931472
          %v2714 = vlog2.pop %v2629
          %v2715 = vmul.f32 %v2714, 0.6931472
          %v2716 = vlog2.pop %v2630
          %v2717 = vmul.f32 %v2716, 0.6931472
          %v2718 = vlog2.pop %v2631
          %v2719 = vmul.f32 %v2718, 0.6931472
          %v2720 = vlog2.pop %v2632
          %v2721 = vmul.f32 %v2720, 0.6931472
          %v2722 = vlog2.pop %v2633
          %v2723 = vmul.f32 %v2722, 0.6931472
          %v2724 = vlog2.pop %v2634
          %v2725 = vmul.f32 %v2724, 0.6931472
          %v2726 = vlog2.pop %v2635
          %v2727 = vmul.f32 %v2726, 0.6931472
          %v2728 = vlog2.pop %v2636
          %v2729 = vmul.f32 %v2728, 0.6931472
          %v2730 = vlog2.pop %v2637
          %v2731 = vmul.f32 %v2730, 0.6931472
          %v2732 = vlog2.pop %v2638
          %v2733 = vmul.f32 %v2732, 0.6931472
          %v2734 = vlog2.pop %v2639
          %v2735 = vmul.f32 %v2734, 0.6931472
          %v2736 = vlog2.pop %v2640
          %v2737 = vmul.f32 %v2736, 0.6931472
          %v2738 = vlog2.pop %v2641
          %v2739 = vmul.f32 %v2738, 0.6931472
          %v2740 = vlog2.pop %v2642
          %v2741 = vmul.f32 %v2740, 0.6931472
          %v2742 = vlog2.pop %v2643
          %v2743 = vmul.f32 %v2742, 0.6931472
          %v2744 = vlog2.pop %v2644
          %v2745 = vmul.f32 %v2744, 0.6931472
          %v2746 = vlog2.pop %v2645
          %v2747 = vmul.f32 %v2746, 0.6931472
          %v2748 = vlog2.pop %v2646
          %v2749 = vmul.f32 %v2748, 0.6931472
          %v2750 = vlog2.pop %v2647
          %v2751 = vmul.f32 %v2750, 0.6931472
          %v2752 = vlog2.pop %v2648
          %v2753 = vmul.f32 %v2752, 0.6931472
          %v2754 = vlog2.pop %v2649
          %v2755 = vmul.f32 %v2754, 0.6931472
          %v2756 = vlog2.pop %v2650
          %v2757 = vmul.f32 %v2756, 0.6931472
          %v2758 = vlog2.pop %v2651
          %v2759 = vmul.f32 %v2758, 0.6931472
          %v2760 = vlog2.pop %v2652
          %v2761 = vmul.f32 %v2760, 0.6931472
          %v2762 = vlog2.pop %v2653
          %v2763 = vmul.f32 %v2762, 0.6931472
          %v2764 = vlog2.pop %v2654
          %v2765 = vmul.f32 %v2764, 0.6931472
          %v2766 = vlog2.pop %v2655
          %v2767 = vmul.f32 %v2766, 0.6931472
          %v2768 = vlog2.pop %v2656
          %v2769 = vmul.f32 %v2768, 0.6931472
          %v2770 = vlog2.pop %v2657
          %v2771 = vmul.f32 %v2770, 0.6931472
          %v2772 = vlog2.pop %v2658
          %v2773 = vmul.f32 %v2772, 0.6931472
          %v2774 = vlog2.pop %v2659
          %v2775 = vmul.f32 %v2774, 0.6931472
          %v2776 = vlog2.pop %v2660
          %v2777 = vmul.f32 %v2776, 0.6931472
          %v2778 = vlog2.pop %v2661
          %v2779 = vmul.f32 %v2778, 0.6931472
          %v2780 = vlog2.pop %v2662
          %v2781 = vmul.f32 %v2780, 0.6931472
          %v2782 = vlog2.pop %v2663
          %v2783 = vmul.f32 %v2782, 0.6931472
          %v2784 = vlog2.pop %v2664
          %v2785 = vmul.f32 %v2784, 0.6931472
          %v2786 = vlog2.pop %v2665
          %v2787 = vmul.f32 %v2786, 0.6931472
          %v2788 = vlog2.pop %v2666
          %v2789 = vmul.f32 %v2788, 0.6931472
          %v2790 = vlog2.pop %v2667
          %v2791 = vmul.f32 %v2790, 0.6931472
          %v2792 = vlog2.pop %v2668
          %v2793 = vmul.f32 %v2792, 0.6931472
          %v2794 = vlog2.pop %v2669
          %v2795 = vmul.f32 %v2794, 0.6931472
          %v2796 = vlog2.pop %v2670
          %v2797 = vmul.f32 %v2796, 0.6931472
          %v2798 = vlog2.pop %v2671
          %v2799 = vmul.f32 %v2798, 0.6931472
          %v2800 = vlog2.pop %v2672
          %v2801 = vmul.f32 %v2800, 0.6931472
          %v2802 = vlog2.pop %v2673
          %v2803 = vmul.f32 %v2802, 0.6931472
          %v2804 = vlog2.pop %v2674
          %v2805 = vmul.f32 %v2804, 0.6931472
          %v2806 = vlog2.pop %v2675
          %v2807 = vmul.f32 %v2806, 0.6931472
          %v2808 = vlog2.pop %v2676
          %v2809 = vmul.f32 %v2808, 0.6931472
          %v2810 = vlog2.pop %v2677
          %v2811 = vmul.f32 %v2810, 0.6931472
          %v2812 = vlog2.pop %v2678
          %v2813 = vmul.f32 %v2812, 0.6931472
          %v2814 = vlog2.pop %v2679
          %v2815 = vmul.f32 %v2814, 0.6931472
          %v2816 = vlog2.pop %v2680
          %v2817 = vmul.f32 %v2816, 0.6931472
          %v2818 = vlog2.pop %v2681
          %v2819 = vmul.f32 %v2818, 0.6931472
          %v2820 = vlog2.pop %v2682
          %v2821 = vmul.f32 %v2820, 0.6931472
          %v2822 = vlog2.pop %v2683
          %v2823 = vmul.f32 %v2822, 0.6931472
          %v2824 = vlog2.pop %v2684
          %v2825 = vmul.f32 %v2824, 0.6931472
          %v2826 = vlog2.pop %v2685
          %v2827 = vmul.f32 %v2826, 0.6931472
          %v2828 = vlog2.pop %v2686
          %v2829 = vmul.f32 %v2828, 0.6931472
          %v2830 = vlog2.pop %v2687
          %v2831 = vmul.f32 %v2830, 0.6931472
          %v2832 = vlog2.pop %v2688
          %v2833 = vmul.f32 %v2832, 0.6931472
          %v2834 = vlog2.pop %v2689
          %v2835 = vmul.f32 %v2834, 0.6931472
          %v2836 = vlog2.pop %v2690
          %v2837 = vmul.f32 %v2836, 0.6931472
          %v2838 = vlog2.pop %v2691
          %v2839 = vmul.f32 %v2838, 0.6931472
          %v2840 = vlog2.pop %v2692
          %v2841 = vmul.f32 %v2840, 0.6931472
          %v2842 = vlog2.pop %v2693
          %v2843 = vmul.f32 %v2842, 0.6931472
          %v2844 = vlog2.pop %v2694
          %v2845 = vmul.f32 %v2844, 0.6931472
          %v2846 = vlog2.pop %v2695
          %v2847 = vmul.f32 %v2846, 0.6931472
          %v2848 = vlog2.pop %v2696
          %v2849 = vmul.f32 %v2848, 0.6931472
          %v2850 = vlog2.pop %v2697
          %v2851 = vmul.f32 %v2850, 0.6931472
          %v2852 = vlog2.pop %v2698
          %v2853 = vmul.f32 %v2852, 0.6931472
          %v2854 = vlog2.pop %v2699
          %v2855 = vmul.f32 %v2854, 0.6931472
          %v2856 = vlog2.pop %v2700
          %v2857 = vmul.f32 %v2856, 0.6931472
          %v2858 = vlog2.pop %v2701
          %v2859 = vmul.f32 %v2858, 0.6931472
          %v2860 = vlog2.pop %v2702
          %v2861 = vmul.f32 %v2860, 0.6931472
          %v2862 = vlog2.pop %v2703
          %v2863 = vmul.f32 %v2862, 0.6931472
          %v2864 = vmul.f32 %v2223, %v2705
          %v2865 = vmul.f32 %v2224, %v2707
          %v2866 = vmul.f32 %v2225, %v2709
          %v2867 = vmul.f32 %v2226, %v2711
          %v2868 = vmul.f32 %v2227, %v2713
          %v2869 = vmul.f32 %v2228, %v2715
          %v2870 = vmul.f32 %v2229, %v2717
          %v2871 = vmul.f32 %v2230, %v2719
          %v2872 = vmul.f32 %v2231, %v2721
          %v2873 = vmul.f32 %v2232, %v2723
          %v2874 = vmul.f32 %v2233, %v2725
          %v2875 = vmul.f32 %v2234, %v2727
          %v2876 = vmul.f32 %v2235, %v2729
          %v2877 = vmul.f32 %v2236, %v2731
          %v2878 = vmul.f32 %v2237, %v2733
          %v2879 = vmul.f32 %v2238, %v2735
          %v2880 = vmul.f32 %v2239, %v2737
          %v2881 = vmul.f32 %v2240, %v2739
          %v2882 = vmul.f32 %v2241, %v2741
          %v2883 = vmul.f32 %v2242, %v2743
          %v2884 = vmul.f32 %v2243, %v2745
          %v2885 = vmul.f32 %v2244, %v2747
          %v2886 = vmul.f32 %v2245, %v2749
          %v2887 = vmul.f32 %v2246, %v2751
          %v2888 = vmul.f32 %v2247, %v2753
          %v2889 = vmul.f32 %v2248, %v2755
          %v2890 = vmul.f32 %v2249, %v2757
          %v2891 = vmul.f32 %v2250, %v2759
          %v2892 = vmul.f32 %v2251, %v2761
          %v2893 = vmul.f32 %v2252, %v2763
          %v2894 = vmul.f32 %v2253, %v2765
          %v2895 = vmul.f32 %v2254, %v2767
          %v2896 = vmul.f32 %v2255, %v2769
          %v2897 = vmul.f32 %v2256, %v2771
          %v2898 = vmul.f32 %v2257, %v2773
          %v2899 = vmul.f32 %v2258, %v2775
          %v2900 = vmul.f32 %v2259, %v2777
          %v2901 = vmul.f32 %v2260, %v2779
          %v2902 = vmul.f32 %v2261, %v2781
          %v2903 = vmul.f32 %v2262, %v2783
          %v2904 = vmul.f32 %v2263, %v2785
          %v2905 = vmul.f32 %v2264, %v2787
          %v2906 = vmul.f32 %v2265, %v2789
          %v2907 = vmul.f32 %v2266, %v2791
          %v2908 = vmul.f32 %v2267, %v2793
          %v2909 = vmul.f32 %v2268, %v2795
          %v2910 = vmul.f32 %v2269, %v2797
          %v2911 = vmul.f32 %v2270, %v2799
          %v2912 = vmul.f32 %v2271, %v2801
          %v2913 = vmul.f32 %v2272, %v2803
          %v2914 = vmul.f32 %v2273, %v2805
          %v2915 = vmul.f32 %v2274, %v2807
          %v2916 = vmul.f32 %v2275, %v2809
          %v2917 = vmul.f32 %v2276, %v2811
          %v2918 = vmul.f32 %v2277, %v2813
          %v2919 = vmul.f32 %v2278, %v2815
          %v2920 = vmul.f32 %v2279, %v2817
          %v2921 = vmul.f32 %v2280, %v2819
          %v2922 = vmul.f32 %v2281, %v2821
          %v2923 = vmul.f32 %v2282, %v2823
          %v2924 = vmul.f32 %v2283, %v2825
          %v2925 = vmul.f32 %v2284, %v2827
          %v2926 = vmul.f32 %v2285, %v2829
          %v2927 = vmul.f32 %v2286, %v2831
          %v2928 = vmul.f32 %v2287, %v2833
          %v2929 = vmul.f32 %v2288, %v2835
          %v2930 = vmul.f32 %v2289, %v2837
          %v2931 = vmul.f32 %v2290, %v2839
          %v2932 = vmul.f32 %v2291, %v2841
          %v2933 = vmul.f32 %v2292, %v2843
          %v2934 = vmul.f32 %v2293, %v2845
          %v2935 = vmul.f32 %v2294, %v2847
          %v2936 = vmul.f32 %v2295, %v2849
          %v2937 = vmul.f32 %v2296, %v2851
          %v2938 = vmul.f32 %v2297, %v2853
          %v2939 = vmul.f32 %v2298, %v2855
          %v2940 = vmul.f32 %v2299, %v2857
          %v2941 = vmul.f32 %v2300, %v2859
          %v2942 = vmul.f32 %v2301, %v2861
          %v2943 = vmul.f32 %v2302, %v2863
          %v2944 = vmax.f32 %v2463, 1e-08
          %v2945 = vmax.f32 %v2464, 1e-08
          %v2946 = vmax.f32 %v2465, 1e-08
          %v2947 = vmax.f32 %v2466, 1e-08
          %v2948 = vmax.f32 %v2467, 1e-08
          %v2949 = vmax.f32 %v2468, 1e-08
          %v2950 = vmax.f32 %v2469, 1e-08
          %v2951 = vmax.f32 %v2470, 1e-08
          %v2952 = vmax.f32 %v2471, 1e-08
          %v2953 = vmax.f32 %v2472, 1e-08
          %v2954 = vmax.f32 %v2473, 1e-08
          %v2955 = vmax.f32 %v2474, 1e-08
          %v2956 = vmax.f32 %v2475, 1e-08
          %v2957 = vmax.f32 %v2476, 1e-08
          %v2958 = vmax.f32 %v2477, 1e-08
          %v2959 = vmax.f32 %v2478, 1e-08
          %v2960 = vmax.f32 %v2479, 1e-08
          %v2961 = vmax.f32 %v2480, 1e-08
          %v2962 = vmax.f32 %v2481, 1e-08
          %v2963 = vmax.f32 %v2482, 1e-08
          %v2964 = vmax.f32 %v2483, 1e-08
          %v2965 = vmax.f32 %v2484, 1e-08
          %v2966 = vmax.f32 %v2485, 1e-08
          %v2967 = vmax.f32 %v2486, 1e-08
          %v2968 = vmax.f32 %v2487, 1e-08
          %v2969 = vmax.f32 %v2488, 1e-08
          %v2970 = vmax.f32 %v2489, 1e-08
          %v2971 = vmax.f32 %v2490, 1e-08
          %v2972 = vmax.f32 %v2491, 1e-08
          %v2973 = vmax.f32 %v2492, 1e-08
          %v2974 = vmax.f32 %v2493, 1e-08
          %v2975 = vmax.f32 %v2494, 1e-08
          %v2976 = vmax.f32 %v2495, 1e-08
          %v2977 = vmax.f32 %v2496, 1e-08
          %v2978 = vmax.f32 %v2497, 1e-08
          %v2979 = vmax.f32 %v2498, 1e-08
          %v2980 = vmax.f32 %v2499, 1e-08
          %v2981 = vmax.f32 %v2500, 1e-08
          %v2982 = vmax.f32 %v2501, 1e-08
          %v2983 = vmax.f32 %v2502, 1e-08
          %v2984 = vmax.f32 %v2503, 1e-08
          %v2985 = vmax.f32 %v2504, 1e-08
          %v2986 = vmax.f32 %v2505, 1e-08
          %v2987 = vmax.f32 %v2506, 1e-08
          %v2988 = vmax.f32 %v2507, 1e-08
          %v2989 = vmax.f32 %v2508, 1e-08
          %v2990 = vmax.f32 %v2509, 1e-08
          %v2991 = vmax.f32 %v2510, 1e-08
          %v2992 = vmax.f32 %v2511, 1e-08
          %v2993 = vmax.f32 %v2512, 1e-08
          %v2994 = vmax.f32 %v2513, 1e-08
          %v2995 = vmax.f32 %v2514, 1e-08
          %v2996 = vmax.f32 %v2515, 1e-08
          %v2997 = vmax.f32 %v2516, 1e-08
          %v2998 = vmax.f32 %v2517, 1e-08
          %v2999 = vmax.f32 %v2518, 1e-08
          %v3000 = vmax.f32 %v2519, 1e-08
          %v3001 = vmax.f32 %v2520, 1e-08
          %v3002 = vmax.f32 %v2521, 1e-08
          %v3003 = vmax.f32 %v2522, 1e-08
          %v3004 = vmax.f32 %v2523, 1e-08
          %v3005 = vmax.f32 %v2524, 1e-08
          %v3006 = vmax.f32 %v2525, 1e-08
          %v3007 = vmax.f32 %v2526, 1e-08
          %v3008 = vmax.f32 %v2527, 1e-08
          %v3009 = vmax.f32 %v2528, 1e-08
          %v3010 = vmax.f32 %v2529, 1e-08
          %v3011 = vmax.f32 %v2530, 1e-08
          %v3012 = vmax.f32 %v2531, 1e-08
          %v3013 = vmax.f32 %v2532, 1e-08
          %v3014 = vmax.f32 %v2533, 1e-08
          %v3015 = vmax.f32 %v2534, 1e-08
          %v3016 = vmax.f32 %v2535, 1e-08
          %v3017 = vmax.f32 %v2536, 1e-08
          %v3018 = vmax.f32 %v2537, 1e-08
          %v3019 = vmax.f32 %v2538, 1e-08
          %v3020 = vmax.f32 %v2539, 1e-08
          %v3021 = vmax.f32 %v2540, 1e-08
          %v3022 = vmax.f32 %v2541, 1e-08
          %v3023 = vmax.f32 %v2542, 1e-08
          %v3024 = vlog2.pop %v2944
          %v3025 = vmul.f32 %v3024, 0.6931472
          %v3026 = vlog2.pop %v2945
          %v3027 = vmul.f32 %v3026, 0.6931472
          %v3028 = vlog2.pop %v2946
          %v3029 = vmul.f32 %v3028, 0.6931472
          %v3030 = vlog2.pop %v2947
          %v3031 = vmul.f32 %v3030, 0.6931472
          %v3032 = vlog2.pop %v2948
          %v3033 = vmul.f32 %v3032, 0.6931472
          %v3034 = vlog2.pop %v2949
          %v3035 = vmul.f32 %v3034, 0.6931472
          %v3036 = vlog2.pop %v2950
          %v3037 = vmul.f32 %v3036, 0.6931472
          %v3038 = vlog2.pop %v2951
          %v3039 = vmul.f32 %v3038, 0.6931472
          %v3040 = vlog2.pop %v2952
          %v3041 = vmul.f32 %v3040, 0.6931472
          %v3042 = vlog2.pop %v2953
          %v3043 = vmul.f32 %v3042, 0.6931472
          %v3044 = vlog2.pop %v2954
          %v3045 = vmul.f32 %v3044, 0.6931472
          %v3046 = vlog2.pop %v2955
          %v3047 = vmul.f32 %v3046, 0.6931472
          %v3048 = vlog2.pop %v2956
          %v3049 = vmul.f32 %v3048, 0.6931472
          %v3050 = vlog2.pop %v2957
          %v3051 = vmul.f32 %v3050, 0.6931472
          %v3052 = vlog2.pop %v2958
          %v3053 = vmul.f32 %v3052, 0.6931472
          %v3054 = vlog2.pop %v2959
          %v3055 = vmul.f32 %v3054, 0.6931472
          %v3056 = vlog2.pop %v2960
          %v3057 = vmul.f32 %v3056, 0.6931472
          %v3058 = vlog2.pop %v2961
          %v3059 = vmul.f32 %v3058, 0.6931472
          %v3060 = vlog2.pop %v2962
          %v3061 = vmul.f32 %v3060, 0.6931472
          %v3062 = vlog2.pop %v2963
          %v3063 = vmul.f32 %v3062, 0.6931472
          %v3064 = vlog2.pop %v2964
          %v3065 = vmul.f32 %v3064, 0.6931472
          %v3066 = vlog2.pop %v2965
          %v3067 = vmul.f32 %v3066, 0.6931472
          %v3068 = vlog2.pop %v2966
          %v3069 = vmul.f32 %v3068, 0.6931472
          %v3070 = vlog2.pop %v2967
          %v3071 = vmul.f32 %v3070, 0.6931472
          %v3072 = vlog2.pop %v2968
          %v3073 = vmul.f32 %v3072, 0.6931472
          %v3074 = vlog2.pop %v2969
          %v3075 = vmul.f32 %v3074, 0.6931472
          %v3076 = vlog2.pop %v2970
          %v3077 = vmul.f32 %v3076, 0.6931472
          %v3078 = vlog2.pop %v2971
          %v3079 = vmul.f32 %v3078, 0.6931472
          %v3080 = vlog2.pop %v2972
          %v3081 = vmul.f32 %v3080, 0.6931472
          %v3082 = vlog2.pop %v2973
          %v3083 = vmul.f32 %v3082, 0.6931472
          %v3084 = vlog2.pop %v2974
          %v3085 = vmul.f32 %v3084, 0.6931472
          %v3086 = vlog2.pop %v2975
          %v3087 = vmul.f32 %v3086, 0.6931472
          %v3088 = vlog2.pop %v2976
          %v3089 = vmul.f32 %v3088, 0.6931472
          %v3090 = vlog2.pop %v2977
          %v3091 = vmul.f32 %v3090, 0.6931472
          %v3092 = vlog2.pop %v2978
          %v3093 = vmul.f32 %v3092, 0.6931472
          %v3094 = vlog2.pop %v2979
          %v3095 = vmul.f32 %v3094, 0.6931472
          %v3096 = vlog2.pop %v2980
          %v3097 = vmul.f32 %v3096, 0.6931472
          %v3098 = vlog2.pop %v2981
          %v3099 = vmul.f32 %v3098, 0.6931472
          %v3100 = vlog2.pop %v2982
          %v3101 = vmul.f32 %v3100, 0.6931472
          %v3102 = vlog2.pop %v2983
          %v3103 = vmul.f32 %v3102, 0.6931472
          %v3104 = vlog2.pop %v2984
          %v3105 = vmul.f32 %v3104, 0.6931472
          %v3106 = vlog2.pop %v2985
          %v3107 = vmul.f32 %v3106, 0.6931472
          %v3108 = vlog2.pop %v2986
          %v3109 = vmul.f32 %v3108, 0.6931472
          %v3110 = vlog2.pop %v2987
          %v3111 = vmul.f32 %v3110, 0.6931472
          %v3112 = vlog2.pop %v2988
          %v3113 = vmul.f32 %v3112, 0.6931472
          %v3114 = vlog2.pop %v2989
          %v3115 = vmul.f32 %v3114, 0.6931472
          %v3116 = vlog2.pop %v2990
          %v3117 = vmul.f32 %v3116, 0.6931472
          %v3118 = vlog2.pop %v2991
          %v3119 = vmul.f32 %v3118, 0.6931472
          %v3120 = vlog2.pop %v2992
          %v3121 = vmul.f32 %v3120, 0.6931472
          %v3122 = vlog2.pop %v2993
          %v3123 = vmul.f32 %v3122, 0.6931472
          %v3124 = vlog2.pop %v2994
          %v3125 = vmul.f32 %v3124, 0.6931472
          %v3126 = vlog2.pop %v2995
          %v3127 = vmul.f32 %v3126, 0.6931472
          %v3128 = vlog2.pop %v2996
          %v3129 = vmul.f32 %v3128, 0.6931472
          %v3130 = vlog2.pop %v2997
          %v3131 = vmul.f32 %v3130, 0.6931472
          %v3132 = vlog2.pop %v2998
          %v3133 = vmul.f32 %v3132, 0.6931472
          %v3134 = vlog2.pop %v2999
          %v3135 = vmul.f32 %v3134, 0.6931472
          %v3136 = vlog2.pop %v3000
          %v3137 = vmul.f32 %v3136, 0.6931472
          %v3138 = vlog2.pop %v3001
          %v3139 = vmul.f32 %v3138, 0.6931472
          %v3140 = vlog2.pop %v3002
          %v3141 = vmul.f32 %v3140, 0.6931472
          %v3142 = vlog2.pop %v3003
          %v3143 = vmul.f32 %v3142, 0.6931472
          %v3144 = vlog2.pop %v3004
          %v3145 = vmul.f32 %v3144, 0.6931472
          %v3146 = vlog2.pop %v3005
          %v3147 = vmul.f32 %v3146, 0.6931472
          %v3148 = vlog2.pop %v3006
          %v3149 = vmul.f32 %v3148, 0.6931472
          %v3150 = vlog2.pop %v3007
          %v3151 = vmul.f32 %v3150, 0.6931472
          %v3152 = vlog2.pop %v3008
          %v3153 = vmul.f32 %v3152, 0.6931472
          %v3154 = vlog2.pop %v3009
          %v3155 = vmul.f32 %v3154, 0.6931472
          %v3156 = vlog2.pop %v3010
          %v3157 = vmul.f32 %v3156, 0.6931472
          %v3158 = vlog2.pop %v3011
          %v3159 = vmul.f32 %v3158, 0.6931472
          %v3160 = vlog2.pop %v3012
          %v3161 = vmul.f32 %v3160, 0.6931472
          %v3162 = vlog2.pop %v3013
          %v3163 = vmul.f32 %v3162, 0.6931472
          %v3164 = vlog2.pop %v3014
          %v3165 = vmul.f32 %v3164, 0.6931472
          %v3166 = vlog2.pop %v3015
          %v3167 = vmul.f32 %v3166, 0.6931472
          %v3168 = vlog2.pop %v3016
          %v3169 = vmul.f32 %v3168, 0.6931472
          %v3170 = vlog2.pop %v3017
          %v3171 = vmul.f32 %v3170, 0.6931472
          %v3172 = vlog2.pop %v3018
          %v3173 = vmul.f32 %v3172, 0.6931472
          %v3174 = vlog2.pop %v3019
          %v3175 = vmul.f32 %v3174, 0.6931472
          %v3176 = vlog2.pop %v3020
          %v3177 = vmul.f32 %v3176, 0.6931472
          %v3178 = vlog2.pop %v3021
          %v3179 = vmul.f32 %v3178, 0.6931472
          %v3180 = vlog2.pop %v3022
          %v3181 = vmul.f32 %v3180, 0.6931472
          %v3182 = vlog2.pop %v3023
          %v3183 = vmul.f32 %v3182, 0.6931472
          %v3184 = vmul.f32 %v2543, %v3025
          %v3185 = vmul.f32 %v2544, %v3027
          %v3186 = vmul.f32 %v2545, %v3029
          %v3187 = vmul.f32 %v2546, %v3031
          %v3188 = vmul.f32 %v2547, %v3033
          %v3189 = vmul.f32 %v2548, %v3035
          %v3190 = vmul.f32 %v2549, %v3037
          %v3191 = vmul.f32 %v2550, %v3039
          %v3192 = vmul.f32 %v2551, %v3041
          %v3193 = vmul.f32 %v2552, %v3043
          %v3194 = vmul.f32 %v2553, %v3045
          %v3195 = vmul.f32 %v2554, %v3047
          %v3196 = vmul.f32 %v2555, %v3049
          %v3197 = vmul.f32 %v2556, %v3051
          %v3198 = vmul.f32 %v2557, %v3053
          %v3199 = vmul.f32 %v2558, %v3055
          %v3200 = vmul.f32 %v2559, %v3057
          %v3201 = vmul.f32 %v2560, %v3059
          %v3202 = vmul.f32 %v2561, %v3061
          %v3203 = vmul.f32 %v2562, %v3063
          %v3204 = vmul.f32 %v2563, %v3065
          %v3205 = vmul.f32 %v2564, %v3067
          %v3206 = vmul.f32 %v2565, %v3069
          %v3207 = vmul.f32 %v2566, %v3071
          %v3208 = vmul.f32 %v2567, %v3073
          %v3209 = vmul.f32 %v2568, %v3075
          %v3210 = vmul.f32 %v2569, %v3077
          %v3211 = vmul.f32 %v2570, %v3079
          %v3212 = vmul.f32 %v2571, %v3081
          %v3213 = vmul.f32 %v2572, %v3083
          %v3214 = vmul.f32 %v2573, %v3085
          %v3215 = vmul.f32 %v2574, %v3087
          %v3216 = vmul.f32 %v2575, %v3089
          %v3217 = vmul.f32 %v2576, %v3091
          %v3218 = vmul.f32 %v2577, %v3093
          %v3219 = vmul.f32 %v2578, %v3095
          %v3220 = vmul.f32 %v2579, %v3097
          %v3221 = vmul.f32 %v2580, %v3099
          %v3222 = vmul.f32 %v2581, %v3101
          %v3223 = vmul.f32 %v2582, %v3103
          %v3224 = vmul.f32 %v2583, %v3105
          %v3225 = vmul.f32 %v2584, %v3107
          %v3226 = vmul.f32 %v2585, %v3109
          %v3227 = vmul.f32 %v2586, %v3111
          %v3228 = vmul.f32 %v2587, %v3113
          %v3229 = vmul.f32 %v2588, %v3115
          %v3230 = vmul.f32 %v2589, %v3117
          %v3231 = vmul.f32 %v2590, %v3119
          %v3232 = vmul.f32 %v2591, %v3121
          %v3233 = vmul.f32 %v2592, %v3123
          %v3234 = vmul.f32 %v2593, %v3125
          %v3235 = vmul.f32 %v2594, %v3127
          %v3236 = vmul.f32 %v2595, %v3129
          %v3237 = vmul.f32 %v2596, %v3131
          %v3238 = vmul.f32 %v2597, %v3133
          %v3239 = vmul.f32 %v2598, %v3135
          %v3240 = vmul.f32 %v2599, %v3137
          %v3241 = vmul.f32 %v2600, %v3139
          %v3242 = vmul.f32 %v2601, %v3141
          %v3243 = vmul.f32 %v2602, %v3143
          %v3244 = vmul.f32 %v2603, %v3145
          %v3245 = vmul.f32 %v2604, %v3147
          %v3246 = vmul.f32 %v2605, %v3149
          %v3247 = vmul.f32 %v2606, %v3151
          %v3248 = vmul.f32 %v2607, %v3153
          %v3249 = vmul.f32 %v2608, %v3155
          %v3250 = vmul.f32 %v2609, %v3157
          %v3251 = vmul.f32 %v2610, %v3159
          %v3252 = vmul.f32 %v2611, %v3161
          %v3253 = vmul.f32 %v2612, %v3163
          %v3254 = vmul.f32 %v2613, %v3165
          %v3255 = vmul.f32 %v2614, %v3167
          %v3256 = vmul.f32 %v2615, %v3169
          %v3257 = vmul.f32 %v2616, %v3171
          %v3258 = vmul.f32 %v2617, %v3173
          %v3259 = vmul.f32 %v2618, %v3175
          %v3260 = vmul.f32 %v2619, %v3177
          %v3261 = vmul.f32 %v2620, %v3179
          %v3262 = vmul.f32 %v2621, %v3181
          %v3263 = vmul.f32 %v2622, %v3183
          %v3264 = vadd.f32 %v2864, %v3184
          %v3265 = vadd.f32 %v2865, %v3185
          %v3266 = vadd.f32 %v2866, %v3186
          %v3267 = vadd.f32 %v2867, %v3187
          %v3268 = vadd.f32 %v2868, %v3188
          %v3269 = vadd.f32 %v2869, %v3189
          %v3270 = vadd.f32 %v2870, %v3190
          %v3271 = vadd.f32 %v2871, %v3191
          %v3272 = vadd.f32 %v2872, %v3192
          %v3273 = vadd.f32 %v2873, %v3193
          %v3274 = vadd.f32 %v2874, %v3194
          %v3275 = vadd.f32 %v2875, %v3195
          %v3276 = vadd.f32 %v2876, %v3196
          %v3277 = vadd.f32 %v2877, %v3197
          %v3278 = vadd.f32 %v2878, %v3198
          %v3279 = vadd.f32 %v2879, %v3199
          %v3280 = vadd.f32 %v2880, %v3200
          %v3281 = vadd.f32 %v2881, %v3201
          %v3282 = vadd.f32 %v2882, %v3202
          %v3283 = vadd.f32 %v2883, %v3203
          %v3284 = vadd.f32 %v2884, %v3204
          %v3285 = vadd.f32 %v2885, %v3205
          %v3286 = vadd.f32 %v2886, %v3206
          %v3287 = vadd.f32 %v2887, %v3207
          %v3288 = vadd.f32 %v2888, %v3208
          %v3289 = vadd.f32 %v2889, %v3209
          %v3290 = vadd.f32 %v2890, %v3210
          %v3291 = vadd.f32 %v2891, %v3211
          %v3292 = vadd.f32 %v2892, %v3212
          %v3293 = vadd.f32 %v2893, %v3213
          %v3294 = vadd.f32 %v2894, %v3214
          %v3295 = vadd.f32 %v2895, %v3215
          %v3296 = vadd.f32 %v2896, %v3216
          %v3297 = vadd.f32 %v2897, %v3217
          %v3298 = vadd.f32 %v2898, %v3218
          %v3299 = vadd.f32 %v2899, %v3219
          %v3300 = vadd.f32 %v2900, %v3220
          %v3301 = vadd.f32 %v2901, %v3221
          %v3302 = vadd.f32 %v2902, %v3222
          %v3303 = vadd.f32 %v2903, %v3223
          %v3304 = vadd.f32 %v2904, %v3224
          %v3305 = vadd.f32 %v2905, %v3225
          %v3306 = vadd.f32 %v2906, %v3226
          %v3307 = vadd.f32 %v2907, %v3227
          %v3308 = vadd.f32 %v2908, %v3228
          %v3309 = vadd.f32 %v2909, %v3229
          %v3310 = vadd.f32 %v2910, %v3230
          %v3311 = vadd.f32 %v2911, %v3231
          %v3312 = vadd.f32 %v2912, %v3232
          %v3313 = vadd.f32 %v2913, %v3233
          %v3314 = vadd.f32 %v2914, %v3234
          %v3315 = vadd.f32 %v2915, %v3235
          %v3316 = vadd.f32 %v2916, %v3236
          %v3317 = vadd.f32 %v2917, %v3237
          %v3318 = vadd.f32 %v2918, %v3238
          %v3319 = vadd.f32 %v2919, %v3239
          %v3320 = vadd.f32 %v2920, %v3240
          %v3321 = vadd.f32 %v2921, %v3241
          %v3322 = vadd.f32 %v2922, %v3242
          %v3323 = vadd.f32 %v2923, %v3243
          %v3324 = vadd.f32 %v2924, %v3244
          %v3325 = vadd.f32 %v2925, %v3245
          %v3326 = vadd.f32 %v2926, %v3246
          %v3327 = vadd.f32 %v2927, %v3247
          %v3328 = vadd.f32 %v2928, %v3248
          %v3329 = vadd.f32 %v2929, %v3249
          %v3330 = vadd.f32 %v2930, %v3250
          %v3331 = vadd.f32 %v2931, %v3251
          %v3332 = vadd.f32 %v2932, %v3252
          %v3333 = vadd.f32 %v2933, %v3253
          %v3334 = vadd.f32 %v2934, %v3254
          %v3335 = vadd.f32 %v2935, %v3255
          %v3336 = vadd.f32 %v2936, %v3256
          %v3337 = vadd.f32 %v2937, %v3257
          %v3338 = vadd.f32 %v2938, %v3258
          %v3339 = vadd.f32 %v2939, %v3259
          %v3340 = vadd.f32 %v2940, %v3260
          %v3341 = vadd.f32 %v2941, %v3261
          %v3342 = vadd.f32 %v2942, %v3262
          %v3343 = vadd.f32 %v2943, %v3263
          %v3344 = vmul.f32 %v2143, %v2223
          %v3345 = vmul.f32 %v2144, %v2224
          %v3346 = vmul.f32 %v2145, %v2225
          %v3347 = vmul.f32 %v2146, %v2226
          %v3348 = vmul.f32 %v2147, %v2227
          %v3349 = vmul.f32 %v2148, %v2228
          %v3350 = vmul.f32 %v2149, %v2229
          %v3351 = vmul.f32 %v2150, %v2230
          %v3352 = vmul.f32 %v2151, %v2231
          %v3353 = vmul.f32 %v2152, %v2232
          %v3354 = vmul.f32 %v2153, %v2233
          %v3355 = vmul.f32 %v2154, %v2234
          %v3356 = vmul.f32 %v2155, %v2235
          %v3357 = vmul.f32 %v2156, %v2236
          %v3358 = vmul.f32 %v2157, %v2237
          %v3359 = vmul.f32 %v2158, %v2238
          %v3360 = vmul.f32 %v2159, %v2239
          %v3361 = vmul.f32 %v2160, %v2240
          %v3362 = vmul.f32 %v2161, %v2241
          %v3363 = vmul.f32 %v2162, %v2242
          %v3364 = vmul.f32 %v2163, %v2243
          %v3365 = vmul.f32 %v2164, %v2244
          %v3366 = vmul.f32 %v2165, %v2245
          %v3367 = vmul.f32 %v2166, %v2246
          %v3368 = vmul.f32 %v2167, %v2247
          %v3369 = vmul.f32 %v2168, %v2248
          %v3370 = vmul.f32 %v2169, %v2249
          %v3371 = vmul.f32 %v2170, %v2250
          %v3372 = vmul.f32 %v2171, %v2251
          %v3373 = vmul.f32 %v2172, %v2252
          %v3374 = vmul.f32 %v2173, %v2253
          %v3375 = vmul.f32 %v2174, %v2254
          %v3376 = vmul.f32 %v2175, %v2255
          %v3377 = vmul.f32 %v2176, %v2256
          %v3378 = vmul.f32 %v2177, %v2257
          %v3379 = vmul.f32 %v2178, %v2258
          %v3380 = vmul.f32 %v2179, %v2259
          %v3381 = vmul.f32 %v2180, %v2260
          %v3382 = vmul.f32 %v2181, %v2261
          %v3383 = vmul.f32 %v2182, %v2262
          %v3384 = vmul.f32 %v2183, %v2263
          %v3385 = vmul.f32 %v2184, %v2264
          %v3386 = vmul.f32 %v2185, %v2265
          %v3387 = vmul.f32 %v2186, %v2266
          %v3388 = vmul.f32 %v2187, %v2267
          %v3389 = vmul.f32 %v2188, %v2268
          %v3390 = vmul.f32 %v2189, %v2269
          %v3391 = vmul.f32 %v2190, %v2270
          %v3392 = vmul.f32 %v2191, %v2271
          %v3393 = vmul.f32 %v2192, %v2272
          %v3394 = vmul.f32 %v2193, %v2273
          %v3395 = vmul.f32 %v2194, %v2274
          %v3396 = vmul.f32 %v2195, %v2275
          %v3397 = vmul.f32 %v2196, %v2276
          %v3398 = vmul.f32 %v2197, %v2277
          %v3399 = vmul.f32 %v2198, %v2278
          %v3400 = vmul.f32 %v2199, %v2279
          %v3401 = vmul.f32 %v2200, %v2280
          %v3402 = vmul.f32 %v2201, %v2281
          %v3403 = vmul.f32 %v2202, %v2282
          %v3404 = vmul.f32 %v2203, %v2283
          %v3405 = vmul.f32 %v2204, %v2284
          %v3406 = vmul.f32 %v2205, %v2285
          %v3407 = vmul.f32 %v2206, %v2286
          %v3408 = vmul.f32 %v2207, %v2287
          %v3409 = vmul.f32 %v2208, %v2288
          %v3410 = vmul.f32 %v2209, %v2289
          %v3411 = vmul.f32 %v2210, %v2290
          %v3412 = vmul.f32 %v2211, %v2291
          %v3413 = vmul.f32 %v2212, %v2292
          %v3414 = vmul.f32 %v2213, %v2293
          %v3415 = vmul.f32 %v2214, %v2294
          %v3416 = vmul.f32 %v2215, %v2295
          %v3417 = vmul.f32 %v2216, %v2296
          %v3418 = vmul.f32 %v2217, %v2297
          %v3419 = vmul.f32 %v2218, %v2298
          %v3420 = vmul.f32 %v2219, %v2299
          %v3421 = vmul.f32 %v2220, %v2300
          %v3422 = vmul.f32 %v2221, %v2301
          %v3423 = vmul.f32 %v2222, %v2302
          %v3424 = vmul.f32 %v2463, %v2543
          %v3425 = vmul.f32 %v2464, %v2544
          %v3426 = vmul.f32 %v2465, %v2545
          %v3427 = vmul.f32 %v2466, %v2546
          %v3428 = vmul.f32 %v2467, %v2547
          %v3429 = vmul.f32 %v2468, %v2548
          %v3430 = vmul.f32 %v2469, %v2549
          %v3431 = vmul.f32 %v2470, %v2550
          %v3432 = vmul.f32 %v2471, %v2551
          %v3433 = vmul.f32 %v2472, %v2552
          %v3434 = vmul.f32 %v2473, %v2553
          %v3435 = vmul.f32 %v2474, %v2554
          %v3436 = vmul.f32 %v2475, %v2555
          %v3437 = vmul.f32 %v2476, %v2556
          %v3438 = vmul.f32 %v2477, %v2557
          %v3439 = vmul.f32 %v2478, %v2558
          %v3440 = vmul.f32 %v2479, %v2559
          %v3441 = vmul.f32 %v2480, %v2560
          %v3442 = vmul.f32 %v2481, %v2561
          %v3443 = vmul.f32 %v2482, %v2562
          %v3444 = vmul.f32 %v2483, %v2563
          %v3445 = vmul.f32 %v2484, %v2564
          %v3446 = vmul.f32 %v2485, %v2565
          %v3447 = vmul.f32 %v2486, %v2566
          %v3448 = vmul.f32 %v2487, %v2567
          %v3449 = vmul.f32 %v2488, %v2568
          %v3450 = vmul.f32 %v2489, %v2569
          %v3451 = vmul.f32 %v2490, %v2570
          %v3452 = vmul.f32 %v2491, %v2571
          %v3453 = vmul.f32 %v2492, %v2572
          %v3454 = vmul.f32 %v2493, %v2573
          %v3455 = vmul.f32 %v2494, %v2574
          %v3456 = vmul.f32 %v2495, %v2575
          %v3457 = vmul.f32 %v2496, %v2576
          %v3458 = vmul.f32 %v2497, %v2577
          %v3459 = vmul.f32 %v2498, %v2578
          %v3460 = vmul.f32 %v2499, %v2579
          %v3461 = vmul.f32 %v2500, %v2580
          %v3462 = vmul.f32 %v2501, %v2581
          %v3463 = vmul.f32 %v2502, %v2582
          %v3464 = vmul.f32 %v2503, %v2583
          %v3465 = vmul.f32 %v2504, %v2584
          %v3466 = vmul.f32 %v2505, %v2585
          %v3467 = vmul.f32 %v2506, %v2586
          %v3468 = vmul.f32 %v2507, %v2587
          %v3469 = vmul.f32 %v2508, %v2588
          %v3470 = vmul.f32 %v2509, %v2589
          %v3471 = vmul.f32 %v2510, %v2590
          %v3472 = vmul.f32 %v2511, %v2591
          %v3473 = vmul.f32 %v2512, %v2592
          %v3474 = vmul.f32 %v2513, %v2593
          %v3475 = vmul.f32 %v2514, %v2594
          %v3476 = vmul.f32 %v2515, %v2595
          %v3477 = vmul.f32 %v2516, %v2596
          %v3478 = vmul.f32 %v2517, %v2597
          %v3479 = vmul.f32 %v2518, %v2598
          %v3480 = vmul.f32 %v2519, %v2599
          %v3481 = vmul.f32 %v2520, %v2600
          %v3482 = vmul.f32 %v2521, %v2601
          %v3483 = vmul.f32 %v2522, %v2602
          %v3484 = vmul.f32 %v2523, %v2603
          %v3485 = vmul.f32 %v2524, %v2604
          %v3486 = vmul.f32 %v2525, %v2605
          %v3487 = vmul.f32 %v2526, %v2606
          %v3488 = vmul.f32 %v2527, %v2607
          %v3489 = vmul.f32 %v2528, %v2608
          %v3490 = vmul.f32 %v2529, %v2609
          %v3491 = vmul.f32 %v2530, %v2610
          %v3492 = vmul.f32 %v2531, %v2611
          %v3493 = vmul.f32 %v2532, %v2612
          %v3494 = vmul.f32 %v2533, %v2613
          %v3495 = vmul.f32 %v2534, %v2614
          %v3496 = vmul.f32 %v2535, %v2615
          %v3497 = vmul.f32 %v2536, %v2616
          %v3498 = vmul.f32 %v2537, %v2617
          %v3499 = vmul.f32 %v2538, %v2618
          %v3500 = vmul.f32 %v2539, %v2619
          %v3501 = vmul.f32 %v2540, %v2620
          %v3502 = vmul.f32 %v2541, %v2621
          %v3503 = vmul.f32 %v2542, %v2622
          %v3504 = vadd.f32 %v3344, %v3424
          %v3505 = vadd.f32 %v3345, %v3425
          %v3506 = vadd.f32 %v3346, %v3426
          %v3507 = vadd.f32 %v3347, %v3427
          %v3508 = vadd.f32 %v3348, %v3428
          %v3509 = vadd.f32 %v3349, %v3429
          %v3510 = vadd.f32 %v3350, %v3430
          %v3511 = vadd.f32 %v3351, %v3431
          %v3512 = vadd.f32 %v3352, %v3432
          %v3513 = vadd.f32 %v3353, %v3433
          %v3514 = vadd.f32 %v3354, %v3434
          %v3515 = vadd.f32 %v3355, %v3435
          %v3516 = vadd.f32 %v3356, %v3436
          %v3517 = vadd.f32 %v3357, %v3437
          %v3518 = vadd.f32 %v3358, %v3438
          %v3519 = vadd.f32 %v3359, %v3439
          %v3520 = vadd.f32 %v3360, %v3440
          %v3521 = vadd.f32 %v3361, %v3441
          %v3522 = vadd.f32 %v3362, %v3442
          %v3523 = vadd.f32 %v3363, %v3443
          %v3524 = vadd.f32 %v3364, %v3444
          %v3525 = vadd.f32 %v3365, %v3445
          %v3526 = vadd.f32 %v3366, %v3446
          %v3527 = vadd.f32 %v3367, %v3447
          %v3528 = vadd.f32 %v3368, %v3448
          %v3529 = vadd.f32 %v3369, %v3449
          %v3530 = vadd.f32 %v3370, %v3450
          %v3531 = vadd.f32 %v3371, %v3451
          %v3532 = vadd.f32 %v3372, %v3452
          %v3533 = vadd.f32 %v3373, %v3453
          %v3534 = vadd.f32 %v3374, %v3454
          %v3535 = vadd.f32 %v3375, %v3455
          %v3536 = vadd.f32 %v3376, %v3456
          %v3537 = vadd.f32 %v3377, %v3457
          %v3538 = vadd.f32 %v3378, %v3458
          %v3539 = vadd.f32 %v3379, %v3459
          %v3540 = vadd.f32 %v3380, %v3460
          %v3541 = vadd.f32 %v3381, %v3461
          %v3542 = vadd.f32 %v3382, %v3462
          %v3543 = vadd.f32 %v3383, %v3463
          %v3544 = vadd.f32 %v3384, %v3464
          %v3545 = vadd.f32 %v3385, %v3465
          %v3546 = vadd.f32 %v3386, %v3466
          %v3547 = vadd.f32 %v3387, %v3467
          %v3548 = vadd.f32 %v3388, %v3468
          %v3549 = vadd.f32 %v3389, %v3469
          %v3550 = vadd.f32 %v3390, %v3470
          %v3551 = vadd.f32 %v3391, %v3471
          %v3552 = vadd.f32 %v3392, %v3472
          %v3553 = vadd.f32 %v3393, %v3473
          %v3554 = vadd.f32 %v3394, %v3474
          %v3555 = vadd.f32 %v3395, %v3475
          %v3556 = vadd.f32 %v3396, %v3476
          %v3557 = vadd.f32 %v3397, %v3477
          %v3558 = vadd.f32 %v3398, %v3478
          %v3559 = vadd.f32 %v3399, %v3479
          %v3560 = vadd.f32 %v3400, %v3480
          %v3561 = vadd.f32 %v3401, %v3481
          %v3562 = vadd.f32 %v3402, %v3482
          %v3563 = vadd.f32 %v3403, %v3483
          %v3564 = vadd.f32 %v3404, %v3484
          %v3565 = vadd.f32 %v3405, %v3485
          %v3566 = vadd.f32 %v3406, %v3486
          %v3567 = vadd.f32 %v3407, %v3487
          %v3568 = vadd.f32 %v3408, %v3488
          %v3569 = vadd.f32 %v3409, %v3489
          %v3570 = vadd.f32 %v3410, %v3490
          %v3571 = vadd.f32 %v3411, %v3491
          %v3572 = vadd.f32 %v3412, %v3492
          %v3573 = vadd.f32 %v3413, %v3493
          %v3574 = vadd.f32 %v3414, %v3494
          %v3575 = vadd.f32 %v3415, %v3495
          %v3576 = vadd.f32 %v3416, %v3496
          %v3577 = vadd.f32 %v3417, %v3497
          %v3578 = vadd.f32 %v3418, %v3498
          %v3579 = vadd.f32 %v3419, %v3499
          %v3580 = vadd.f32 %v3420, %v3500
          %v3581 = vadd.f32 %v3421, %v3501
          %v3582 = vadd.f32 %v3422, %v3502
          %v3583 = vadd.f32 %v3423, %v3503
          %v3584 = vsub.f32 1.0, %v3504
          %v3585 = vsub.f32 1.0, %v3505
          %v3586 = vsub.f32 1.0, %v3506
          %v3587 = vsub.f32 1.0, %v3507
          %v3588 = vsub.f32 1.0, %v3508
          %v3589 = vsub.f32 1.0, %v3509
          %v3590 = vsub.f32 1.0, %v3510
          %v3591 = vsub.f32 1.0, %v3511
          %v3592 = vsub.f32 1.0, %v3512
          %v3593 = vsub.f32 1.0, %v3513
          %v3594 = vsub.f32 1.0, %v3514
          %v3595 = vsub.f32 1.0, %v3515
          %v3596 = vsub.f32 1.0, %v3516
          %v3597 = vsub.f32 1.0, %v3517
          %v3598 = vsub.f32 1.0, %v3518
          %v3599 = vsub.f32 1.0, %v3519
          %v3600 = vsub.f32 1.0, %v3520
          %v3601 = vsub.f32 1.0, %v3521
          %v3602 = vsub.f32 1.0, %v3522
          %v3603 = vsub.f32 1.0, %v3523
          %v3604 = vsub.f32 1.0, %v3524
          %v3605 = vsub.f32 1.0, %v3525
          %v3606 = vsub.f32 1.0, %v3526
          %v3607 = vsub.f32 1.0, %v3527
          %v3608 = vsub.f32 1.0, %v3528
          %v3609 = vsub.f32 1.0, %v3529
          %v3610 = vsub.f32 1.0, %v3530
          %v3611 = vsub.f32 1.0, %v3531
          %v3612 = vsub.f32 1.0, %v3532
          %v3613 = vsub.f32 1.0, %v3533
          %v3614 = vsub.f32 1.0, %v3534
          %v3615 = vsub.f32 1.0, %v3535
          %v3616 = vsub.f32 1.0, %v3536
          %v3617 = vsub.f32 1.0, %v3537
          %v3618 = vsub.f32 1.0, %v3538
          %v3619 = vsub.f32 1.0, %v3539
          %v3620 = vsub.f32 1.0, %v3540
          %v3621 = vsub.f32 1.0, %v3541
          %v3622 = vsub.f32 1.0, %v3542
          %v3623 = vsub.f32 1.0, %v3543
          %v3624 = vsub.f32 1.0, %v3544
          %v3625 = vsub.f32 1.0, %v3545
          %v3626 = vsub.f32 1.0, %v3546
          %v3627 = vsub.f32 1.0, %v3547
          %v3628 = vsub.f32 1.0, %v3548
          %v3629 = vsub.f32 1.0, %v3549
          %v3630 = vsub.f32 1.0, %v3550
          %v3631 = vsub.f32 1.0, %v3551
          %v3632 = vsub.f32 1.0, %v3552
          %v3633 = vsub.f32 1.0, %v3553
          %v3634 = vsub.f32 1.0, %v3554
          %v3635 = vsub.f32 1.0, %v3555
          %v3636 = vsub.f32 1.0, %v3556
          %v3637 = vsub.f32 1.0, %v3557
          %v3638 = vsub.f32 1.0, %v3558
          %v3639 = vsub.f32 1.0, %v3559
          %v3640 = vsub.f32 1.0, %v3560
          %v3641 = vsub.f32 1.0, %v3561
          %v3642 = vsub.f32 1.0, %v3562
          %v3643 = vsub.f32 1.0, %v3563
          %v3644 = vsub.f32 1.0, %v3564
          %v3645 = vsub.f32 1.0, %v3565
          %v3646 = vsub.f32 1.0, %v3566
          %v3647 = vsub.f32 1.0, %v3567
          %v3648 = vsub.f32 1.0, %v3568
          %v3649 = vsub.f32 1.0, %v3569
          %v3650 = vsub.f32 1.0, %v3570
          %v3651 = vsub.f32 1.0, %v3571
          %v3652 = vsub.f32 1.0, %v3572
          %v3653 = vsub.f32 1.0, %v3573
          %v3654 = vsub.f32 1.0, %v3574
          %v3655 = vsub.f32 1.0, %v3575
          %v3656 = vsub.f32 1.0, %v3576
          %v3657 = vsub.f32 1.0, %v3577
          %v3658 = vsub.f32 1.0, %v3578
          %v3659 = vsub.f32 1.0, %v3579
          %v3660 = vsub.f32 1.0, %v3580
          %v3661 = vsub.f32 1.0, %v3581
          %v3662 = vsub.f32 1.0, %v3582
          %v3663 = vsub.f32 1.0, %v3583
          %v3664 = vstv %s2623
          %v3665 = vmul.f32 %v3664, %v2543
          %v3666 = vmul.f32 %v3664, %v2544
          %v3667 = vmul.f32 %v3664, %v2545
          %v3668 = vmul.f32 %v3664, %v2546
          %v3669 = vmul.f32 %v3664, %v2547
          %v3670 = vmul.f32 %v3664, %v2548
          %v3671 = vmul.f32 %v3664, %v2549
          %v3672 = vmul.f32 %v3664, %v2550
          %v3673 = vmul.f32 %v3664, %v2551
          %v3674 = vmul.f32 %v3664, %v2552
          %v3675 = vmul.f32 %v3664, %v2553
          %v3676 = vmul.f32 %v3664, %v2554
          %v3677 = vmul.f32 %v3664, %v2555
          %v3678 = vmul.f32 %v3664, %v2556
          %v3679 = vmul.f32 %v3664, %v2557
          %v3680 = vmul.f32 %v3664, %v2558
          %v3681 = vmul.f32 %v3664, %v2559
          %v3682 = vmul.f32 %v3664, %v2560
          %v3683 = vmul.f32 %v3664, %v2561
          %v3684 = vmul.f32 %v3664, %v2562
          %v3685 = vmul.f32 %v3664, %v2563
          %v3686 = vmul.f32 %v3664, %v2564
          %v3687 = vmul.f32 %v3664, %v2565
          %v3688 = vmul.f32 %v3664, %v2566
          %v3689 = vmul.f32 %v3664, %v2567
          %v3690 = vmul.f32 %v3664, %v2568
          %v3691 = vmul.f32 %v3664, %v2569
          %v3692 = vmul.f32 %v3664, %v2570
          %v3693 = vmul.f32 %v3664, %v2571
          %v3694 = vmul.f32 %v3664, %v2572
          %v3695 = vmul.f32 %v3664, %v2573
          %v3696 = vmul.f32 %v3664, %v2574
          %v3697 = vmul.f32 %v3664, %v2575
          %v3698 = vmul.f32 %v3664, %v2576
          %v3699 = vmul.f32 %v3664, %v2577
          %v3700 = vmul.f32 %v3664, %v2578
          %v3701 = vmul.f32 %v3664, %v2579
          %v3702 = vmul.f32 %v3664, %v2580
          %v3703 = vmul.f32 %v3664, %v2581
          %v3704 = vmul.f32 %v3664, %v2582
          %v3705 = vmul.f32 %v3664, %v2583
          %v3706 = vmul.f32 %v3664, %v2584
          %v3707 = vmul.f32 %v3664, %v2585
          %v3708 = vmul.f32 %v3664, %v2586
          %v3709 = vmul.f32 %v3664, %v2587
          %v3710 = vmul.f32 %v3664, %v2588
          %v3711 = vmul.f32 %v3664, %v2589
          %v3712 = vmul.f32 %v3664, %v2590
          %v3713 = vmul.f32 %v3664, %v2591
          %v3714 = vmul.f32 %v3664, %v2592
          %v3715 = vmul.f32 %v3664, %v2593
          %v3716 = vmul.f32 %v3664, %v2594
          %v3717 = vmul.f32 %v3664, %v2595
          %v3718 = vmul.f32 %v3664, %v2596
          %v3719 = vmul.f32 %v3664, %v2597
          %v3720 = vmul.f32 %v3664, %v2598
          %v3721 = vmul.f32 %v3664, %v2599
          %v3722 = vmul.f32 %v3664, %v2600
          %v3723 = vmul.f32 %v3664, %v2601
          %v3724 = vmul.f32 %v3664, %v2602
          %v3725 = vmul.f32 %v3664, %v2603
          %v3726 = vmul.f32 %v3664, %v2604
          %v3727 = vmul.f32 %v3664, %v2605
          %v3728 = vmul.f32 %v3664, %v2606
          %v3729 = vmul.f32 %v3664, %v2607
          %v3730 = vmul.f32 %v3664, %v2608
          %v3731 = vmul.f32 %v3664, %v2609
          %v3732 = vmul.f32 %v3664, %v2610
          %v3733 = vmul.f32 %v3664, %v2611
          %v3734 = vmul.f32 %v3664, %v2612
          %v3735 = vmul.f32 %v3664, %v2613
          %v3736 = vmul.f32 %v3664, %v2614
          %v3737 = vmul.f32 %v3664, %v2615
          %v3738 = vmul.f32 %v3664, %v2616
          %v3739 = vmul.f32 %v3664, %v2617
          %v3740 = vmul.f32 %v3664, %v2618
          %v3741 = vmul.f32 %v3664, %v2619
          %v3742 = vmul.f32 %v3664, %v2620
          %v3743 = vmul.f32 %v3664, %v2621
          %v3744 = vmul.f32 %v3664, %v2622
          %v3745 = vadd.f32 %v2223, %v3665
          %v3746 = vadd.f32 %v2224, %v3666
          %v3747 = vadd.f32 %v2225, %v3667
          %v3748 = vadd.f32 %v2226, %v3668
          %v3749 = vadd.f32 %v2227, %v3669
          %v3750 = vadd.f32 %v2228, %v3670
          %v3751 = vadd.f32 %v2229, %v3671
          %v3752 = vadd.f32 %v2230, %v3672
          %v3753 = vadd.f32 %v2231, %v3673
          %v3754 = vadd.f32 %v2232, %v3674
          %v3755 = vadd.f32 %v2233, %v3675
          %v3756 = vadd.f32 %v2234, %v3676
          %v3757 = vadd.f32 %v2235, %v3677
          %v3758 = vadd.f32 %v2236, %v3678
          %v3759 = vadd.f32 %v2237, %v3679
          %v3760 = vadd.f32 %v2238, %v3680
          %v3761 = vadd.f32 %v2239, %v3681
          %v3762 = vadd.f32 %v2240, %v3682
          %v3763 = vadd.f32 %v2241, %v3683
          %v3764 = vadd.f32 %v2242, %v3684
          %v3765 = vadd.f32 %v2243, %v3685
          %v3766 = vadd.f32 %v2244, %v3686
          %v3767 = vadd.f32 %v2245, %v3687
          %v3768 = vadd.f32 %v2246, %v3688
          %v3769 = vadd.f32 %v2247, %v3689
          %v3770 = vadd.f32 %v2248, %v3690
          %v3771 = vadd.f32 %v2249, %v3691
          %v3772 = vadd.f32 %v2250, %v3692
          %v3773 = vadd.f32 %v2251, %v3693
          %v3774 = vadd.f32 %v2252, %v3694
          %v3775 = vadd.f32 %v2253, %v3695
          %v3776 = vadd.f32 %v2254, %v3696
          %v3777 = vadd.f32 %v2255, %v3697
          %v3778 = vadd.f32 %v2256, %v3698
          %v3779 = vadd.f32 %v2257, %v3699
          %v3780 = vadd.f32 %v2258, %v3700
          %v3781 = vadd.f32 %v2259, %v3701
          %v3782 = vadd.f32 %v2260, %v3702
          %v3783 = vadd.f32 %v2261, %v3703
          %v3784 = vadd.f32 %v2262, %v3704
          %v3785 = vadd.f32 %v2263, %v3705
          %v3786 = vadd.f32 %v2264, %v3706
          %v3787 = vadd.f32 %v2265, %v3707
          %v3788 = vadd.f32 %v2266, %v3708
          %v3789 = vadd.f32 %v2267, %v3709
          %v3790 = vadd.f32 %v2268, %v3710
          %v3791 = vadd.f32 %v2269, %v3711
          %v3792 = vadd.f32 %v2270, %v3712
          %v3793 = vadd.f32 %v2271, %v3713
          %v3794 = vadd.f32 %v2272, %v3714
          %v3795 = vadd.f32 %v2273, %v3715
          %v3796 = vadd.f32 %v2274, %v3716
          %v3797 = vadd.f32 %v2275, %v3717
          %v3798 = vadd.f32 %v2276, %v3718
          %v3799 = vadd.f32 %v2277, %v3719
          %v3800 = vadd.f32 %v2278, %v3720
          %v3801 = vadd.f32 %v2279, %v3721
          %v3802 = vadd.f32 %v2280, %v3722
          %v3803 = vadd.f32 %v2281, %v3723
          %v3804 = vadd.f32 %v2282, %v3724
          %v3805 = vadd.f32 %v2283, %v3725
          %v3806 = vadd.f32 %v2284, %v3726
          %v3807 = vadd.f32 %v2285, %v3727
          %v3808 = vadd.f32 %v2286, %v3728
          %v3809 = vadd.f32 %v2287, %v3729
          %v3810 = vadd.f32 %v2288, %v3730
          %v3811 = vadd.f32 %v2289, %v3731
          %v3812 = vadd.f32 %v2290, %v3732
          %v3813 = vadd.f32 %v2291, %v3733
          %v3814 = vadd.f32 %v2292, %v3734
          %v3815 = vadd.f32 %v2293, %v3735
          %v3816 = vadd.f32 %v2294, %v3736
          %v3817 = vadd.f32 %v2295, %v3737
          %v3818 = vadd.f32 %v2296, %v3738
          %v3819 = vadd.f32 %v2297, %v3739
          %v3820 = vadd.f32 %v2298, %v3740
          %v3821 = vadd.f32 %v2299, %v3741
          %v3822 = vadd.f32 %v2300, %v3742
          %v3823 = vadd.f32 %v2301, %v3743
          %v3824 = vadd.f32 %v2302, %v3744
          %vm3825 = vcmp.gt.f32.partialorder %v3584, 0.0
          %vm3826 = vcmp.gt.f32.partialorder %v3585, 0.0
          %vm3827 = vcmp.gt.f32.partialorder %v3586, 0.0
          %vm3828 = vcmp.gt.f32.partialorder %v3587, 0.0
          %vm3829 = vcmp.gt.f32.partialorder %v3588, 0.0
          %vm3830 = vcmp.gt.f32.partialorder %v3589, 0.0
          %vm3831 = vcmp.gt.f32.partialorder %v3590, 0.0
          %vm3832 = vcmp.gt.f32.partialorder %v3591, 0.0
          %vm3833 = vcmp.gt.f32.partialorder %v3592, 0.0
          %vm3834 = vcmp.gt.f32.partialorder %v3593, 0.0
          %vm3835 = vcmp.gt.f32.partialorder %v3594, 0.0
          %vm3836 = vcmp.gt.f32.partialorder %v3595, 0.0
          %vm3837 = vcmp.gt.f32.partialorder %v3596, 0.0
          %vm3838 = vcmp.gt.f32.partialorder %v3597, 0.0
          %vm3839 = vcmp.gt.f32.partialorder %v3598, 0.0
          %vm3840 = vcmp.gt.f32.partialorder %v3599, 0.0
          %vm3841 = vcmp.gt.f32.partialorder %v3600, 0.0
          %vm3842 = vcmp.gt.f32.partialorder %v3601, 0.0
          %vm3843 = vcmp.gt.f32.partialorder %v3602, 0.0
          %vm3844 = vcmp.gt.f32.partialorder %v3603, 0.0
          %vm3845 = vcmp.gt.f32.partialorder %v3604, 0.0
          %vm3846 = vcmp.gt.f32.partialorder %v3605, 0.0
          %vm3847 = vcmp.gt.f32.partialorder %v3606, 0.0
          %vm3848 = vcmp.gt.f32.partialorder %v3607, 0.0
          %vm3849 = vcmp.gt.f32.partialorder %v3608, 0.0
          %vm3850 = vcmp.gt.f32.partialorder %v3609, 0.0
          %vm3851 = vcmp.gt.f32.partialorder %v3610, 0.0
          %vm3852 = vcmp.gt.f32.partialorder %v3611, 0.0
          %vm3853 = vcmp.gt.f32.partialorder %v3612, 0.0
          %vm3854 = vcmp.gt.f32.partialorder %v3613, 0.0
          %vm3855 = vcmp.gt.f32.partialorder %v3614, 0.0
          %vm3856 = vcmp.gt.f32.partialorder %v3615, 0.0
          %vm3857 = vcmp.gt.f32.partialorder %v3616, 0.0
          %vm3858 = vcmp.gt.f32.partialorder %v3617, 0.0
          %vm3859 = vcmp.gt.f32.partialorder %v3618, 0.0
          %vm3860 = vcmp.gt.f32.partialorder %v3619, 0.0
          %vm3861 = vcmp.gt.f32.partialorder %v3620, 0.0
          %vm3862 = vcmp.gt.f32.partialorder %v3621, 0.0
          %vm3863 = vcmp.gt.f32.partialorder %v3622, 0.0
          %vm3864 = vcmp.gt.f32.partialorder %v3623, 0.0
          %vm3865 = vcmp.gt.f32.partialorder %v3624, 0.0
          %vm3866 = vcmp.gt.f32.partialorder %v3625, 0.0
          %vm3867 = vcmp.gt.f32.partialorder %v3626, 0.0
          %vm3868 = vcmp.gt.f32.partialorder %v3627, 0.0
          %vm3869 = vcmp.gt.f32.partialorder %v3628, 0.0
          %vm3870 = vcmp.gt.f32.partialorder %v3629, 0.0
          %vm3871 = vcmp.gt.f32.partialorder %v3630, 0.0
          %vm3872 = vcmp.gt.f32.partialorder %v3631, 0.0
          %vm3873 = vcmp.gt.f32.partialorder %v3632, 0.0
          %vm3874 = vcmp.gt.f32.partialorder %v3633, 0.0
          %vm3875 = vcmp.gt.f32.partialorder %v3634, 0.0
          %vm3876 = vcmp.gt.f32.partialorder %v3635, 0.0
          %vm3877 = vcmp.gt.f32.partialorder %v3636, 0.0
          %vm3878 = vcmp.gt.f32.partialorder %v3637, 0.0
          %vm3879 = vcmp.gt.f32.partialorder %v3638, 0.0
          %vm3880 = vcmp.gt.f32.partialorder %v3639, 0.0
          %vm3881 = vcmp.gt.f32.partialorder %v3640, 0.0
          %vm3882 = vcmp.gt.f32.partialorder %v3641, 0.0
          %vm3883 = vcmp.gt.f32.partialorder %v3642, 0.0
          %vm3884 = vcmp.gt.f32.partialorder %v3643, 0.0
          %vm3885 = vcmp.gt.f32.partialorder %v3644, 0.0
          %vm3886 = vcmp.gt.f32.partialorder %v3645, 0.0
          %vm3887 = vcmp.gt.f32.partialorder %v3646, 0.0
          %vm3888 = vcmp.gt.f32.partialorder %v3647, 0.0
          %vm3889 = vcmp.gt.f32.partialorder %v3648, 0.0
          %vm3890 = vcmp.gt.f32.partialorder %v3649, 0.0
          %vm3891 = vcmp.gt.f32.partialorder %v3650, 0.0
          %vm3892 = vcmp.gt.f32.partialorder %v3651, 0.0
          %vm3893 = vcmp.gt.f32.partialorder %v3652, 0.0
          %vm3894 = vcmp.gt.f32.partialorder %v3653, 0.0
          %vm3895 = vcmp.gt.f32.partialorder %v3654, 0.0
          %vm3896 = vcmp.gt.f32.partialorder %v3655, 0.0
          %vm3897 = vcmp.gt.f32.partialorder %v3656, 0.0
          %vm3898 = vcmp.gt.f32.partialorder %v3657, 0.0
          %vm3899 = vcmp.gt.f32.partialorder %v3658, 0.0
          %vm3900 = vcmp.gt.f32.partialorder %v3659, 0.0
          %vm3901 = vcmp.gt.f32.partialorder %v3660, 0.0
          %vm3902 = vcmp.gt.f32.partialorder %v3661, 0.0
          %vm3903 = vcmp.gt.f32.partialorder %v3662, 0.0
          %vm3904 = vcmp.gt.f32.partialorder %v3663, 0.0
          %v3905 = vmax.f32 %v3584, 1e-30
          %v3906 = vmax.f32 %v3585, 1e-30
          %v3907 = vmax.f32 %v3586, 1e-30
          %v3908 = vmax.f32 %v3587, 1e-30
          %v3909 = vmax.f32 %v3588, 1e-30
          %v3910 = vmax.f32 %v3589, 1e-30
          %v3911 = vmax.f32 %v3590, 1e-30
          %v3912 = vmax.f32 %v3591, 1e-30
          %v3913 = vmax.f32 %v3592, 1e-30
          %v3914 = vmax.f32 %v3593, 1e-30
          %v3915 = vmax.f32 %v3594, 1e-30
          %v3916 = vmax.f32 %v3595, 1e-30
          %v3917 = vmax.f32 %v3596, 1e-30
          %v3918 = vmax.f32 %v3597, 1e-30
          %v3919 = vmax.f32 %v3598, 1e-30
          %v3920 = vmax.f32 %v3599, 1e-30
          %v3921 = vmax.f32 %v3600, 1e-30
          %v3922 = vmax.f32 %v3601, 1e-30
          %v3923 = vmax.f32 %v3602, 1e-30
          %v3924 = vmax.f32 %v3603, 1e-30
          %v3925 = vmax.f32 %v3604, 1e-30
          %v3926 = vmax.f32 %v3605, 1e-30
          %v3927 = vmax.f32 %v3606, 1e-30
          %v3928 = vmax.f32 %v3607, 1e-30
          %v3929 = vmax.f32 %v3608, 1e-30
          %v3930 = vmax.f32 %v3609, 1e-30
          %v3931 = vmax.f32 %v3610, 1e-30
          %v3932 = vmax.f32 %v3611, 1e-30
          %v3933 = vmax.f32 %v3612, 1e-30
          %v3934 = vmax.f32 %v3613, 1e-30
          %v3935 = vmax.f32 %v3614, 1e-30
          %v3936 = vmax.f32 %v3615, 1e-30
          %v3937 = vmax.f32 %v3616, 1e-30
          %v3938 = vmax.f32 %v3617, 1e-30
          %v3939 = vmax.f32 %v3618, 1e-30
          %v3940 = vmax.f32 %v3619, 1e-30
          %v3941 = vmax.f32 %v3620, 1e-30
          %v3942 = vmax.f32 %v3621, 1e-30
          %v3943 = vmax.f32 %v3622, 1e-30
          %v3944 = vmax.f32 %v3623, 1e-30
          %v3945 = vmax.f32 %v3624, 1e-30
          %v3946 = vmax.f32 %v3625, 1e-30
          %v3947 = vmax.f32 %v3626, 1e-30
          %v3948 = vmax.f32 %v3627, 1e-30
          %v3949 = vmax.f32 %v3628, 1e-30
          %v3950 = vmax.f32 %v3629, 1e-30
          %v3951 = vmax.f32 %v3630, 1e-30
          %v3952 = vmax.f32 %v3631, 1e-30
          %v3953 = vmax.f32 %v3632, 1e-30
          %v3954 = vmax.f32 %v3633, 1e-30
          %v3955 = vmax.f32 %v3634, 1e-30
          %v3956 = vmax.f32 %v3635, 1e-30
          %v3957 = vmax.f32 %v3636, 1e-30
          %v3958 = vmax.f32 %v3637, 1e-30
          %v3959 = vmax.f32 %v3638, 1e-30
          %v3960 = vmax.f32 %v3639, 1e-30
          %v3961 = vmax.f32 %v3640, 1e-30
          %v3962 = vmax.f32 %v3641, 1e-30
          %v3963 = vmax.f32 %v3642, 1e-30
          %v3964 = vmax.f32 %v3643, 1e-30
          %v3965 = vmax.f32 %v3644, 1e-30
          %v3966 = vmax.f32 %v3645, 1e-30
          %v3967 = vmax.f32 %v3646, 1e-30
          %v3968 = vmax.f32 %v3647, 1e-30
          %v3969 = vmax.f32 %v3648, 1e-30
          %v3970 = vmax.f32 %v3649, 1e-30
          %v3971 = vmax.f32 %v3650, 1e-30
          %v3972 = vmax.f32 %v3651, 1e-30
          %v3973 = vmax.f32 %v3652, 1e-30
          %v3974 = vmax.f32 %v3653, 1e-30
          %v3975 = vmax.f32 %v3654, 1e-30
          %v3976 = vmax.f32 %v3655, 1e-30
          %v3977 = vmax.f32 %v3656, 1e-30
          %v3978 = vmax.f32 %v3657, 1e-30
          %v3979 = vmax.f32 %v3658, 1e-30
          %v3980 = vmax.f32 %v3659, 1e-30
          %v3981 = vmax.f32 %v3660, 1e-30
          %v3982 = vmax.f32 %v3661, 1e-30
          %v3983 = vmax.f32 %v3662, 1e-30
          %v3984 = vmax.f32 %v3663, 1e-30
          %v3985 = vlog2.pop %v3905
          %v3986 = vmul.f32 %v3985, 0.6931472
          %v3987 = vlog2.pop %v3906
          %v3988 = vmul.f32 %v3987, 0.6931472
          %v3989 = vlog2.pop %v3907
          %v3990 = vmul.f32 %v3989, 0.6931472
          %v3991 = vlog2.pop %v3908
          %v3992 = vmul.f32 %v3991, 0.6931472
          %v3993 = vlog2.pop %v3909
          %v3994 = vmul.f32 %v3993, 0.6931472
          %v3995 = vlog2.pop %v3910
          %v3996 = vmul.f32 %v3995, 0.6931472
          %v3997 = vlog2.pop %v3911
          %v3998 = vmul.f32 %v3997, 0.6931472
          %v3999 = vlog2.pop %v3912
          %v4000 = vmul.f32 %v3999, 0.6931472
          %v4001 = vlog2.pop %v3913
          %v4002 = vmul.f32 %v4001, 0.6931472
          %v4003 = vlog2.pop %v3914
          %v4004 = vmul.f32 %v4003, 0.6931472
          %v4005 = vlog2.pop %v3915
          %v4006 = vmul.f32 %v4005, 0.6931472
          %v4007 = vlog2.pop %v3916
          %v4008 = vmul.f32 %v4007, 0.6931472
          %v4009 = vlog2.pop %v3917
          %v4010 = vmul.f32 %v4009, 0.6931472
          %v4011 = vlog2.pop %v3918
          %v4012 = vmul.f32 %v4011, 0.6931472
          %v4013 = vlog2.pop %v3919
          %v4014 = vmul.f32 %v4013, 0.6931472
          %v4015 = vlog2.pop %v3920
          %v4016 = vmul.f32 %v4015, 0.6931472
          %v4017 = vlog2.pop %v3921
          %v4018 = vmul.f32 %v4017, 0.6931472
          %v4019 = vlog2.pop %v3922
          %v4020 = vmul.f32 %v4019, 0.6931472
          %v4021 = vlog2.pop %v3923
          %v4022 = vmul.f32 %v4021, 0.6931472
          %v4023 = vlog2.pop %v3924
          %v4024 = vmul.f32 %v4023, 0.6931472
          %v4025 = vlog2.pop %v3925
          %v4026 = vmul.f32 %v4025, 0.6931472
          %v4027 = vlog2.pop %v3926
          %v4028 = vmul.f32 %v4027, 0.6931472
          %v4029 = vlog2.pop %v3927
          %v4030 = vmul.f32 %v4029, 0.6931472
          %v4031 = vlog2.pop %v3928
          %v4032 = vmul.f32 %v4031, 0.6931472
          %v4033 = vlog2.pop %v3929
          %v4034 = vmul.f32 %v4033, 0.6931472
          %v4035 = vlog2.pop %v3930
          %v4036 = vmul.f32 %v4035, 0.6931472
          %v4037 = vlog2.pop %v3931
          %v4038 = vmul.f32 %v4037, 0.6931472
          %v4039 = vlog2.pop %v3932
          %v4040 = vmul.f32 %v4039, 0.6931472
          %v4041 = vlog2.pop %v3933
          %v4042 = vmul.f32 %v4041, 0.6931472
          %v4043 = vlog2.pop %v3934
          %v4044 = vmul.f32 %v4043, 0.6931472
          %v4045 = vlog2.pop %v3935
          %v4046 = vmul.f32 %v4045, 0.6931472
          %v4047 = vlog2.pop %v3936
          %v4048 = vmul.f32 %v4047, 0.6931472
          %v4049 = vlog2.pop %v3937
          %v4050 = vmul.f32 %v4049, 0.6931472
          %v4051 = vlog2.pop %v3938
          %v4052 = vmul.f32 %v4051, 0.6931472
          %v4053 = vlog2.pop %v3939
          %v4054 = vmul.f32 %v4053, 0.6931472
          %v4055 = vlog2.pop %v3940
          %v4056 = vmul.f32 %v4055, 0.6931472
          %v4057 = vlog2.pop %v3941
          %v4058 = vmul.f32 %v4057, 0.6931472
          %v4059 = vlog2.pop %v3942
          %v4060 = vmul.f32 %v4059, 0.6931472
          %v4061 = vlog2.pop %v3943
          %v4062 = vmul.f32 %v4061, 0.6931472
          %v4063 = vlog2.pop %v3944
          %v4064 = vmul.f32 %v4063, 0.6931472
          %v4065 = vlog2.pop %v3945
          %v4066 = vmul.f32 %v4065, 0.6931472
          %v4067 = vlog2.pop %v3946
          %v4068 = vmul.f32 %v4067, 0.6931472
          %v4069 = vlog2.pop %v3947
          %v4070 = vmul.f32 %v4069, 0.6931472
          %v4071 = vlog2.pop %v3948
          %v4072 = vmul.f32 %v4071, 0.6931472
          %v4073 = vlog2.pop %v3949
          %v4074 = vmul.f32 %v4073, 0.6931472
          %v4075 = vlog2.pop %v3950
          %v4076 = vmul.f32 %v4075, 0.6931472
          %v4077 = vlog2.pop %v3951
          %v4078 = vmul.f32 %v4077, 0.6931472
          %v4079 = vlog2.pop %v3952
          %v4080 = vmul.f32 %v4079, 0.6931472
          %v4081 = vlog2.pop %v3953
          %v4082 = vmul.f32 %v4081, 0.6931472
          %v4083 = vlog2.pop %v3954
          %v4084 = vmul.f32 %v4083, 0.6931472
          %v4085 = vlog2.pop %v3955
          %v4086 = vmul.f32 %v4085, 0.6931472
          %v4087 = vlog2.pop %v3956
          %v4088 = vmul.f32 %v4087, 0.6931472
          %v4089 = vlog2.pop %v3957
          %v4090 = vmul.f32 %v4089, 0.6931472
          %v4091 = vlog2.pop %v3958
          %v4092 = vmul.f32 %v4091, 0.6931472
          %v4093 = vlog2.pop %v3959
          %v4094 = vmul.f32 %v4093, 0.6931472
          %v4095 = vlog2.pop %v3960
          %v4096 = vmul.f32 %v4095, 0.6931472
          %v4097 = vlog2.pop %v3961
          %v4098 = vmul.f32 %v4097, 0.6931472
          %v4099 = vlog2.pop %v3962
          %v4100 = vmul.f32 %v4099, 0.6931472
          %v4101 = vlog2.pop %v3963
          %v4102 = vmul.f32 %v4101, 0.6931472
          %v4103 = vlog2.pop %v3964
          %v4104 = vmul.f32 %v4103, 0.6931472
          %v4105 = vlog2.pop %v3965
          %v4106 = vmul.f32 %v4105, 0.6931472
          %v4107 = vlog2.pop %v3966
          %v4108 = vmul.f32 %v4107, 0.6931472
          %v4109 = vlog2.pop %v3967
          %v4110 = vmul.f32 %v4109, 0.6931472
          %v4111 = vlog2.pop %v3968
          %v4112 = vmul.f32 %v4111, 0.6931472
          %v4113 = vlog2.pop %v3969
          %v4114 = vmul.f32 %v4113, 0.6931472
          %v4115 = vlog2.pop %v3970
          %v4116 = vmul.f32 %v4115, 0.6931472
          %v4117 = vlog2.pop %v3971
          %v4118 = vmul.f32 %v4117, 0.6931472
          %v4119 = vlog2.pop %v3972
          %v4120 = vmul.f32 %v4119, 0.6931472
          %v4121 = vlog2.pop %v3973
          %v4122 = vmul.f32 %v4121, 0.6931472
          %v4123 = vlog2.pop %v3974
          %v4124 = vmul.f32 %v4123, 0.6931472
          %v4125 = vlog2.pop %v3975
          %v4126 = vmul.f32 %v4125, 0.6931472
          %v4127 = vlog2.pop %v3976
          %v4128 = vmul.f32 %v4127, 0.6931472
          %v4129 = vlog2.pop %v3977
          %v4130 = vmul.f32 %v4129, 0.6931472
          %v4131 = vlog2.pop %v3978
          %v4132 = vmul.f32 %v4131, 0.6931472
          %v4133 = vlog2.pop %v3979
          %v4134 = vmul.f32 %v4133, 0.6931472
          %v4135 = vlog2.pop %v3980
          %v4136 = vmul.f32 %v4135, 0.6931472
          %v4137 = vlog2.pop %v3981
          %v4138 = vmul.f32 %v4137, 0.6931472
          %v4139 = vlog2.pop %v3982
          %v4140 = vmul.f32 %v4139, 0.6931472
          %v4141 = vlog2.pop %v3983
          %v4142 = vmul.f32 %v4141, 0.6931472
          %v4143 = vlog2.pop %v3984
          %v4144 = vmul.f32 %v4143, 0.6931472
          %v4145 = vmul.f32 %v3745, %v3986
          %v4146 = vmul.f32 %v3746, %v3988
          %v4147 = vmul.f32 %v3747, %v3990
          %v4148 = vmul.f32 %v3748, %v3992
          %v4149 = vmul.f32 %v3749, %v3994
          %v4150 = vmul.f32 %v3750, %v3996
          %v4151 = vmul.f32 %v3751, %v3998
          %v4152 = vmul.f32 %v3752, %v4000
          %v4153 = vmul.f32 %v3753, %v4002
          %v4154 = vmul.f32 %v3754, %v4004
          %v4155 = vmul.f32 %v3755, %v4006
          %v4156 = vmul.f32 %v3756, %v4008
          %v4157 = vmul.f32 %v3757, %v4010
          %v4158 = vmul.f32 %v3758, %v4012
          %v4159 = vmul.f32 %v3759, %v4014
          %v4160 = vmul.f32 %v3760, %v4016
          %v4161 = vmul.f32 %v3761, %v4018
          %v4162 = vmul.f32 %v3762, %v4020
          %v4163 = vmul.f32 %v3763, %v4022
          %v4164 = vmul.f32 %v3764, %v4024
          %v4165 = vmul.f32 %v3765, %v4026
          %v4166 = vmul.f32 %v3766, %v4028
          %v4167 = vmul.f32 %v3767, %v4030
          %v4168 = vmul.f32 %v3768, %v4032
          %v4169 = vmul.f32 %v3769, %v4034
          %v4170 = vmul.f32 %v3770, %v4036
          %v4171 = vmul.f32 %v3771, %v4038
          %v4172 = vmul.f32 %v3772, %v4040
          %v4173 = vmul.f32 %v3773, %v4042
          %v4174 = vmul.f32 %v3774, %v4044
          %v4175 = vmul.f32 %v3775, %v4046
          %v4176 = vmul.f32 %v3776, %v4048
          %v4177 = vmul.f32 %v3777, %v4050
          %v4178 = vmul.f32 %v3778, %v4052
          %v4179 = vmul.f32 %v3779, %v4054
          %v4180 = vmul.f32 %v3780, %v4056
          %v4181 = vmul.f32 %v3781, %v4058
          %v4182 = vmul.f32 %v3782, %v4060
          %v4183 = vmul.f32 %v3783, %v4062
          %v4184 = vmul.f32 %v3784, %v4064
          %v4185 = vmul.f32 %v3785, %v4066
          %v4186 = vmul.f32 %v3786, %v4068
          %v4187 = vmul.f32 %v3787, %v4070
          %v4188 = vmul.f32 %v3788, %v4072
          %v4189 = vmul.f32 %v3789, %v4074
          %v4190 = vmul.f32 %v3790, %v4076
          %v4191 = vmul.f32 %v3791, %v4078
          %v4192 = vmul.f32 %v3792, %v4080
          %v4193 = vmul.f32 %v3793, %v4082
          %v4194 = vmul.f32 %v3794, %v4084
          %v4195 = vmul.f32 %v3795, %v4086
          %v4196 = vmul.f32 %v3796, %v4088
          %v4197 = vmul.f32 %v3797, %v4090
          %v4198 = vmul.f32 %v3798, %v4092
          %v4199 = vmul.f32 %v3799, %v4094
          %v4200 = vmul.f32 %v3800, %v4096
          %v4201 = vmul.f32 %v3801, %v4098
          %v4202 = vmul.f32 %v3802, %v4100
          %v4203 = vmul.f32 %v3803, %v4102
          %v4204 = vmul.f32 %v3804, %v4104
          %v4205 = vmul.f32 %v3805, %v4106
          %v4206 = vmul.f32 %v3806, %v4108
          %v4207 = vmul.f32 %v3807, %v4110
          %v4208 = vmul.f32 %v3808, %v4112
          %v4209 = vmul.f32 %v3809, %v4114
          %v4210 = vmul.f32 %v3810, %v4116
          %v4211 = vmul.f32 %v3811, %v4118
          %v4212 = vmul.f32 %v3812, %v4120
          %v4213 = vmul.f32 %v3813, %v4122
          %v4214 = vmul.f32 %v3814, %v4124
          %v4215 = vmul.f32 %v3815, %v4126
          %v4216 = vmul.f32 %v3816, %v4128
          %v4217 = vmul.f32 %v3817, %v4130
          %v4218 = vmul.f32 %v3818, %v4132
          %v4219 = vmul.f32 %v3819, %v4134
          %v4220 = vmul.f32 %v3820, %v4136
          %v4221 = vmul.f32 %v3821, %v4138
          %v4222 = vmul.f32 %v3822, %v4140
          %v4223 = vmul.f32 %v3823, %v4142
          %v4224 = vmul.f32 %v3824, %v4144
          %v4225 = vmul.f32 %v4145, 1.442695
          %v4226 = vpow.pop %v4225
          %v4227 = vmul.f32 %v4146, 1.442695
          %v4228 = vpow.pop %v4227
          %v4229 = vmul.f32 %v4147, 1.442695
          %v4230 = vpow.pop %v4229
          %v4231 = vmul.f32 %v4148, 1.442695
          %v4232 = vpow.pop %v4231
          %v4233 = vmul.f32 %v4149, 1.442695
          %v4234 = vpow.pop %v4233
          %v4235 = vmul.f32 %v4150, 1.442695
          %v4236 = vpow.pop %v4235
          %v4237 = vmul.f32 %v4151, 1.442695
          %v4238 = vpow.pop %v4237
          %v4239 = vmul.f32 %v4152, 1.442695
          %v4240 = vpow.pop %v4239
          %v4241 = vmul.f32 %v4153, 1.442695
          %v4242 = vpow.pop %v4241
          %v4243 = vmul.f32 %v4154, 1.442695
          %v4244 = vpow.pop %v4243
          %v4245 = vmul.f32 %v4155, 1.442695
          %v4246 = vpow.pop %v4245
          %v4247 = vmul.f32 %v4156, 1.442695
          %v4248 = vpow.pop %v4247
          %v4249 = vmul.f32 %v4157, 1.442695
          %v4250 = vpow.pop %v4249
          %v4251 = vmul.f32 %v4158, 1.442695
          %v4252 = vpow.pop %v4251
          %v4253 = vmul.f32 %v4159, 1.442695
          %v4254 = vpow.pop %v4253
          %v4255 = vmul.f32 %v4160, 1.442695
          %v4256 = vpow.pop %v4255
          %v4257 = vmul.f32 %v4161, 1.442695
          %v4258 = vpow.pop %v4257
          %v4259 = vmul.f32 %v4162, 1.442695
          %v4260 = vpow.pop %v4259
          %v4261 = vmul.f32 %v4163, 1.442695
          %v4262 = vpow.pop %v4261
          %v4263 = vmul.f32 %v4164, 1.442695
          %v4264 = vpow.pop %v4263
          %v4265 = vmul.f32 %v4165, 1.442695
          %v4266 = vpow.pop %v4265
          %v4267 = vmul.f32 %v4166, 1.442695
          %v4268 = vpow.pop %v4267
          %v4269 = vmul.f32 %v4167, 1.442695
          %v4270 = vpow.pop %v4269
          %v4271 = vmul.f32 %v4168, 1.442695
          %v4272 = vpow.pop %v4271
          %v4273 = vmul.f32 %v4169, 1.442695
          %v4274 = vpow.pop %v4273
          %v4275 = vmul.f32 %v4170, 1.442695
          %v4276 = vpow.pop %v4275
          %v4277 = vmul.f32 %v4171, 1.442695
          %v4278 = vpow.pop %v4277
          %v4279 = vmul.f32 %v4172, 1.442695
          %v4280 = vpow.pop %v4279
          %v4281 = vmul.f32 %v4173, 1.442695
          %v4282 = vpow.pop %v4281
          %v4283 = vmul.f32 %v4174, 1.442695
          %v4284 = vpow.pop %v4283
          %v4285 = vmul.f32 %v4175, 1.442695
          %v4286 = vpow.pop %v4285
          %v4287 = vmul.f32 %v4176, 1.442695
          %v4288 = vpow.pop %v4287
          %v4289 = vmul.f32 %v4177, 1.442695
          %v4290 = vpow.pop %v4289
          %v4291 = vmul.f32 %v4178, 1.442695
          %v4292 = vpow.pop %v4291
          %v4293 = vmul.f32 %v4179, 1.442695
          %v4294 = vpow.pop %v4293
          %v4295 = vmul.f32 %v4180, 1.442695
          %v4296 = vpow.pop %v4295
          %v4297 = vmul.f32 %v4181, 1.442695
          %v4298 = vpow.pop %v4297
          %v4299 = vmul.f32 %v4182, 1.442695
          %v4300 = vpow.pop %v4299
          %v4301 = vmul.f32 %v4183, 1.442695
          %v4302 = vpow.pop %v4301
          %v4303 = vmul.f32 %v4184, 1.442695
          %v4304 = vpow.pop %v4303
          %v4305 = vmul.f32 %v4185, 1.442695
          %v4306 = vpow.pop %v4305
          %v4307 = vmul.f32 %v4186, 1.442695
          %v4308 = vpow.pop %v4307
          %v4309 = vmul.f32 %v4187, 1.442695
          %v4310 = vpow.pop %v4309
          %v4311 = vmul.f32 %v4188, 1.442695
          %v4312 = vpow.pop %v4311
          %v4313 = vmul.f32 %v4189, 1.442695
          %v4314 = vpow.pop %v4313
          %v4315 = vmul.f32 %v4190, 1.442695
          %v4316 = vpow.pop %v4315
          %v4317 = vmul.f32 %v4191, 1.442695
          %v4318 = vpow.pop %v4317
          %v4319 = vmul.f32 %v4192, 1.442695
          %v4320 = vpow.pop %v4319
          %v4321 = vmul.f32 %v4193, 1.442695
          %v4322 = vpow.pop %v4321
          %v4323 = vmul.f32 %v4194, 1.442695
          %v4324 = vpow.pop %v4323
          %v4325 = vmul.f32 %v4195, 1.442695
          %v4326 = vpow.pop %v4325
          %v4327 = vmul.f32 %v4196, 1.442695
          %v4328 = vpow.pop %v4327
          %v4329 = vmul.f32 %v4197, 1.442695
          %v4330 = vpow.pop %v4329
          %v4331 = vmul.f32 %v4198, 1.442695
          %v4332 = vpow.pop %v4331
          %v4333 = vmul.f32 %v4199, 1.442695
          %v4334 = vpow.pop %v4333
          %v4335 = vmul.f32 %v4200, 1.442695
          %v4336 = vpow.pop %v4335
          %v4337 = vmul.f32 %v4201, 1.442695
          %v4338 = vpow.pop %v4337
          %v4339 = vmul.f32 %v4202, 1.442695
          %v4340 = vpow.pop %v4339
          %v4341 = vmul.f32 %v4203, 1.442695
          %v4342 = vpow.pop %v4341
          %v4343 = vmul.f32 %v4204, 1.442695
          %v4344 = vpow.pop %v4343
          %v4345 = vmul.f32 %v4205, 1.442695
          %v4346 = vpow.pop %v4345
          %v4347 = vmul.f32 %v4206, 1.442695
          %v4348 = vpow.pop %v4347
          %v4349 = vmul.f32 %v4207, 1.442695
          %v4350 = vpow.pop %v4349
          %v4351 = vmul.f32 %v4208, 1.442695
          %v4352 = vpow.pop %v4351
          %v4353 = vmul.f32 %v4209, 1.442695
          %v4354 = vpow.pop %v4353
          %v4355 = vmul.f32 %v4210, 1.442695
          %v4356 = vpow.pop %v4355
          %v4357 = vmul.f32 %v4211, 1.442695
          %v4358 = vpow.pop %v4357
          %v4359 = vmul.f32 %v4212, 1.442695
          %v4360 = vpow.pop %v4359
          %v4361 = vmul.f32 %v4213, 1.442695
          %v4362 = vpow.pop %v4361
          %v4363 = vmul.f32 %v4214, 1.442695
          %v4364 = vpow.pop %v4363
          %v4365 = vmul.f32 %v4215, 1.442695
          %v4366 = vpow.pop %v4365
          %v4367 = vmul.f32 %v4216, 1.442695
          %v4368 = vpow.pop %v4367
          %v4369 = vmul.f32 %v4217, 1.442695
          %v4370 = vpow.pop %v4369
          %v4371 = vmul.f32 %v4218, 1.442695
          %v4372 = vpow.pop %v4371
          %v4373 = vmul.f32 %v4219, 1.442695
          %v4374 = vpow.pop %v4373
          %v4375 = vmul.f32 %v4220, 1.442695
          %v4376 = vpow.pop %v4375
          %v4377 = vmul.f32 %v4221, 1.442695
          %v4378 = vpow.pop %v4377
          %v4379 = vmul.f32 %v4222, 1.442695
          %v4380 = vpow.pop %v4379
          %v4381 = vmul.f32 %v4223, 1.442695
          %v4382 = vpow.pop %v4381
          %v4383 = vmul.f32 %v4224, 1.442695
          %v4384 = vpow.pop %v4383
          %v4385 = vsel %vm3825, %v4226, 0.0
          %v4386 = vsel %vm3826, %v4228, 0.0
          %v4387 = vsel %vm3827, %v4230, 0.0
          %v4388 = vsel %vm3828, %v4232, 0.0
          %v4389 = vsel %vm3829, %v4234, 0.0
          %v4390 = vsel %vm3830, %v4236, 0.0
          %v4391 = vsel %vm3831, %v4238, 0.0
          %v4392 = vsel %vm3832, %v4240, 0.0
          %v4393 = vsel %vm3833, %v4242, 0.0
          %v4394 = vsel %vm3834, %v4244, 0.0
          %v4395 = vsel %vm3835, %v4246, 0.0
          %v4396 = vsel %vm3836, %v4248, 0.0
          %v4397 = vsel %vm3837, %v4250, 0.0
          %v4398 = vsel %vm3838, %v4252, 0.0
          %v4399 = vsel %vm3839, %v4254, 0.0
          %v4400 = vsel %vm3840, %v4256, 0.0
          %v4401 = vsel %vm3841, %v4258, 0.0
          %v4402 = vsel %vm3842, %v4260, 0.0
          %v4403 = vsel %vm3843, %v4262, 0.0
          %v4404 = vsel %vm3844, %v4264, 0.0
          %v4405 = vsel %vm3845, %v4266, 0.0
          %v4406 = vsel %vm3846, %v4268, 0.0
          %v4407 = vsel %vm3847, %v4270, 0.0
          %v4408 = vsel %vm3848, %v4272, 0.0
          %v4409 = vsel %vm3849, %v4274, 0.0
          %v4410 = vsel %vm3850, %v4276, 0.0
          %v4411 = vsel %vm3851, %v4278, 0.0
          %v4412 = vsel %vm3852, %v4280, 0.0
          %v4413 = vsel %vm3853, %v4282, 0.0
          %v4414 = vsel %vm3854, %v4284, 0.0
          %v4415 = vsel %vm3855, %v4286, 0.0
          %v4416 = vsel %vm3856, %v4288, 0.0
          %v4417 = vsel %vm3857, %v4290, 0.0
          %v4418 = vsel %vm3858, %v4292, 0.0
          %v4419 = vsel %vm3859, %v4294, 0.0
          %v4420 = vsel %vm3860, %v4296, 0.0
          %v4421 = vsel %vm3861, %v4298, 0.0
          %v4422 = vsel %vm3862, %v4300, 0.0
          %v4423 = vsel %vm3863, %v4302, 0.0
          %v4424 = vsel %vm3864, %v4304, 0.0
          %v4425 = vsel %vm3865, %v4306, 0.0
          %v4426 = vsel %vm3866, %v4308, 0.0
          %v4427 = vsel %vm3867, %v4310, 0.0
          %v4428 = vsel %vm3868, %v4312, 0.0
          %v4429 = vsel %vm3869, %v4314, 0.0
          %v4430 = vsel %vm3870, %v4316, 0.0
          %v4431 = vsel %vm3871, %v4318, 0.0
          %v4432 = vsel %vm3872, %v4320, 0.0
          %v4433 = vsel %vm3873, %v4322, 0.0
          %v4434 = vsel %vm3874, %v4324, 0.0
          %v4435 = vsel %vm3875, %v4326, 0.0
          %v4436 = vsel %vm3876, %v4328, 0.0
          %v4437 = vsel %vm3877, %v4330, 0.0
          %v4438 = vsel %vm3878, %v4332, 0.0
          %v4439 = vsel %vm3879, %v4334, 0.0
          %v4440 = vsel %vm3880, %v4336, 0.0
          %v4441 = vsel %vm3881, %v4338, 0.0
          %v4442 = vsel %vm3882, %v4340, 0.0
          %v4443 = vsel %vm3883, %v4342, 0.0
          %v4444 = vsel %vm3884, %v4344, 0.0
          %v4445 = vsel %vm3885, %v4346, 0.0
          %v4446 = vsel %vm3886, %v4348, 0.0
          %v4447 = vsel %vm3887, %v4350, 0.0
          %v4448 = vsel %vm3888, %v4352, 0.0
          %v4449 = vsel %vm3889, %v4354, 0.0
          %v4450 = vsel %vm3890, %v4356, 0.0
          %v4451 = vsel %vm3891, %v4358, 0.0
          %v4452 = vsel %vm3892, %v4360, 0.0
          %v4453 = vsel %vm3893, %v4362, 0.0
          %v4454 = vsel %vm3894, %v4364, 0.0
          %v4455 = vsel %vm3895, %v4366, 0.0
          %v4456 = vsel %vm3896, %v4368, 0.0
          %v4457 = vsel %vm3897, %v4370, 0.0
          %v4458 = vsel %vm3898, %v4372, 0.0
          %v4459 = vsel %vm3899, %v4374, 0.0
          %v4460 = vsel %vm3900, %v4376, 0.0
          %v4461 = vsel %vm3901, %v4378, 0.0
          %v4462 = vsel %vm3902, %v4380, 0.0
          %v4463 = vsel %vm3903, %v4382, 0.0
          %v4464 = vsel %vm3904, %v4384, 0.0
          %s4465 = sld [smem:[#allocation2 + $0x5]]
          %v4466 = vmul.f32 %v3264, %v4385
          %v4467 = vmul.f32 %v3265, %v4386
          %v4468 = vmul.f32 %v3266, %v4387
          %v4469 = vmul.f32 %v3267, %v4388
          %v4470 = vmul.f32 %v3268, %v4389
          %v4471 = vmul.f32 %v3269, %v4390
          %v4472 = vmul.f32 %v3270, %v4391
          %v4473 = vmul.f32 %v3271, %v4392
          %v4474 = vmul.f32 %v3272, %v4393
          %v4475 = vmul.f32 %v3273, %v4394
          %v4476 = vmul.f32 %v3274, %v4395
          %v4477 = vmul.f32 %v3275, %v4396
          %v4478 = vmul.f32 %v3276, %v4397
          %v4479 = vmul.f32 %v3277, %v4398
          %v4480 = vmul.f32 %v3278, %v4399
          %v4481 = vmul.f32 %v3279, %v4400
          %v4482 = vmul.f32 %v3280, %v4401
          %v4483 = vmul.f32 %v3281, %v4402
          %v4484 = vmul.f32 %v3282, %v4403
          %v4485 = vmul.f32 %v3283, %v4404
          %v4486 = vmul.f32 %v3284, %v4405
          %v4487 = vmul.f32 %v3285, %v4406
          %v4488 = vmul.f32 %v3286, %v4407
          %v4489 = vmul.f32 %v3287, %v4408
          %v4490 = vmul.f32 %v3288, %v4409
          %v4491 = vmul.f32 %v3289, %v4410
          %v4492 = vmul.f32 %v3290, %v4411
          %v4493 = vmul.f32 %v3291, %v4412
          %v4494 = vmul.f32 %v3292, %v4413
          %v4495 = vmul.f32 %v3293, %v4414
          %v4496 = vmul.f32 %v3294, %v4415
          %v4497 = vmul.f32 %v3295, %v4416
          %v4498 = vmul.f32 %v3296, %v4417
          %v4499 = vmul.f32 %v3297, %v4418
          %v4500 = vmul.f32 %v3298, %v4419
          %v4501 = vmul.f32 %v3299, %v4420
          %v4502 = vmul.f32 %v3300, %v4421
          %v4503 = vmul.f32 %v3301, %v4422
          %v4504 = vmul.f32 %v3302, %v4423
          %v4505 = vmul.f32 %v3303, %v4424
          %v4506 = vmul.f32 %v3304, %v4425
          %v4507 = vmul.f32 %v3305, %v4426
          %v4508 = vmul.f32 %v3306, %v4427
          %v4509 = vmul.f32 %v3307, %v4428
          %v4510 = vmul.f32 %v3308, %v4429
          %v4511 = vmul.f32 %v3309, %v4430
          %v4512 = vmul.f32 %v3310, %v4431
          %v4513 = vmul.f32 %v3311, %v4432
          %v4514 = vmul.f32 %v3312, %v4433
          %v4515 = vmul.f32 %v3313, %v4434
          %v4516 = vmul.f32 %v3314, %v4435
          %v4517 = vmul.f32 %v3315, %v4436
          %v4518 = vmul.f32 %v3316, %v4437
          %v4519 = vmul.f32 %v3317, %v4438
          %v4520 = vmul.f32 %v3318, %v4439
          %v4521 = vmul.f32 %v3319, %v4440
          %v4522 = vmul.f32 %v3320, %v4441
          %v4523 = vmul.f32 %v3321, %v4442
          %v4524 = vmul.f32 %v3322, %v4443
          %v4525 = vmul.f32 %v3323, %v4444
          %v4526 = vmul.f32 %v3324, %v4445
          %v4527 = vmul.f32 %v3325, %v4446
          %v4528 = vmul.f32 %v3326, %v4447
          %v4529 = vmul.f32 %v3327, %v4448
          %v4530 = vmul.f32 %v3328, %v4449
          %v4531 = vmul.f32 %v3329, %v4450
          %v4532 = vmul.f32 %v3330, %v4451
          %v4533 = vmul.f32 %v3331, %v4452
          %v4534 = vmul.f32 %v3332, %v4453
          %v4535 = vmul.f32 %v3333, %v4454
          %v4536 = vmul.f32 %v3334, %v4455
          %v4537 = vmul.f32 %v3335, %v4456
          %v4538 = vmul.f32 %v3336, %v4457
          %v4539 = vmul.f32 %v3337, %v4458
          %v4540 = vmul.f32 %v3338, %v4459
          %v4541 = vmul.f32 %v3339, %v4460
          %v4542 = vmul.f32 %v3340, %v4461
          %v4543 = vmul.f32 %v3341, %v4462
          %v4544 = vmul.f32 %v3342, %v4463
          %v4545 = vmul.f32 %v3343, %v4464
          %v4546 = vadd.f32 %v4466, %v4467
          %v4547 = vadd.f32 %v4546, %v4468
          %v4548 = vadd.f32 %v4547, %v4469
          %v4549 = vadd.f32 %v4548, %v4470
          %v4550 = vadd.f32 %v4549, %v4471
          %v4551 = vadd.f32 %v4550, %v4472
          %v4552 = vadd.f32 %v4551, %v4473
          %v4553 = vadd.f32 %v4552, %v4474
          %v4554 = vadd.f32 %v4553, %v4475
          %v4555 = vadd.f32 %v4554, %v4476
          %v4556 = vadd.f32 %v4555, %v4477
          %v4557 = vadd.f32 %v4556, %v4478
          %v4558 = vadd.f32 %v4557, %v4479
          %v4559 = vadd.f32 %v4558, %v4480
          %v4560 = vadd.f32 %v4559, %v4481
          %v4561 = vadd.f32 %v4560, %v4482
          %v4562 = vadd.f32 %v4561, %v4483
          %v4563 = vadd.f32 %v4562, %v4484
          %v4564 = vadd.f32 %v4563, %v4485
          %v4565 = vadd.f32 %v4564, %v4486
          %v4566 = vadd.f32 %v4565, %v4487
          %v4567 = vadd.f32 %v4566, %v4488
          %v4568 = vadd.f32 %v4567, %v4489
          %v4569 = vadd.f32 %v4568, %v4490
          %v4570 = vadd.f32 %v4569, %v4491
          %v4571 = vadd.f32 %v4570, %v4492
          %v4572 = vadd.f32 %v4571, %v4493
          %v4573 = vadd.f32 %v4572, %v4494
          %v4574 = vadd.f32 %v4573, %v4495
          %v4575 = vadd.f32 %v4574, %v4496
          %v4576 = vadd.f32 %v4575, %v4497
          %v4577 = vadd.f32 %v4576, %v4498
          %v4578 = vadd.f32 %v4577, %v4499
          %v4579 = vadd.f32 %v4578, %v4500
          %v4580 = vadd.f32 %v4579, %v4501
          %v4581 = vadd.f32 %v4580, %v4502
          %v4582 = vadd.f32 %v4581, %v4503
          %v4583 = vadd.f32 %v4582, %v4504
          %v4584 = vadd.f32 %v4583, %v4505
          %v4585 = vadd.f32 %v4584, %v4506
          %v4586 = vadd.f32 %v4585, %v4507
          %v4587 = vadd.f32 %v4586, %v4508
          %v4588 = vadd.f32 %v4587, %v4509
          %v4589 = vadd.f32 %v4588, %v4510
          %v4590 = vadd.f32 %v4589, %v4511
          %v4591 = vadd.f32 %v4590, %v4512
          %v4592 = vadd.f32 %v4591, %v4513
          %v4593 = vadd.f32 %v4592, %v4514
          %v4594 = vadd.f32 %v4593, %v4515
          %v4595 = vadd.f32 %v4594, %v4516
          %v4596 = vadd.f32 %v4595, %v4517
          %v4597 = vadd.f32 %v4596, %v4518
          %v4598 = vadd.f32 %v4597, %v4519
          %v4599 = vadd.f32 %v4598, %v4520
          %v4600 = vadd.f32 %v4599, %v4521
          %v4601 = vadd.f32 %v4600, %v4522
          %v4602 = vadd.f32 %v4601, %v4523
          %v4603 = vadd.f32 %v4602, %v4524
          %v4604 = vadd.f32 %v4603, %v4525
          %v4605 = vadd.f32 %v4604, %v4526
          %v4606 = vadd.f32 %v4605, %v4527
          %v4607 = vadd.f32 %v4606, %v4528
          %v4608 = vadd.f32 %v4607, %v4529
          %v4609 = vadd.f32 %v4608, %v4530
          %v4610 = vadd.f32 %v4609, %v4531
          %v4611 = vadd.f32 %v4610, %v4532
          %v4612 = vadd.f32 %v4611, %v4533
          %v4613 = vadd.f32 %v4612, %v4534
          %v4614 = vadd.f32 %v4613, %v4535
          %v4615 = vadd.f32 %v4614, %v4536
          %v4616 = vadd.f32 %v4615, %v4537
          %v4617 = vadd.f32 %v4616, %v4538
          %v4618 = vadd.f32 %v4617, %v4539
          %v4619 = vadd.f32 %v4618, %v4540
          %v4620 = vadd.f32 %v4619, %v4541
          %v4621 = vadd.f32 %v4620, %v4542
          %v4622 = vadd.f32 %v4621, %v4543
          %v4623 = vadd.f32 %v4622, %v4544
          %v4624 = vadd.f32 %v4623, %v4545
          %4625 = vadd.xlane.f32.xlu0 %v4624
          %v4626 = vpop.xlane.xlu0 %4625
          %v4627 = vrot.slane %v4626, 4
          %v4628 = vadd.f32 %v4626, %v4627
          %v4629 = vrot.slane %v4628, 2
          %v4630 = vadd.f32 %v4628, %v4629
          %v4631 = vrot.slane %v4630, 1
          %v4632 = vadd.f32 %v4630, %v4631
          %s4633 = vtos %v4632
          %s4634 = sadd.f32 %s4465, %s4633
          %s4635 = scalar_lea.smem [#allocation2], 5
          %4636 = sst [smem:[%s4635]] %s4634
        $region52: #{asymmetric_loss_adaptive.1} parent=27 // pred_fallthru
          _
        // Predicated region
        $region53: #{asymmetric_loss_adaptive.1} parent=27 // pred_check
          _
        $region54: #{asymmetric_loss_adaptive.1} parent=27 // pred_check_branch
          %4638 = sbr.rel (%p1796) target = $region56
        $region55: #{asymmetric_loss_adaptive.1} parent=27 // pred_region
          %s4639 = sld [smem:[#allocation2 + $0x5]]
          %s4640 = ssub.f32 0.0, %s4639
          %s4641 = sld [smem:[#allocation2 + $0x4]]
          %s4642 = sadd.f32 %s4640, %s4641
          %s4643 = scalar_lea.smem [#allocation8], 0
          %4644 = sst [smem:[%s4643]] %s4642
          %s4645 = sld [smem:[#allocation2 + $0x6]]
          %s4646 = scalar_lea.smem [#allocation8], 1
          %4647 = sst [smem:[%s4646]] %s4645
        $region56: #{asymmetric_loss_adaptive.1} parent=27 // pred_fallthru
          _
        // Predicated region
        $region57: #{asymmetric_loss_adaptive.1} parent=27 // pred_check
          %p4648 = pneg %p104
        $region58: #{asymmetric_loss_adaptive.1} parent=27 // pred_check_branch
          %4650 = sbr.rel (%p4648) target = $region60
        $region59: #{asymmetric_loss_adaptive.1} parent=27 // pred_region
          %s4652 = ssub.s32 16, 16
          %4653 = vsyncadd [#allocation5], %s4652
          %s4655 = sshll.u32 %s2, 4
          %s4656 = int_to_ptr.vmem [resolvable:$true] %s4655
          %4658 = dma.smem_to_vmem [#allocation8], 16, %s4656, [#allocation5]
        $region60: #{asymmetric_loss_adaptive.1} parent=27 // pred_fallthru
          _
        // Predicated region
        $region61: #{asymmetric_loss_adaptive.1} parent=27 // pred_check
          %p4659 = pneg %p104
        $region62: #{asymmetric_loss_adaptive.1} parent=27 // pred_check_branch
          %4661 = sbr.rel (%p4659) target = $region64
        $region63: #{asymmetric_loss_adaptive.1} parent=27 // pred_region
          %4662 = dma.done [#allocation5], 16
        $region64: #{asymmetric_loss_adaptive.1} parent=27 // pred_fallthru
          _
        %4663 = sfence
      $region28: #{asymmetric_loss_adaptive.1} parent=5 // pred_fallthru
        _
      %p4664 = scmp.le.s32.totalorder 2, %s11
      // Predicated region
      $region65: #{asymmetric_loss_adaptive.1} parent=5 // pred_check
        %p4665 = pneg %p4664
      $region66: #{asymmetric_loss_adaptive.1} parent=5 // pred_check_branch
        %4667 = sbr.rel (%p4665) target = $region68
      $region67: #{asymmetric_loss_adaptive.1} parent=5 // pred_region
        %s4668 = ssub.s32 %s11, 2
      $region68: #{asymmetric_loss_adaptive.1} parent=5 // pred_fallthru
        _
    $region6: #{asymmetric_loss_adaptive.1} parent=1 // loop_footer
      %s15 = sadd.s32 1, %s11
    $region7: #{asymmetric_loss_adaptive.1} parent=1 // loop_footer_branch
      %10 = sbr.rel target = $region3
    $region8: #{asymmetric_loss_adaptive.1} parent=1 // loop_exit
      _
    %4669 = vsyncpa [#allocation4], 1
    %s4670 = scalar_lea.sflag [#allocation4], 1
    %4671 = vsyncpa %s4670, 1
    %4672 = vsyncpa [#allocation7], 1
    %4673 = vsyncpa [#allocation5], 1
    %s4674 = scalar_lea.sflag [#allocation5], 1
    %4675 = vsyncpa %s4674, 1

</llo_original>
